<compile_context>
chip_gen: v5e
topology: v5e:2x2
jax: 0.10.0
libtpu: 0.0.40
codegen_flags: <defaults>
</compile_context>

<pallas_src>
import functools

import jax
import jax.numpy as jnp
from jax.experimental import pallas as pl
from jax.experimental.pallas import tpu as pltpu

# ----------------------------- small config ---------------------------------
VOCAB = 512
HIDDEN = 128
INTER = 256
N_LAYERS = 2
N_HEADS = 4
N_KV = 2
HEAD_DIM = HIDDEN // N_HEADS          # 32
HALF = HEAD_DIM // 2                  # 16
LATENT = HEAD_DIM // 4                # 8
MAX_POS = 64
N_EXPERTS = 4
TOPK = 2
EPS = 1e-5
ROPE_THETA = 10000.0
INIT_STD = 0.02

BATCH = 2
SEQ = 8

# Order of the stacked per-layer weight tensors (kernel arg order).
LAYER_KEYS = ('ln1', 'wq1', 'wq2', 'wk1', 'wk2', 'wv',
              'bq1', 'bq2', 'bk1', 'bk2', 'bv',
              'lnq', 'lnk', 'co', 'ln2', 'wgate',
              'wgs', 'wus', 'wds')


# ----------------------------- the fused kernel ------------------------------
def _model_kernel(*refs, batch, seq):
    (h0_ref, cosq_ref, sinq_ref, cosk_ref, sink_ref,
     ek_ref, bd_ref, mq_ref, mk_ref, msel_ref, fnorm_ref, wlm_ref,
     ln1_ref, wq1_ref, wq2_ref, wk1_ref, wk2_ref, wv_ref,
     bq1_ref, bq2_ref, bk1_ref, bk2_ref, bv_ref,
     lnq_ref, lnk_ref, co_ref, ln2_ref, wgate_ref,
     wgs_ref, wus_ref, wds_ref,
     logits_ref, h_state) = refs

    f32 = jnp.float32
    layer = pl.program_id(0)
    inv_seq = 1.0 / float(seq)

    def mm(a, b):
        return jax.lax.dot_general(a, b, (((1,), (0,)), ((), ())),
                                   preferred_element_type=f32)

    def rms(x):
        return x * jax.lax.rsqrt(jnp.mean(x * x, axis=-1, keepdims=True) + EPS)

    # ---- residual stream lives in VMEM scratch across layers ----
    @pl.when(layer == 0)
    def _():
        h_state[...] = h0_ref[...]

    x = h_state[...]                                            # (T, H)

    # ---- attention block ----
    xn = rms(x) * ln1_ref[...]                                  # input RMSNorm

    q1 = mm(xn, wq1_ref[...])                                   # (T, NH*HALF)
    q2 = mm(xn, wq2_ref[...])
    k1 = mm(xn, wk1_ref[...])                                   # (T, NKV*HALF)
    k2 = mm(xn, wk2_ref[...])
    v = mm(xn, wv_ref[...])                                     # (T, NKV*HD)

    # RoPE (rotate-half); tables are pre-tiled per head and per batch row.
    cq, sq = cosq_ref[...], sinq_ref[...]
    ck, sk = cosk_ref[...], sink_ref[...]
    qr1 = q1 * cq - q2 * sq
    qr2 = q2 * cq + q1 * sq
    kr1 = k1 * ck - k2 * sk
    kr2 = k2 * ck + k1 * sk

    # per-head latent projections via block-diagonal (kron) weights
    ql = mm(qr1, bq1_ref[...]) + mm(qr2, bq2_ref[...])          # (T, NH*L)
    kl = mm(kr1, bk1_ref[...]) + mm(kr2, bk2_ref[...])          # (T, NKV*L)
    vl = mm(v, bv_ref[...])                                     # (T, NKV*L)

    # latent RMSNorm per head: group mean over each L-lane block via matmul
    lnq = lnq_ref[...]
    lnk = lnk_ref[...]
    ql = ql * jax.lax.rsqrt(mm(ql * ql, mq_ref[...]) + EPS) * lnq
    kl = kl * jax.lax.rsqrt(mm(kl * kl, mk_ref[...]) + EPS) * lnk
    vl = vl * jax.lax.rsqrt(mm(vl * vl, mk_ref[...]) + EPS) * lnk

    # elu(x) + 1 on q/k latents only (matches reference)
    ql = jnp.where(ql > 0, ql + 1.0, jnp.exp(ql))
    kl = jnp.where(kl > 0, kl + 1.0, jnp.exp(kl))

    # GQA expansion kv-heads -> q-heads via constant selector (no repeat)
    klr = mm(kl, ek_ref[...])                                   # (T, NH*L)
    vlr = mm(vl, ek_ref[...])                                   # (T, NH*L)

    # per-sequence kv = k_lat^T v_lat (head-diag blocks), static 8-row slices
    bd = bd_ref[...]
    chunks = []
    for b in range(batch):
        r = b * seq
        klb = klr[r:r + seq]
        vlb = vlr[r:r + seq]
        kv = jax.lax.dot_general(klb, vlb, (((0,), (0,)), ((), ())),
                                 preferred_element_type=f32) * bd  # (NH*L, NH*L)
        chunks.append(mm(ql[r:r + seq], kv))                    # (seq, NH*L)
    qkv = jnp.concatenate(chunks, axis=0) * inv_seq             # (T, NH*L)

    attn = mm(qkv, co_ref[...])                                 # lat_out + o_proj
    hmid = x + attn                                             # residual

    # ---- post-attention norm + in-kernel top-2 routing + MoE ----
    hn2 = rms(hmid) * ln2_ref[...]

    lg = mm(hn2, wgate_ref[...])                                # (T, E) router logits
    m1 = jnp.max(lg, axis=-1, keepdims=True)
    lg_wo_max = jnp.where(lg >= m1, -1e30, lg)
    m2 = jnp.max(lg_wo_max, axis=-1, keepdims=True)             # 2nd-largest logit
    mask = (lg >= m2).astype(f32)                               # (T, E) top-2 mask

    moe = jnp.zeros((batch * seq, HIDDEN), f32)
    for e in range(N_EXPERTS):                                  # unrolled, chunked
        lo = e * INTER
        g = mm(hn2, wgs_ref[:, lo:lo + INTER])                  # (T, I)
        u = mm(hn2, wus_ref[:, lo:lo + INTER])                  # (T, I)
        mcol = mm(mask, msel_ref[:, lo:lo + INTER])             # broadcast mask[:,e]
        gm = g * mcol                                           # silu(0)=0 => mask ok
        hexp = gm * jax.nn.sigmoid(gm) * u                      # SwiGLU
        moe = moe + mm(hexp, wds_ref[lo:lo + INTER, :])         # down proj, accumulate
    h_new = hmid + moe                                          # residual
    h_state[...] = h_new

    # ---- final RMSNorm + tied lm_head on the last layer only ----
    @pl.when(layer == pl.num_programs(0) - 1)
    def _():
        hn = rms(h_new) * fnorm_ref[...]
        logits_ref[...] = mm(hn, wlm_ref[...])                  # (T, VOCAB) lane-dense


# ------------------------------- glue (JAX) ----------------------------------
def rope_tables(s, b):
    pos = jnp.arange(s, dtype=jnp.float32)[:, None]
    div = ROPE_THETA ** (jnp.arange(0, HEAD_DIM, 2, dtype=jnp.float32) / HEAD_DIM)
    f = pos / div                                               # (s, HALF)
    cos, sin = jnp.cos(f), jnp.sin(f)
    # tile per head (lane dim) and per batch (row dim) so rows match T = b*s
    return (jnp.tile(cos, (b, N_HEADS)), jnp.tile(sin, (b, N_HEADS)),
            jnp.tile(cos, (b, N_KV)), jnp.tile(sin, (b, N_KV)))


def forward(params, input_ids, attention_mask=None):
    del attention_mask  # reference default is all-ones -> masked_fill is a no-op
    b, s = input_ids.shape
    t = b * s
    h0 = params['embed'][input_ids].reshape(t, HIDDEN)          # embedding gather
    cosq, sinq, cosk, sink = rope_tables(s, b)

    cst = params['const']
    const_arrays = [cosq, sinq, cosk, sink, cst['ek'], cst['bd'], cst['mq'],
                    cst['mk'], cst['msel'], cst['fnorm'], cst['wlm']]
    layer_arrays = [params['stacked'][k] for k in LAYER_KEYS]

    def const_spec(a):
        return pl.BlockSpec(a.shape, lambda l: (0,) * a.ndim)

    def layer_spec(a):
        return pl.BlockSpec((None,) + a.shape[1:], lambda l: (l, 0, 0))

    in_specs = ([pl.BlockSpec((t, HIDDEN), lambda l: (0, 0))]
                + [const_spec(a) for a in const_arrays]
                + [layer_spec(a) for a in layer_arrays])

    logits = pl.pallas_call(
        functools.partial(_model_kernel, batch=b, seq=s),
        grid=(N_LAYERS,),
        in_specs=in_specs,
        out_specs=pl.BlockSpec((t, VOCAB), lambda l: (0, 0)),
        out_shape=jax.ShapeDtypeStruct((t, VOCAB), jnp.float32),
        scratch_shapes=[pltpu.VMEM((t, HIDDEN), jnp.float32)],
        compiler_params=pltpu.CompilerParams(
            dimension_semantics=("arbitrary",)),
    )(h0, *const_arrays, *layer_arrays)
    return logits.reshape(b, s, VOCAB)


# ------------------------------- params --------------------------------------
def _half_split(w, n_heads):
    # w: [n_heads*HEAD_DIM, HIDDEN] (PyTorch [out,in]).  Returns two [HIDDEN,
    # n_heads*HALF] matrices producing all heads' rotary first / second halves.
    w = w.reshape(n_heads, HEAD_DIM, HIDDEN)
    w1 = w[:, :HALF, :].reshape(n_heads * HALF, HIDDEN).T
    w2 = w[:, HALF:, :].reshape(n_heads * HALF, HIDDEN).T
    return w1, w2


def prepare_layer(r):
    f32 = jnp.float32
    eye_h = jnp.eye(N_HEADS, dtype=f32)
    eye_kv = jnp.eye(N_KV, dtype=f32)
    wq1, wq2 = _half_split(r['wq'], N_HEADS)
    wk1, wk2 = _half_split(r['wk'], N_KV)
    # fold lat_out_proj and o_proj into one (NH*L, HIDDEN) matrix
    wo_heads = r['wo'].T.reshape(N_HEADS, HEAD_DIM, HIDDEN)
    co = jnp.concatenate([r['wlo'].T @ wo_heads[h] for h in range(N_HEADS)],
                         axis=0)
    return {
        'ln1': r['ln1'][None, :],
        'ln2': r['ln2'][None, :],
        'wq1': wq1, 'wq2': wq2, 'wk1': wk1, 'wk2': wk2,
        'wv': r['wv'].T,
        'bq1': jnp.kron(eye_h, r['wql'][:, :HALF].T),
        'bq2': jnp.kron(eye_h, r['wql'][:, HALF:].T),
        'bk1': jnp.kron(eye_kv, r['wkl'][:, :HALF].T),
        'bk2': jnp.kron(eye_kv, r['wkl'][:, HALF:].T),
        'bv': jnp.kron(eye_kv, r['wvl'].T),
        'lnq': jnp.tile(r['lat_ln'], N_HEADS)[None, :],
        'lnk': jnp.tile(r['lat_ln'], N_KV)[None, :],
        'co': co,
        'wgate': r['w_gate'].T,
        'wgs': r['wg'].transpose(2, 0, 1).reshape(HIDDEN, N_EXPERTS * INTER),
        'wus': r['wu'].transpose(2, 0, 1).reshape(HIDDEN, N_EXPERTS * INTER),
        'wds': r['wd'].transpose(0, 2, 1).reshape(N_EXPERTS * INTER, HIDDEN),
    }


def init_params(key):
    f32 = jnp.float32
    keys = iter(jax.random.split(key, 64))

    def nrm(shape):
        return INIT_STD * jax.random.normal(next(keys), shape, f32)

    embed = nrm((VOCAB, HIDDEN))
    per_layer = []
    for _ in range(N_LAYERS):
        raw = {
            'ln1': jnp.ones((HIDDEN,), f32),
            'ln2': jnp.ones((HIDDEN,), f32),
            'wq': nrm((N_HEADS * HEAD_DIM, HIDDEN)),
            'wk': nrm((N_KV * HEAD_DIM, HIDDEN)),
            'wv': nrm((N_KV * HEAD_DIM, HIDDEN)),
            'wql': nrm((LATENT, HEAD_DIM)),
            'wkl': nrm((LATENT, HEAD_DIM)),
            'wvl': nrm((LATENT, HEAD_DIM)),
            'lat_ln': jnp.ones((LATENT,), f32),
            'wlo': nrm((HEAD_DIM, LATENT)),
            'wo': nrm((HIDDEN, N_HEADS * HEAD_DIM)),
            'w_gate': nrm((N_EXPERTS, HIDDEN)),
            'wg': nrm((N_EXPERTS, INTER, HIDDEN)),
            'wu': nrm((N_EXPERTS, INTER, HIDDEN)),
            'wd': nrm((N_EXPERTS, HIDDEN, INTER)),
        }
        per_layer.append(prepare_layer(raw))
    stacked = {k: jnp.stack([lp[k] for lp in per_layer], axis=0)
               for k in LAYER_KEYS}

    eye_l = jnp.eye(LATENT, dtype=f32)
    const = {
        # GQA kv-head -> q-head expansion selector (repeat_interleave equivalent)
        'ek': jnp.kron(jnp.eye(N_KV, dtype=f32),
                       jnp.kron(jnp.ones((1, N_HEADS // N_KV), f32), eye_l)),
        # head-block-diagonal mask for the kv contraction
        'bd': jnp.kron(jnp.eye(N_HEADS, dtype=f32),
                       jnp.ones((LATENT, LATENT), f32)),
        # per-head group-mean matrices for the latent RMSNorm
        'mq': jnp.kron(jnp.eye(N_HEADS, dtype=f32),
                       jnp.full((LATENT, LATENT), 1.0 / LATENT, f32)),
        'mk': jnp.kron(jnp.eye(N_KV, dtype=f32),
                       jnp.full((LATENT, LATENT), 1.0 / LATENT, f32)),
        # expert-mask column -> INTER-wide expansion selector
        'msel': jnp.kron(jnp.eye(N_EXPERTS, dtype=f32),
                         jnp.ones((1, INTER), f32)),
        'fnorm': jnp.ones((1, HIDDEN), f32),
        'wlm': embed.T,                                         # tied lm_head [in,out]
    }
    return {'embed': embed, 'const': const, 'stacked': stacked}


# --------------------------------- main ---------------------------------------
if __name__ == "__main__":
    key = jax.random.PRNGKey(0)
    pkey, dkey = jax.random.split(key)
    params = init_params(pkey)
    input_ids = jax.random.randint(dkey, (BATCH, SEQ), 0, VOCAB)

    fwd = jax.jit(forward)
    logits = fwd(params, input_ids)
    logits = jax.block_until_ready(logits)
    assert logits.shape == (BATCH, SEQ, VOCAB)
    assert bool(jnp.isfinite(logits).all())
    print("KERNEL_OK")
</pallas_src>

<mosaic_0001>
module attributes {stable_mosaic.version = 11 : i64} {
  func.func @_model_kernel(%arg0: i32, %arg1: memref<16x128xf32, #tpu.memory_space<vmem>>, %arg2: memref<16x64xf32, #tpu.memory_space<vmem>>, %arg3: memref<16x64xf32, #tpu.memory_space<vmem>>, %arg4: memref<16x32xf32, #tpu.memory_space<vmem>>, %arg5: memref<16x32xf32, #tpu.memory_space<vmem>>, %arg6: memref<16x32xf32, #tpu.memory_space<vmem>>, %arg7: memref<32x32xf32, #tpu.memory_space<vmem>>, %arg8: memref<32x32xf32, #tpu.memory_space<vmem>>, %arg9: memref<16x16xf32, #tpu.memory_space<vmem>>, %arg10: memref<4x1024xf32, #tpu.memory_space<vmem>>, %arg11: memref<1x128xf32, #tpu.memory_space<vmem>>, %arg12: memref<128x512xf32, #tpu.memory_space<vmem>>, %arg13: memref<1x1x128xf32, #tpu.memory_space<vmem>>, %arg14: memref<1x128x64xf32, #tpu.memory_space<vmem>>, %arg15: memref<1x128x64xf32, #tpu.memory_space<vmem>>, %arg16: memref<1x128x32xf32, #tpu.memory_space<vmem>>, %arg17: memref<1x128x32xf32, #tpu.memory_space<vmem>>, %arg18: memref<1x128x64xf32, #tpu.memory_space<vmem>>, %arg19: memref<1x64x32xf32, #tpu.memory_space<vmem>>, %arg20: memref<1x64x32xf32, #tpu.memory_space<vmem>>, %arg21: memref<1x32x16xf32, #tpu.memory_space<vmem>>, %arg22: memref<1x32x16xf32, #tpu.memory_space<vmem>>, %arg23: memref<1x64x16xf32, #tpu.memory_space<vmem>>, %arg24: memref<1x1x32xf32, #tpu.memory_space<vmem>>, %arg25: memref<1x1x16xf32, #tpu.memory_space<vmem>>, %arg26: memref<1x32x128xf32, #tpu.memory_space<vmem>>, %arg27: memref<1x1x128xf32, #tpu.memory_space<vmem>>, %arg28: memref<1x128x4xf32, #tpu.memory_space<vmem>>, %arg29: memref<1x128x1024xf32, #tpu.memory_space<vmem>>, %arg30: memref<1x128x1024xf32, #tpu.memory_space<vmem>>, %arg31: memref<1x1024x128xf32, #tpu.memory_space<vmem>>, %arg32: memref<16x512xf32, #tpu.memory_space<vmem>>, %arg33: memref<16x128xf32, #tpu.memory_space<vmem>>) attributes {dimension_semantics = [#tpu.dimension_semantics<arbitrary>], iteration_bounds = array<i64: 2>, scalar_prefetch = 0 : i64, scratch_operands = 1 : i64, tpu.core_type = #tpu.core_type<tc>, window_params = [{pipeline_mode = #tpu.pipeline_mode<synchronous>, transform_indices = @transform_0, window_bounds = array<i64: 16, 128>}, {pipeline_mode = #tpu.pipeline_mode<synchronous>, transform_indices = @transform_1, window_bounds = array<i64: 16, 64>}, {pipeline_mode = #tpu.pipeline_mode<synchronous>, transform_indices = @transform_2, window_bounds = array<i64: 16, 64>}, {pipeline_mode = #tpu.pipeline_mode<synchronous>, transform_indices = @transform_3, window_bounds = array<i64: 16, 32>}, {pipeline_mode = #tpu.pipeline_mode<synchronous>, transform_indices = @transform_4, window_bounds = array<i64: 16, 32>}, {pipeline_mode = #tpu.pipeline_mode<synchronous>, transform_indices = @transform_5, window_bounds = array<i64: 16, 32>}, {pipeline_mode = #tpu.pipeline_mode<synchronous>, transform_indices = @transform_6, window_bounds = array<i64: 32, 32>}, {pipeline_mode = #tpu.pipeline_mode<synchronous>, transform_indices = @transform_7, window_bounds = array<i64: 32, 32>}, {pipeline_mode = #tpu.pipeline_mode<synchronous>, transform_indices = @transform_8, window_bounds = array<i64: 16, 16>}, {pipeline_mode = #tpu.pipeline_mode<synchronous>, transform_indices = @transform_9, window_bounds = array<i64: 4, 1024>}, {pipeline_mode = #tpu.pipeline_mode<synchronous>, transform_indices = @transform_10, window_bounds = array<i64: 1, 128>}, {pipeline_mode = #tpu.pipeline_mode<synchronous>, transform_indices = @transform_11, window_bounds = array<i64: 128, 512>}, {transform_indices = @transform_12, window_bounds = array<i64: 1, 1, 128>}, {transform_indices = @transform_13, window_bounds = array<i64: 1, 128, 64>}, {transform_indices = @transform_14, window_bounds = array<i64: 1, 128, 64>}, {transform_indices = @transform_15, window_bounds = array<i64: 1, 128, 32>}, {transform_indices = @transform_16, window_bounds = array<i64: 1, 128, 32>}, {transform_indices = @transform_17, window_bounds = array<i64: 1, 128, 64>}, {transform_indices = @transform_18, window_bounds = array<i64: 1, 64, 32>}, {transform_indices = @transform_19, window_bounds = array<i64: 1, 64, 32>}, {transform_indices = @transform_20, window_bounds = array<i64: 1, 32, 16>}, {transform_indices = @transform_21, window_bounds = array<i64: 1, 32, 16>}, {transform_indices = @transform_22, window_bounds = array<i64: 1, 64, 16>}, {transform_indices = @transform_23, window_bounds = array<i64: 1, 1, 32>}, {transform_indices = @transform_24, window_bounds = array<i64: 1, 1, 16>}, {transform_indices = @transform_25, window_bounds = array<i64: 1, 32, 128>}, {transform_indices = @transform_26, window_bounds = array<i64: 1, 1, 128>}, {transform_indices = @transform_27, window_bounds = array<i64: 1, 128, 4>}, {transform_indices = @transform_28, window_bounds = array<i64: 1, 128, 1024>}, {transform_indices = @transform_29, window_bounds = array<i64: 1, 128, 1024>}, {transform_indices = @transform_30, window_bounds = array<i64: 1, 1024, 128>}, {pipeline_mode = #tpu.pipeline_mode<synchronous>, transform_indices = @transform_31, window_bounds = array<i64: 16, 512>}]} {
    %c0_i32 = arith.constant 0 : i32
    %0 = arith.cmpi eq, %arg0, %c0_i32 : i32
    %1 = arith.extui %0 : i1 to i32
    %c0_i32_0 = arith.constant 0 : i32
    %2 = arith.cmpi ne, %1, %c0_i32_0 : i32
    scf.if %2 {
      %c0_172 = arith.constant 0 : index
      %c0_173 = arith.constant 0 : index
      %248 = vector.load %arg1[%c0_172, %c0_173] : memref<16x128xf32, #tpu.memory_space<vmem>>, vector<16x128xf32>
      %c0_174 = arith.constant 0 : index
      %c0_175 = arith.constant 0 : index
      %249 = vector.load %arg33[%c0_174, %c0_175] : memref<16x128xf32, #tpu.memory_space<vmem>>, vector<16x128xf32>
      tpu.vector_store %arg33[%c0_174, %c0_175], %248 {strides = array<i32>} : memref<16x128xf32, #tpu.memory_space<vmem>>, vector<16x128xf32>,
    } else {
    }
    %c0 = arith.constant 0 : index
    %c0_1 = arith.constant 0 : index
    %3 = vector.load %arg33[%c0, %c0_1] : memref<16x128xf32, #tpu.memory_space<vmem>>, vector<16x128xf32>
    %4 = arith.mulf %3, %3 : vector<16x128xf32>
    %cst = arith.constant dense<0.000000e+00> : vector<16xf32>
    %5 = vector.multi_reduction <add>, %4, %cst [1] : vector<16x128xf32> to vector<16xf32>
    %6 = vector.shape_cast %5 : vector<16xf32> to vector<16x1xf32>
    %cst_2 = arith.constant 1.280000e+02 : f32
    %7 = vector.broadcast %cst_2 : f32 to vector<16x1xf32>
    %8 = arith.divf %6, %7 : vector<16x1xf32>
    %cst_3 = arith.constant 9.99999974E-6 : f32
    %9 = vector.broadcast %cst_3 : f32 to vector<16x1xf32>
    %10 = arith.addf %8, %9 : vector<16x1xf32>
    %11 = math.rsqrt %10 : vector<16x1xf32>
    %12 = vector.broadcast %11 : vector<16x1xf32> to vector<16x128xf32>
    %13 = arith.mulf %3, %12 : vector<16x128xf32>
    %c0_4 = arith.constant 0 : index
    %c0_5 = arith.constant 0 : index
    %c0_6 = arith.constant 0 : index
    %14 = vector.load %arg13[%c0_4, %c0_5, %c0_6] : memref<1x1x128xf32, #tpu.memory_space<vmem>>, vector<1x1x128xf32>
    %15 = vector.shape_cast %14 : vector<1x1x128xf32> to vector<1x128xf32>
    %16 = vector.broadcast %15 : vector<1x128xf32> to vector<16x128xf32>
    %17 = arith.mulf %13, %16 : vector<16x128xf32>
    %c0_7 = arith.constant 0 : index
    %c0_8 = arith.constant 0 : index
    %c0_9 = arith.constant 0 : index
    %18 = vector.load %arg14[%c0_7, %c0_8, %c0_9] : memref<1x128x64xf32, #tpu.memory_space<vmem>>, vector<1x128x64xf32>
    %19 = vector.shape_cast %18 : vector<1x128x64xf32> to vector<128x64xf32>
    %cst_10 = arith.constant dense<0.000000e+00> : vector<16x64xf32>
    %20 = tpu.matmul %17, %19, %cst_10 {dimension_numbers = #tpu.dot_dimension_numbers<[1], [0], [0], [1], [0, 0, 1, 1], [], []>} : vector<16x128xf32>, vector<128x64xf32>, vector<16x64xf32> -> vector<16x64xf32>
    %c0_11 = arith.constant 0 : index
    %c0_12 = arith.constant 0 : index
    %c0_13 = arith.constant 0 : index
    %21 = vector.load %arg15[%c0_11, %c0_12, %c0_13] : memref<1x128x64xf32, #tpu.memory_space<vmem>>, vector<1x128x64xf32>
    %22 = vector.shape_cast %21 : vector<1x128x64xf32> to vector<128x64xf32>
    %cst_14 = arith.constant dense<0.000000e+00> : vector<16x64xf32>
    %23 = tpu.matmul %17, %22, %cst_14 {dimension_numbers = #tpu.dot_dimension_numbers<[1], [0], [0], [1], [0, 0, 1, 1], [], []>} : vector<16x128xf32>, vector<128x64xf32>, vector<16x64xf32> -> vector<16x64xf32>
    %c0_15 = arith.constant 0 : index
    %c0_16 = arith.constant 0 : index
    %c0_17 = arith.constant 0 : index
    %24 = vector.load %arg16[%c0_15, %c0_16, %c0_17] : memref<1x128x32xf32, #tpu.memory_space<vmem>>, vector<1x128x32xf32>
    %25 = vector.shape_cast %24 : vector<1x128x32xf32> to vector<128x32xf32>
    %cst_18 = arith.constant dense<0.000000e+00> : vector<16x32xf32>
    %26 = tpu.matmul %17, %25, %cst_18 {dimension_numbers = #tpu.dot_dimension_numbers<[1], [0], [0], [1], [0, 0, 1, 1], [], []>} : vector<16x128xf32>, vector<128x32xf32>, vector<16x32xf32> -> vector<16x32xf32>
    %c0_19 = arith.constant 0 : index
    %c0_20 = arith.constant 0 : index
    %c0_21 = arith.constant 0 : index
    %27 = vector.load %arg17[%c0_19, %c0_20, %c0_21] : memref<1x128x32xf32, #tpu.memory_space<vmem>>, vector<1x128x32xf32>
    %28 = vector.shape_cast %27 : vector<1x128x32xf32> to vector<128x32xf32>
    %cst_22 = arith.constant dense<0.000000e+00> : vector<16x32xf32>
    %29 = tpu.matmul %17, %28, %cst_22 {dimension_numbers = #tpu.dot_dimension_numbers<[1], [0], [0], [1], [0, 0, 1, 1], [], []>} : vector<16x128xf32>, vector<128x32xf32>, vector<16x32xf32> -> vector<16x32xf32>
    %c0_23 = arith.constant 0 : index
    %c0_24 = arith.constant 0 : index
    %c0_25 = arith.constant 0 : index
    %30 = vector.load %arg18[%c0_23, %c0_24, %c0_25] : memref<1x128x64xf32, #tpu.memory_space<vmem>>, vector<1x128x64xf32>
    %31 = vector.shape_cast %30 : vector<1x128x64xf32> to vector<128x64xf32>
    %cst_26 = arith.constant dense<0.000000e+00> : vector<16x64xf32>
    %32 = tpu.matmul %17, %31, %cst_26 {dimension_numbers = #tpu.dot_dimension_numbers<[1], [0], [0], [1], [0, 0, 1, 1], [], []>} : vector<16x128xf32>, vector<128x64xf32>, vector<16x64xf32> -> vector<16x64xf32>
    %c0_27 = arith.constant 0 : index
    %c0_28 = arith.constant 0 : index
    %33 = vector.load %arg2[%c0_27, %c0_28] : memref<16x64xf32, #tpu.memory_space<vmem>>, vector<16x64xf32>
    %c0_29 = arith.constant 0 : index
    %c0_30 = arith.constant 0 : index
    %34 = vector.load %arg3[%c0_29, %c0_30] : memref<16x64xf32, #tpu.memory_space<vmem>>, vector<16x64xf32>
    %c0_31 = arith.constant 0 : index
    %c0_32 = arith.constant 0 : index
    %35 = vector.load %arg4[%c0_31, %c0_32] : memref<16x32xf32, #tpu.memory_space<vmem>>, vector<16x32xf32>
    %c0_33 = arith.constant 0 : index
    %c0_34 = arith.constant 0 : index
    %36 = vector.load %arg5[%c0_33, %c0_34] : memref<16x32xf32, #tpu.memory_space<vmem>>, vector<16x32xf32>
    %37 = arith.mulf %20, %33 : vector<16x64xf32>
    %38 = arith.mulf %23, %34 : vector<16x64xf32>
    %39 = arith.subf %37, %38 : vector<16x64xf32>
    %40 = arith.mulf %23, %33 : vector<16x64xf32>
    %41 = arith.mulf %20, %34 : vector<16x64xf32>
    %42 = arith.addf %40, %41 : vector<16x64xf32>
    %43 = arith.mulf %26, %35 : vector<16x32xf32>
    %44 = arith.mulf %29, %36 : vector<16x32xf32>
    %45 = arith.subf %43, %44 : vector<16x32xf32>
    %46 = arith.mulf %29, %35 : vector<16x32xf32>
    %47 = arith.mulf %26, %36 : vector<16x32xf32>
    %48 = arith.addf %46, %47 : vector<16x32xf32>
    %c0_35 = arith.constant 0 : index
    %c0_36 = arith.constant 0 : index
    %c0_37 = arith.constant 0 : index
    %49 = vector.load %arg19[%c0_35, %c0_36, %c0_37] : memref<1x64x32xf32, #tpu.memory_space<vmem>>, vector<1x64x32xf32>
    %50 = vector.shape_cast %49 : vector<1x64x32xf32> to vector<64x32xf32>
    %cst_38 = arith.constant dense<0.000000e+00> : vector<16x32xf32>
    %51 = tpu.matmul %39, %50, %cst_38 {dimension_numbers = #tpu.dot_dimension_numbers<[1], [0], [0], [1], [0, 0, 1, 1], [], []>} : vector<16x64xf32>, vector<64x32xf32>, vector<16x32xf32> -> vector<16x32xf32>
    %c0_39 = arith.constant 0 : index
    %c0_40 = arith.constant 0 : index
    %c0_41 = arith.constant 0 : index
    %52 = vector.load %arg20[%c0_39, %c0_40, %c0_41] : memref<1x64x32xf32, #tpu.memory_space<vmem>>, vector<1x64x32xf32>
    %53 = vector.shape_cast %52 : vector<1x64x32xf32> to vector<64x32xf32>
    %cst_42 = arith.constant dense<0.000000e+00> : vector<16x32xf32>
    %54 = tpu.matmul %42, %53, %cst_42 {dimension_numbers = #tpu.dot_dimension_numbers<[1], [0], [0], [1], [0, 0, 1, 1], [], []>} : vector<16x64xf32>, vector<64x32xf32>, vector<16x32xf32> -> vector<16x32xf32>
    %55 = arith.addf %51, %54 : vector<16x32xf32>
    %c0_43 = arith.constant 0 : index
    %c0_44 = arith.constant 0 : index
    %c0_45 = arith.constant 0 : index
    %56 = vector.load %arg21[%c0_43, %c0_44, %c0_45] : memref<1x32x16xf32, #tpu.memory_space<vmem>>, vector<1x32x16xf32>
    %57 = vector.shape_cast %56 : vector<1x32x16xf32> to vector<32x16xf32>
    %cst_46 = arith.constant dense<0.000000e+00> : vector<16x16xf32>
    %58 = tpu.matmul %45, %57, %cst_46 {dimension_numbers = #tpu.dot_dimension_numbers<[1], [0], [0], [1], [0, 0, 1, 1], [], []>} : vector<16x32xf32>, vector<32x16xf32>, vector<16x16xf32> -> vector<16x16xf32>
    %c0_47 = arith.constant 0 : index
    %c0_48 = arith.constant 0 : index
    %c0_49 = arith.constant 0 : index
    %59 = vector.load %arg22[%c0_47, %c0_48, %c0_49] : memref<1x32x16xf32, #tpu.memory_space<vmem>>, vector<1x32x16xf32>
    %60 = vector.shape_cast %59 : vector<1x32x16xf32> to vector<32x16xf32>
    %cst_50 = arith.constant dense<0.000000e+00> : vector<16x16xf32>
    %61 = tpu.matmul %48, %60, %cst_50 {dimension_numbers = #tpu.dot_dimension_numbers<[1], [0], [0], [1], [0, 0, 1, 1], [], []>} : vector<16x32xf32>, vector<32x16xf32>, vector<16x16xf32> -> vector<16x16xf32>
    %62 = arith.addf %58, %61 : vector<16x16xf32>
    %c0_51 = arith.constant 0 : index
    %c0_52 = arith.constant 0 : index
    %c0_53 = arith.constant 0 : index
    %63 = vector.load %arg23[%c0_51, %c0_52, %c0_53] : memref<1x64x16xf32, #tpu.memory_space<vmem>>, vector<1x64x16xf32>
    %64 = vector.shape_cast %63 : vector<1x64x16xf32> to vector<64x16xf32>
    %cst_54 = arith.constant dense<0.000000e+00> : vector<16x16xf32>
    %65 = tpu.matmul %32, %64, %cst_54 {dimension_numbers = #tpu.dot_dimension_numbers<[1], [0], [0], [1], [0, 0, 1, 1], [], []>} : vector<16x64xf32>, vector<64x16xf32>, vector<16x16xf32> -> vector<16x16xf32>
    %c0_55 = arith.constant 0 : index
    %c0_56 = arith.constant 0 : index
    %c0_57 = arith.constant 0 : index
    %66 = vector.load %arg24[%c0_55, %c0_56, %c0_57] : memref<1x1x32xf32, #tpu.memory_space<vmem>>, vector<1x1x32xf32>
    %67 = vector.shape_cast %66 : vector<1x1x32xf32> to vector<1x32xf32>
    %c0_58 = arith.constant 0 : index
    %c0_59 = arith.constant 0 : index
    %c0_60 = arith.constant 0 : index
    %68 = vector.load %arg25[%c0_58, %c0_59, %c0_60] : memref<1x1x16xf32, #tpu.memory_space<vmem>>, vector<1x1x16xf32>
    %69 = vector.shape_cast %68 : vector<1x1x16xf32> to vector<1x16xf32>
    %70 = arith.mulf %55, %55 : vector<16x32xf32>
    %c0_61 = arith.constant 0 : index
    %c0_62 = arith.constant 0 : index
    %71 = vector.load %arg8[%c0_61, %c0_62] : memref<32x32xf32, #tpu.memory_space<vmem>>, vector<32x32xf32>
    %cst_63 = arith.constant dense<0.000000e+00> : vector<16x32xf32>
    %72 = tpu.matmul %70, %71, %cst_63 {dimension_numbers = #tpu.dot_dimension_numbers<[1], [0], [0], [1], [0, 0, 1, 1], [], []>} : vector<16x32xf32>, vector<32x32xf32>, vector<16x32xf32> -> vector<16x32xf32>
    %cst_64 = arith.constant 9.99999974E-6 : f32
    %73 = vector.broadcast %cst_64 : f32 to vector<16x32xf32>
    %74 = arith.addf %72, %73 : vector<16x32xf32>
    %75 = math.rsqrt %74 : vector<16x32xf32>
    %76 = arith.mulf %55, %75 : vector<16x32xf32>
    %77 = vector.broadcast %67 : vector<1x32xf32> to vector<16x32xf32>
    %78 = arith.mulf %76, %77 : vector<16x32xf32>
    %79 = arith.mulf %62, %62 : vector<16x16xf32>
    %c0_65 = arith.constant 0 : index
    %c0_66 = arith.constant 0 : index
    %80 = vector.load %arg9[%c0_65, %c0_66] : memref<16x16xf32, #tpu.memory_space<vmem>>, vector<16x16xf32>
    %cst_67 = arith.constant dense<0.000000e+00> : vector<16x16xf32>
    %81 = tpu.matmul %79, %80, %cst_67 {dimension_numbers = #tpu.dot_dimension_numbers<[1], [0], [0], [1], [0, 0, 1, 1], [], []>} : vector<16x16xf32>, vector<16x16xf32>, vector<16x16xf32> -> vector<16x16xf32>
    %cst_68 = arith.constant 9.99999974E-6 : f32
    %82 = vector.broadcast %cst_68 : f32 to vector<16x16xf32>
    %83 = arith.addf %81, %82 : vector<16x16xf32>
    %84 = math.rsqrt %83 : vector<16x16xf32>
    %85 = arith.mulf %62, %84 : vector<16x16xf32>
    %86 = vector.broadcast %69 : vector<1x16xf32> to vector<16x16xf32>
    %87 = arith.mulf %85, %86 : vector<16x16xf32>
    %88 = arith.mulf %65, %65 : vector<16x16xf32>
    %c0_69 = arith.constant 0 : index
    %c0_70 = arith.constant 0 : index
    %89 = vector.load %arg9[%c0_69, %c0_70] : memref<16x16xf32, #tpu.memory_space<vmem>>, vector<16x16xf32>
    %cst_71 = arith.constant dense<0.000000e+00> : vector<16x16xf32>
    %90 = tpu.matmul %88, %89, %cst_71 {dimension_numbers = #tpu.dot_dimension_numbers<[1], [0], [0], [1], [0, 0, 1, 1], [], []>} : vector<16x16xf32>, vector<16x16xf32>, vector<16x16xf32> -> vector<16x16xf32>
    %cst_72 = arith.constant 9.99999974E-6 : f32
    %91 = vector.broadcast %cst_72 : f32 to vector<16x16xf32>
    %92 = arith.addf %90, %91 : vector<16x16xf32>
    %93 = math.rsqrt %92 : vector<16x16xf32>
    %94 = arith.mulf %65, %93 : vector<16x16xf32>
    %95 = vector.broadcast %69 : vector<1x16xf32> to vector<16x16xf32>
    %96 = arith.mulf %94, %95 : vector<16x16xf32>
    %cst_73 = arith.constant 0.000000e+00 : f32
    %97 = vector.broadcast %cst_73 : f32 to vector<16x32xf32>
    %98 = arith.cmpf ogt, %78, %97 : vector<16x32xf32>
    %cst_74 = arith.constant 1.000000e+00 : f32
    %99 = vector.broadcast %cst_74 : f32 to vector<16x32xf32>
    %100 = arith.addf %78, %99 : vector<16x32xf32>
    %101 = math.exp %78 : vector<16x32xf32>
    %102 = arith.select %98, %100, %101 : vector<16x32xi1>, vector<16x32xf32>
    %cst_75 = arith.constant 0.000000e+00 : f32
    %103 = vector.broadcast %cst_75 : f32 to vector<16x16xf32>
    %104 = arith.cmpf ogt, %87, %103 : vector<16x16xf32>
    %cst_76 = arith.constant 1.000000e+00 : f32
    %105 = vector.broadcast %cst_76 : f32 to vector<16x16xf32>
    %106 = arith.addf %87, %105 : vector<16x16xf32>
    %107 = math.exp %87 : vector<16x16xf32>
    %108 = arith.select %104, %106, %107 : vector<16x16xi1>, vector<16x16xf32>
    %c0_77 = arith.constant 0 : index
    %c0_78 = arith.constant 0 : index
    %109 = vector.load %arg6[%c0_77, %c0_78] : memref<16x32xf32, #tpu.memory_space<vmem>>, vector<16x32xf32>
    %cst_79 = arith.constant dense<0.000000e+00> : vector<16x32xf32>
    %110 = tpu.matmul %108, %109, %cst_79 {dimension_numbers = #tpu.dot_dimension_numbers<[1], [0], [0], [1], [0, 0, 1, 1], [], []>} : vector<16x16xf32>, vector<16x32xf32>, vector<16x32xf32> -> vector<16x32xf32>
    %c0_80 = arith.constant 0 : index
    %c0_81 = arith.constant 0 : index
    %111 = vector.load %arg6[%c0_80, %c0_81] : memref<16x32xf32, #tpu.memory_space<vmem>>, vector<16x32xf32>
    %cst_82 = arith.constant dense<0.000000e+00> : vector<16x32xf32>
    %112 = tpu.matmul %96, %111, %cst_82 {dimension_numbers = #tpu.dot_dimension_numbers<[1], [0], [0], [1], [0, 0, 1, 1], [], []>} : vector<16x16xf32>, vector<16x32xf32>, vector<16x32xf32> -> vector<16x32xf32>
    %c0_83 = arith.constant 0 : index
    %c0_84 = arith.constant 0 : index
    %113 = vector.load %arg7[%c0_83, %c0_84] : memref<32x32xf32, #tpu.memory_space<vmem>>, vector<32x32xf32>
    %114 = vector.extract_strided_slice %110 {offsets = [0, 0], sizes = [8, 32], strides = [1, 1]} : vector<16x32xf32> to vector<8x32xf32>
    %115 = vector.extract_strided_slice %112 {offsets = [0, 0], sizes = [8, 32], strides = [1, 1]} : vector<16x32xf32> to vector<8x32xf32>
    %cst_85 = arith.constant dense<0.000000e+00> : vector<32x32xf32>
    %116 = tpu.matmul %114, %115, %cst_85 {dimension_numbers = #tpu.dot_dimension_numbers<[0], [0], [1], [1], [0, 1, 1, 1], [], []>} : vector<8x32xf32>, vector<8x32xf32>, vector<32x32xf32> -> vector<32x32xf32>
    %117 = arith.mulf %116, %113 : vector<32x32xf32>
    %118 = vector.extract_strided_slice %102 {offsets = [0, 0], sizes = [8, 32], strides = [1, 1]} : vector<16x32xf32> to vector<8x32xf32>
    %cst_86 = arith.constant dense<0.000000e+00> : vector<8x32xf32>
    %119 = tpu.matmul %118, %117, %cst_86 {dimension_numbers = #tpu.dot_dimension_numbers<[1], [0], [0], [1], [0, 0, 1, 1], [], []>} : vector<8x32xf32>, vector<32x32xf32>, vector<8x32xf32> -> vector<8x32xf32>
    %120 = vector.extract_strided_slice %110 {offsets = [8, 0], sizes = [8, 32], strides = [1, 1]} : vector<16x32xf32> to vector<8x32xf32>
    %121 = vector.extract_strided_slice %112 {offsets = [8, 0], sizes = [8, 32], strides = [1, 1]} : vector<16x32xf32> to vector<8x32xf32>
    %cst_87 = arith.constant dense<0.000000e+00> : vector<32x32xf32>
    %122 = tpu.matmul %120, %121, %cst_87 {dimension_numbers = #tpu.dot_dimension_numbers<[0], [0], [1], [1], [0, 1, 1, 1], [], []>} : vector<8x32xf32>, vector<8x32xf32>, vector<32x32xf32> -> vector<32x32xf32>
    %123 = arith.mulf %122, %113 : vector<32x32xf32>
    %124 = vector.extract_strided_slice %102 {offsets = [8, 0], sizes = [8, 32], strides = [1, 1]} : vector<16x32xf32> to vector<8x32xf32>
    %cst_88 = arith.constant dense<0.000000e+00> : vector<8x32xf32>
    %125 = tpu.matmul %124, %123, %cst_88 {dimension_numbers = #tpu.dot_dimension_numbers<[1], [0], [0], [1], [0, 0, 1, 1], [], []>} : vector<8x32xf32>, vector<32x32xf32>, vector<8x32xf32> -> vector<8x32xf32>
    %126 = tpu.concatenate %119, %125 in 0 : vector<8x32xf32>, vector<8x32xf32> -> vector<16x32xf32>
    %cst_89 = arith.constant 1.250000e-01 : f32
    %127 = vector.broadcast %cst_89 : f32 to vector<16x32xf32>
    %128 = arith.mulf %126, %127 : vector<16x32xf32>
    %c0_90 = arith.constant 0 : index
    %c0_91 = arith.constant 0 : index
    %c0_92 = arith.constant 0 : index
    %129 = vector.load %arg26[%c0_90, %c0_91, %c0_92] : memref<1x32x128xf32, #tpu.memory_space<vmem>>, vector<1x32x128xf32>
    %130 = vector.shape_cast %129 : vector<1x32x128xf32> to vector<32x128xf32>
    %cst_93 = arith.constant dense<0.000000e+00> : vector<16x128xf32>
    %131 = tpu.matmul %128, %130, %cst_93 {dimension_numbers = #tpu.dot_dimension_numbers<[1], [0], [0], [1], [0, 0, 1, 1], [], []>} : vector<16x32xf32>, vector<32x128xf32>, vector<16x128xf32> -> vector<16x128xf32>
    %132 = arith.addf %3, %131 : vector<16x128xf32>
    %133 = arith.mulf %132, %132 : vector<16x128xf32>
    %cst_94 = arith.constant dense<0.000000e+00> : vector<16xf32>
    %134 = vector.multi_reduction <add>, %133, %cst_94 [1] : vector<16x128xf32> to vector<16xf32>
    %135 = vector.shape_cast %134 : vector<16xf32> to vector<16x1xf32>
    %cst_95 = arith.constant 1.280000e+02 : f32
    %136 = vector.broadcast %cst_95 : f32 to vector<16x1xf32>
    %137 = arith.divf %135, %136 : vector<16x1xf32>
    %cst_96 = arith.constant 9.99999974E-6 : f32
    %138 = vector.broadcast %cst_96 : f32 to vector<16x1xf32>
    %139 = arith.addf %137, %138 : vector<16x1xf32>
    %140 = math.rsqrt %139 : vector<16x1xf32>
    %141 = vector.broadcast %140 : vector<16x1xf32> to vector<16x128xf32>
    %142 = arith.mulf %132, %141 : vector<16x128xf32>
    %c0_97 = arith.constant 0 : index
    %c0_98 = arith.constant 0 : index
    %c0_99 = arith.constant 0 : index
    %143 = vector.load %arg27[%c0_97, %c0_98, %c0_99] : memref<1x1x128xf32, #tpu.memory_space<vmem>>, vector<1x1x128xf32>
    %144 = vector.shape_cast %143 : vector<1x1x128xf32> to vector<1x128xf32>
    %145 = vector.broadcast %144 : vector<1x128xf32> to vector<16x128xf32>
    %146 = arith.mulf %142, %145 : vector<16x128xf32>
    %c0_100 = arith.constant 0 : index
    %c0_101 = arith.constant 0 : index
    %c0_102 = arith.constant 0 : index
    %147 = vector.load %arg28[%c0_100, %c0_101, %c0_102] : memref<1x128x4xf32, #tpu.memory_space<vmem>>, vector<1x128x4xf32>
    %148 = vector.shape_cast %147 : vector<1x128x4xf32> to vector<128x4xf32>
    %cst_103 = arith.constant dense<0.000000e+00> : vector<16x4xf32>
    %149 = tpu.matmul %146, %148, %cst_103 {dimension_numbers = #tpu.dot_dimension_numbers<[1], [0], [0], [1], [0, 0, 1, 1], [], []>} : vector<16x128xf32>, vector<128x4xf32>, vector<16x4xf32> -> vector<16x4xf32>
    %cst_104 = arith.constant dense<0xFF800000> : vector<16xf32>
    %150 = vector.multi_reduction <maximumf>, %149, %cst_104 [1] : vector<16x4xf32> to vector<16xf32>
    %151 = vector.shape_cast %150 : vector<16xf32> to vector<16x1xf32>
    %152 = vector.broadcast %151 : vector<16x1xf32> to vector<16x4xf32>
    %153 = arith.cmpf oge, %149, %152 : vector<16x4xf32>
    %cst_105 = arith.constant -1.000000e+30 : f32
    %154 = vector.broadcast %cst_105 : f32 to vector<16x4xf32>
    %155 = arith.select %153, %154, %149 : vector<16x4xi1>, vector<16x4xf32>
    %cst_106 = arith.constant dense<0xFF800000> : vector<16xf32>
    %156 = vector.multi_reduction <maximumf>, %155, %cst_106 [1] : vector<16x4xf32> to vector<16xf32>
    %157 = vector.shape_cast %156 : vector<16xf32> to vector<16x1xf32>
    %158 = vector.broadcast %157 : vector<16x1xf32> to vector<16x4xf32>
    %159 = arith.cmpf oge, %149, %158 : vector<16x4xf32>
    %160 = arith.extui %159 : vector<16x4xi1> to vector<16x4xi32>
    %161 = arith.sitofp %160 : vector<16x4xi32> to vector<16x4xf32>
    %cst_107 = arith.constant 0.000000e+00 : f32
    %162 = vector.broadcast %cst_107 : f32 to vector<16x128xf32>
    %c0_108 = arith.constant 0 : index
    %c0_109 = arith.constant 0 : index
    %c0_110 = arith.constant 0 : index
    %163 = vector.load %arg29[%c0_108, %c0_109, %c0_110] : memref<1x128x1024xf32, #tpu.memory_space<vmem>>, vector<1x128x256xf32>
    %164 = vector.shape_cast %163 : vector<1x128x256xf32> to vector<128x256xf32>
    %cst_111 = arith.constant dense<0.000000e+00> : vector<16x256xf32>
    %165 = tpu.matmul %146, %164, %cst_111 {dimension_numbers = #tpu.dot_dimension_numbers<[1], [0], [0], [1], [0, 0, 1, 1], [], []>} : vector<16x128xf32>, vector<128x256xf32>, vector<16x256xf32> -> vector<16x256xf32>
    %c0_112 = arith.constant 0 : index
    %c0_113 = arith.constant 0 : index
    %c0_114 = arith.constant 0 : index
    %166 = vector.load %arg30[%c0_112, %c0_113, %c0_114] : memref<1x128x1024xf32, #tpu.memory_space<vmem>>, vector<1x128x256xf32>
    %167 = vector.shape_cast %166 : vector<1x128x256xf32> to vector<128x256xf32>
    %cst_115 = arith.constant dense<0.000000e+00> : vector<16x256xf32>
    %168 = tpu.matmul %146, %167, %cst_115 {dimension_numbers = #tpu.dot_dimension_numbers<[1], [0], [0], [1], [0, 0, 1, 1], [], []>} : vector<16x128xf32>, vector<128x256xf32>, vector<16x256xf32> -> vector<16x256xf32>
    %c0_116 = arith.constant 0 : index
    %c0_117 = arith.constant 0 : index
    %169 = vector.load %arg10[%c0_116, %c0_117] : memref<4x1024xf32, #tpu.memory_space<vmem>>, vector<4x256xf32>
    %cst_118 = arith.constant dense<0.000000e+00> : vector<16x256xf32>
    %170 = tpu.matmul %161, %169, %cst_118 {dimension_numbers = #tpu.dot_dimension_numbers<[1], [0], [0], [1], [0, 0, 1, 1], [], []>} : vector<16x4xf32>, vector<4x256xf32>, vector<16x256xf32> -> vector<16x256xf32>
    %171 = arith.mulf %165, %170 : vector<16x256xf32>
    %172 = arith.negf %171 : vector<16x256xf32>
    %173 = math.exp %172 : vector<16x256xf32>
    %cst_119 = arith.constant 1.000000e+00 : f32
    %174 = vector.broadcast %cst_119 : f32 to vector<16x256xf32>
    %175 = arith.addf %174, %173 : vector<16x256xf32>
    %176 = arith.divf %174, %175 : vector<16x256xf32>
    %177 = arith.mulf %171, %176 : vector<16x256xf32>
    %178 = arith.mulf %177, %168 : vector<16x256xf32>
    %c0_120 = arith.constant 0 : index
    %c0_121 = arith.constant 0 : index
    %c0_122 = arith.constant 0 : index
    %179 = vector.load %arg31[%c0_120, %c0_121, %c0_122] : memref<1x1024x128xf32, #tpu.memory_space<vmem>>, vector<1x256x128xf32>
    %180 = vector.shape_cast %179 : vector<1x256x128xf32> to vector<256x128xf32>
    %cst_123 = arith.constant dense<0.000000e+00> : vector<16x128xf32>
    %181 = tpu.matmul %178, %180, %cst_123 {dimension_numbers = #tpu.dot_dimension_numbers<[1], [0], [0], [1], [0, 0, 1, 1], [], []>} : vector<16x256xf32>, vector<256x128xf32>, vector<16x128xf32> -> vector<16x128xf32>
    %182 = arith.addf %162, %181 : vector<16x128xf32>
    %c0_124 = arith.constant 0 : index
    %c0_125 = arith.constant 0 : index
    %c256 = arith.constant 256 : index
    %183 = vector.load %arg29[%c0_124, %c0_125, %c256] : memref<1x128x1024xf32, #tpu.memory_space<vmem>>, vector<1x128x256xf32>
    %184 = vector.shape_cast %183 : vector<1x128x256xf32> to vector<128x256xf32>
    %cst_126 = arith.constant dense<0.000000e+00> : vector<16x256xf32>
    %185 = tpu.matmul %146, %184, %cst_126 {dimension_numbers = #tpu.dot_dimension_numbers<[1], [0], [0], [1], [0, 0, 1, 1], [], []>} : vector<16x128xf32>, vector<128x256xf32>, vector<16x256xf32> -> vector<16x256xf32>
    %c0_127 = arith.constant 0 : index
    %c0_128 = arith.constant 0 : index
    %c256_129 = arith.constant 256 : index
    %186 = vector.load %arg30[%c0_127, %c0_128, %c256_129] : memref<1x128x1024xf32, #tpu.memory_space<vmem>>, vector<1x128x256xf32>
    %187 = vector.shape_cast %186 : vector<1x128x256xf32> to vector<128x256xf32>
    %cst_130 = arith.constant dense<0.000000e+00> : vector<16x256xf32>
    %188 = tpu.matmul %146, %187, %cst_130 {dimension_numbers = #tpu.dot_dimension_numbers<[1], [0], [0], [1], [0, 0, 1, 1], [], []>} : vector<16x128xf32>, vector<128x256xf32>, vector<16x256xf32> -> vector<16x256xf32>
    %c0_131 = arith.constant 0 : index
    %c256_132 = arith.constant 256 : index
    %189 = vector.load %arg10[%c0_131, %c256_132] : memref<4x1024xf32, #tpu.memory_space<vmem>>, vector<4x256xf32>
    %cst_133 = arith.constant dense<0.000000e+00> : vector<16x256xf32>
    %190 = tpu.matmul %161, %189, %cst_133 {dimension_numbers = #tpu.dot_dimension_numbers<[1], [0], [0], [1], [0, 0, 1, 1], [], []>} : vector<16x4xf32>, vector<4x256xf32>, vector<16x256xf32> -> vector<16x256xf32>
    %191 = arith.mulf %185, %190 : vector<16x256xf32>
    %192 = arith.negf %191 : vector<16x256xf32>
    %193 = math.exp %192 : vector<16x256xf32>
    %cst_134 = arith.constant 1.000000e+00 : f32
    %194 = vector.broadcast %cst_134 : f32 to vector<16x256xf32>
    %195 = arith.addf %194, %193 : vector<16x256xf32>
    %196 = arith.divf %194, %195 : vector<16x256xf32>
    %197 = arith.mulf %191, %196 : vector<16x256xf32>
    %198 = arith.mulf %197, %188 : vector<16x256xf32>
    %c0_135 = arith.constant 0 : index
    %c256_136 = arith.constant 256 : index
    %c0_137 = arith.constant 0 : index
    %199 = vector.load %arg31[%c0_135, %c256_136, %c0_137] : memref<1x1024x128xf32, #tpu.memory_space<vmem>>, vector<1x256x128xf32>
    %200 = vector.shape_cast %199 : vector<1x256x128xf32> to vector<256x128xf32>
    %cst_138 = arith.constant dense<0.000000e+00> : vector<16x128xf32>
    %201 = tpu.matmul %198, %200, %cst_138 {dimension_numbers = #tpu.dot_dimension_numbers<[1], [0], [0], [1], [0, 0, 1, 1], [], []>} : vector<16x256xf32>, vector<256x128xf32>, vector<16x128xf32> -> vector<16x128xf32>
    %202 = arith.addf %182, %201 : vector<16x128xf32>
    %c0_139 = arith.constant 0 : index
    %c0_140 = arith.constant 0 : index
    %c512 = arith.constant 512 : index
    %203 = vector.load %arg29[%c0_139, %c0_140, %c512] : memref<1x128x1024xf32, #tpu.memory_space<vmem>>, vector<1x128x256xf32>
    %204 = vector.shape_cast %203 : vector<1x128x256xf32> to vector<128x256xf32>
    %cst_141 = arith.constant dense<0.000000e+00> : vector<16x256xf32>
    %205 = tpu.matmul %146, %204, %cst_141 {dimension_numbers = #tpu.dot_dimension_numbers<[1], [0], [0], [1], [0, 0, 1, 1], [], []>} : vector<16x128xf32>, vector<128x256xf32>, vector<16x256xf32> -> vector<16x256xf32>
    %c0_142 = arith.constant 0 : index
    %c0_143 = arith.constant 0 : index
    %c512_144 = arith.constant 512 : index
    %206 = vector.load %arg30[%c0_142, %c0_143, %c512_144] : memref<1x128x1024xf32, #tpu.memory_space<vmem>>, vector<1x128x256xf32>
    %207 = vector.shape_cast %206 : vector<1x128x256xf32> to vector<128x256xf32>
    %cst_145 = arith.constant dense<0.000000e+00> : vector<16x256xf32>
    %208 = tpu.matmul %146, %207, %cst_145 {dimension_numbers = #tpu.dot_dimension_numbers<[1], [0], [0], [1], [0, 0, 1, 1], [], []>} : vector<16x128xf32>, vector<128x256xf32>, vector<16x256xf32> -> vector<16x256xf32>
    %c0_146 = arith.constant 0 : index
    %c512_147 = arith.constant 512 : index
    %209 = vector.load %arg10[%c0_146, %c512_147] : memref<4x1024xf32, #tpu.memory_space<vmem>>, vector<4x256xf32>
    %cst_148 = arith.constant dense<0.000000e+00> : vector<16x256xf32>
    %210 = tpu.matmul %161, %209, %cst_148 {dimension_numbers = #tpu.dot_dimension_numbers<[1], [0], [0], [1], [0, 0, 1, 1], [], []>} : vector<16x4xf32>, vector<4x256xf32>, vector<16x256xf32> -> vector<16x256xf32>
    %211 = arith.mulf %205, %210 : vector<16x256xf32>
    %212 = arith.negf %211 : vector<16x256xf32>
    %213 = math.exp %212 : vector<16x256xf32>
    %cst_149 = arith.constant 1.000000e+00 : f32
    %214 = vector.broadcast %cst_149 : f32 to vector<16x256xf32>
    %215 = arith.addf %214, %213 : vector<16x256xf32>
    %216 = arith.divf %214, %215 : vector<16x256xf32>
    %217 = arith.mulf %211, %216 : vector<16x256xf32>
    %218 = arith.mulf %217, %208 : vector<16x256xf32>
    %c0_150 = arith.constant 0 : index
    %c512_151 = arith.constant 512 : index
    %c0_152 = arith.constant 0 : index
    %219 = vector.load %arg31[%c0_150, %c512_151, %c0_152] : memref<1x1024x128xf32, #tpu.memory_space<vmem>>, vector<1x256x128xf32>
    %220 = vector.shape_cast %219 : vector<1x256x128xf32> to vector<256x128xf32>
    %cst_153 = arith.constant dense<0.000000e+00> : vector<16x128xf32>
    %221 = tpu.matmul %218, %220, %cst_153 {dimension_numbers = #tpu.dot_dimension_numbers<[1], [0], [0], [1], [0, 0, 1, 1], [], []>} : vector<16x256xf32>, vector<256x128xf32>, vector<16x128xf32> -> vector<16x128xf32>
    %222 = arith.addf %202, %221 : vector<16x128xf32>
    %c0_154 = arith.constant 0 : index
    %c0_155 = arith.constant 0 : index
    %c768 = arith.constant 768 : index
    %223 = vector.load %arg29[%c0_154, %c0_155, %c768] : memref<1x128x1024xf32, #tpu.memory_space<vmem>>, vector<1x128x256xf32>
    %224 = vector.shape_cast %223 : vector<1x128x256xf32> to vector<128x256xf32>
    %cst_156 = arith.constant dense<0.000000e+00> : vector<16x256xf32>
    %225 = tpu.matmul %146, %224, %cst_156 {dimension_numbers = #tpu.dot_dimension_numbers<[1], [0], [0], [1], [0, 0, 1, 1], [], []>} : vector<16x128xf32>, vector<128x256xf32>, vector<16x256xf32> -> vector<16x256xf32>
    %c0_157 = arith.constant 0 : index
    %c0_158 = arith.constant 0 : index
    %c768_159 = arith.constant 768 : index
    %226 = vector.load %arg30[%c0_157, %c0_158, %c768_159] : memref<1x128x1024xf32, #tpu.memory_space<vmem>>, vector<1x128x256xf32>
    %227 = vector.shape_cast %226 : vector<1x128x256xf32> to vector<128x256xf32>
    %cst_160 = arith.constant dense<0.000000e+00> : vector<16x256xf32>
    %228 = tpu.matmul %146, %227, %cst_160 {dimension_numbers = #tpu.dot_dimension_numbers<[1], [0], [0], [1], [0, 0, 1, 1], [], []>} : vector<16x128xf32>, vector<128x256xf32>, vector<16x256xf32> -> vector<16x256xf32>
    %c0_161 = arith.constant 0 : index
    %c768_162 = arith.constant 768 : index
    %229 = vector.load %arg10[%c0_161, %c768_162] : memref<4x1024xf32, #tpu.memory_space<vmem>>, vector<4x256xf32>
    %cst_163 = arith.constant dense<0.000000e+00> : vector<16x256xf32>
    %230 = tpu.matmul %161, %229, %cst_163 {dimension_numbers = #tpu.dot_dimension_numbers<[1], [0], [0], [1], [0, 0, 1, 1], [], []>} : vector<16x4xf32>, vector<4x256xf32>, vector<16x256xf32> -> vector<16x256xf32>
    %231 = arith.mulf %225, %230 : vector<16x256xf32>
    %232 = arith.negf %231 : vector<16x256xf32>
    %233 = math.exp %232 : vector<16x256xf32>
    %cst_164 = arith.constant 1.000000e+00 : f32
    %234 = vector.broadcast %cst_164 : f32 to vector<16x256xf32>
    %235 = arith.addf %234, %233 : vector<16x256xf32>
    %236 = arith.divf %234, %235 : vector<16x256xf32>
    %237 = arith.mulf %231, %236 : vector<16x256xf32>
    %238 = arith.mulf %237, %228 : vector<16x256xf32>
    %c0_165 = arith.constant 0 : index
    %c768_166 = arith.constant 768 : index
    %c0_167 = arith.constant 0 : index
    %239 = vector.load %arg31[%c0_165, %c768_166, %c0_167] : memref<1x1024x128xf32, #tpu.memory_space<vmem>>, vector<1x256x128xf32>
    %240 = vector.shape_cast %239 : vector<1x256x128xf32> to vector<256x128xf32>
    %cst_168 = arith.constant dense<0.000000e+00> : vector<16x128xf32>
    %241 = tpu.matmul %238, %240, %cst_168 {dimension_numbers = #tpu.dot_dimension_numbers<[1], [0], [0], [1], [0, 0, 1, 1], [], []>} : vector<16x256xf32>, vector<256x128xf32>, vector<16x128xf32> -> vector<16x128xf32>
    %242 = arith.addf %222, %241 : vector<16x128xf32>
    %243 = arith.addf %132, %242 : vector<16x128xf32>
    %c0_169 = arith.constant 0 : index
    %c0_170 = arith.constant 0 : index
    %244 = vector.load %arg33[%c0_169, %c0_170] : memref<16x128xf32, #tpu.memory_space<vmem>>, vector<16x128xf32>
    tpu.vector_store %arg33[%c0_169, %c0_170], %243 {strides = array<i32>} : memref<16x128xf32, #tpu.memory_space<vmem>>, vector<16x128xf32>,
    %c1_i32 = arith.constant 1 : i32
    %245 = arith.cmpi eq, %arg0, %c1_i32 : i32
    %246 = arith.extui %245 : i1 to i32
    %c0_i32_171 = arith.constant 0 : i32
    %247 = arith.cmpi ne, %246, %c0_i32_171 : i32
    scf.if %247 {
      %248 = arith.mulf %243, %243 : vector<16x128xf32>
      %cst_172 = arith.constant dense<0.000000e+00> : vector<16xf32>
      %249 = vector.multi_reduction <add>, %248, %cst_172 [1] : vector<16x128xf32> to vector<16xf32>
      %250 = vector.shape_cast %249 : vector<16xf32> to vector<16x1xf32>
      %cst_173 = arith.constant 1.280000e+02 : f32
      %251 = vector.broadcast %cst_173 : f32 to vector<16x1xf32>
      %252 = arith.divf %250, %251 : vector<16x1xf32>
      %cst_174 = arith.constant 9.99999974E-6 : f32
      %253 = vector.broadcast %cst_174 : f32 to vector<16x1xf32>
      %254 = arith.addf %252, %253 : vector<16x1xf32>
      %255 = math.rsqrt %254 : vector<16x1xf32>
      %256 = vector.broadcast %255 : vector<16x1xf32> to vector<16x128xf32>
      %257 = arith.mulf %243, %256 : vector<16x128xf32>
      %c0_175 = arith.constant 0 : index
      %c0_176 = arith.constant 0 : index
      %258 = vector.load %arg11[%c0_175, %c0_176] : memref<1x128xf32, #tpu.memory_space<vmem>>, vector<1x128xf32>
      %259 = vector.broadcast %258 : vector<1x128xf32> to vector<16x128xf32>
      %260 = arith.mulf %257, %259 : vector<16x128xf32>
      %c0_177 = arith.constant 0 : index
      %c0_178 = arith.constant 0 : index
      %261 = vector.load %arg12[%c0_177, %c0_178] : memref<128x512xf32, #tpu.memory_space<vmem>>, vector<128x512xf32>
      %cst_179 = arith.constant dense<0.000000e+00> : vector<16x512xf32>
      %262 = tpu.matmul %260, %261, %cst_179 {dimension_numbers = #tpu.dot_dimension_numbers<[1], [0], [0], [1], [0, 0, 1, 1], [], []>} : vector<16x128xf32>, vector<128x512xf32>, vector<16x512xf32> -> vector<16x512xf32>
      %c0_180 = arith.constant 0 : index
      %c0_181 = arith.constant 0 : index
      %263 = vector.load %arg32[%c0_180, %c0_181] : memref<16x512xf32, #tpu.memory_space<vmem>>, vector<16x512xf32>
      tpu.vector_store %arg32[%c0_180, %c0_181], %262 {strides = array<i32>} : memref<16x512xf32, #tpu.memory_space<vmem>>, vector<16x512xf32>,
    } else {
    }
    return
  }
  func.func @transform_0(%arg0: i32) -> (i32, i32) {
    %c0_i32 = arith.constant 0 : i32
    %c0_i32_0 = arith.constant 0 : i32
    %c0_i32_1 = arith.constant 0 : i32
    return %c0_i32, %c0_i32_0 : i32, i32
  }
  func.func @transform_1(%arg0: i32) -> (i32, i32) {
    %c0_i32 = arith.constant 0 : i32
    %c0_i32_0 = arith.constant 0 : i32
    %c0_i32_1 = arith.constant 0 : i32
    return %c0_i32, %c0_i32_0 : i32, i32
  }
  func.func @transform_2(%arg0: i32) -> (i32, i32) {
    %c0_i32 = arith.constant 0 : i32
    %c0_i32_0 = arith.constant 0 : i32
    %c0_i32_1 = arith.constant 0 : i32
    return %c0_i32, %c0_i32_0 : i32, i32
  }
  func.func @transform_3(%arg0: i32) -> (i32, i32) {
    %c0_i32 = arith.constant 0 : i32
    %c0_i32_0 = arith.constant 0 : i32
    %c0_i32_1 = arith.constant 0 : i32
    return %c0_i32, %c0_i32_0 : i32, i32
  }
  func.func @transform_4(%arg0: i32) -> (i32, i32) {
    %c0_i32 = arith.constant 0 : i32
    %c0_i32_0 = arith.constant 0 : i32
    %c0_i32_1 = arith.constant 0 : i32
    return %c0_i32, %c0_i32_0 : i32, i32
  }
  func.func @transform_5(%arg0: i32) -> (i32, i32) {
    %c0_i32 = arith.constant 0 : i32
    %c0_i32_0 = arith.constant 0 : i32
    %c0_i32_1 = arith.constant 0 : i32
    return %c0_i32, %c0_i32_0 : i32, i32
  }
  func.func @transform_6(%arg0: i32) -> (i32, i32) {
    %c0_i32 = arith.constant 0 : i32
    %c0_i32_0 = arith.constant 0 : i32
    %c0_i32_1 = arith.constant 0 : i32
    return %c0_i32, %c0_i32_0 : i32, i32
  }
  func.func @transform_7(%arg0: i32) -> (i32, i32) {
    %c0_i32 = arith.constant 0 : i32
    %c0_i32_0 = arith.constant 0 : i32
    %c0_i32_1 = arith.constant 0 : i32
    return %c0_i32, %c0_i32_0 : i32, i32
  }
  func.func @transform_8(%arg0: i32) -> (i32, i32) {
    %c0_i32 = arith.constant 0 : i32
    %c0_i32_0 = arith.constant 0 : i32
    %c0_i32_1 = arith.constant 0 : i32
    return %c0_i32, %c0_i32_0 : i32, i32
  }
  func.func @transform_9(%arg0: i32) -> (i32, i32) {
    %c0_i32 = arith.constant 0 : i32
    %c0_i32_0 = arith.constant 0 : i32
    %c0_i32_1 = arith.constant 0 : i32
    return %c0_i32, %c0_i32_0 : i32, i32
  }
  func.func @transform_10(%arg0: i32) -> (i32, i32) {
    %c0_i32 = arith.constant 0 : i32
    %c0_i32_0 = arith.constant 0 : i32
    %c0_i32_1 = arith.constant 0 : i32
    return %c0_i32, %c0_i32_0 : i32, i32
  }
  func.func @transform_11(%arg0: i32) -> (i32, i32) {
    %c0_i32 = arith.constant 0 : i32
    %c0_i32_0 = arith.constant 0 : i32
    %c0_i32_1 = arith.constant 0 : i32
    return %c0_i32, %c0_i32_0 : i32, i32
  }
  func.func @transform_12(%arg0: i32) -> (i32, i32, i32) {
    %c0_i32 = arith.constant 0 : i32
    %c0_i32_0 = arith.constant 0 : i32
    %c0_i32_1 = arith.constant 0 : i32
    return %arg0, %c0_i32, %c0_i32_0 : i32, i32, i32
  }
  func.func @transform_13(%arg0: i32) -> (i32, i32, i32) {
    %c0_i32 = arith.constant 0 : i32
    %c0_i32_0 = arith.constant 0 : i32
    %c0_i32_1 = arith.constant 0 : i32
    return %arg0, %c0_i32, %c0_i32_0 : i32, i32, i32
  }
  func.func @transform_14(%arg0: i32) -> (i32, i32, i32) {
    %c0_i32 = arith.constant 0 : i32
    %c0_i32_0 = arith.constant 0 : i32
    %c0_i32_1 = arith.constant 0 : i32
    return %arg0, %c0_i32, %c0_i32_0 : i32, i32, i32
  }
  func.func @transform_15(%arg0: i32) -> (i32, i32, i32) {
    %c0_i32 = arith.constant 0 : i32
    %c0_i32_0 = arith.constant 0 : i32
    %c0_i32_1 = arith.constant 0 : i32
    return %arg0, %c0_i32, %c0_i32_0 : i32, i32, i32
  }
  func.func @transform_16(%arg0: i32) -> (i32, i32, i32) {
    %c0_i32 = arith.constant 0 : i32
    %c0_i32_0 = arith.constant 0 : i32
    %c0_i32_1 = arith.constant 0 : i32
    return %arg0, %c0_i32, %c0_i32_0 : i32, i32, i32
  }
  func.func @transform_17(%arg0: i32) -> (i32, i32, i32) {
    %c0_i32 = arith.constant 0 : i32
    %c0_i32_0 = arith.constant 0 : i32
    %c0_i32_1 = arith.constant 0 : i32
    return %arg0, %c0_i32, %c0_i32_0 : i32, i32, i32
  }
  func.func @transform_18(%arg0: i32) -> (i32, i32, i32) {
    %c0_i32 = arith.constant 0 : i32
    %c0_i32_0 = arith.constant 0 : i32
    %c0_i32_1 = arith.constant 0 : i32
    return %arg0, %c0_i32, %c0_i32_0 : i32, i32, i32
  }
  func.func @transform_19(%arg0: i32) -> (i32, i32, i32) {
    %c0_i32 = arith.constant 0 : i32
    %c0_i32_0 = arith.constant 0 : i32
    %c0_i32_1 = arith.constant 0 : i32
    return %arg0, %c0_i32, %c0_i32_0 : i32, i32, i32
  }
  func.func @transform_20(%arg0: i32) -> (i32, i32, i32) {
    %c0_i32 = arith.constant 0 : i32
    %c0_i32_0 = arith.constant 0 : i32
    %c0_i32_1 = arith.constant 0 : i32
    return %arg0, %c0_i32, %c0_i32_0 : i32, i32, i32
  }
  func.func @transform_21(%arg0: i32) -> (i32, i32, i32) {
    %c0_i32 = arith.constant 0 : i32
    %c0_i32_0 = arith.constant 0 : i32
    %c0_i32_1 = arith.constant 0 : i32
    return %arg0, %c0_i32, %c0_i32_0 : i32, i32, i32
  }
  func.func @transform_22(%arg0: i32) -> (i32, i32, i32) {
    %c0_i32 = arith.constant 0 : i32
    %c0_i32_0 = arith.constant 0 : i32
    %c0_i32_1 = arith.constant 0 : i32
    return %arg0, %c0_i32, %c0_i32_0 : i32, i32, i32
  }
  func.func @transform_23(%arg0: i32) -> (i32, i32, i32) {
    %c0_i32 = arith.constant 0 : i32
    %c0_i32_0 = arith.constant 0 : i32
    %c0_i32_1 = arith.constant 0 : i32
    return %arg0, %c0_i32, %c0_i32_0 : i32, i32, i32
  }
  func.func @transform_24(%arg0: i32) -> (i32, i32, i32) {
    %c0_i32 = arith.constant 0 : i32
    %c0_i32_0 = arith.constant 0 : i32
    %c0_i32_1 = arith.constant 0 : i32
    return %arg0, %c0_i32, %c0_i32_0 : i32, i32, i32
  }
  func.func @transform_25(%arg0: i32) -> (i32, i32, i32) {
    %c0_i32 = arith.constant 0 : i32
    %c0_i32_0 = arith.constant 0 : i32
    %c0_i32_1 = arith.constant 0 : i32
    return %arg0, %c0_i32, %c0_i32_0 : i32, i32, i32
  }
  func.func @transform_26(%arg0: i32) -> (i32, i32, i32) {
    %c0_i32 = arith.constant 0 : i32
    %c0_i32_0 = arith.constant 0 : i32
    %c0_i32_1 = arith.constant 0 : i32
    return %arg0, %c0_i32, %c0_i32_0 : i32, i32, i32
  }
  func.func @transform_27(%arg0: i32) -> (i32, i32, i32) {
    %c0_i32 = arith.constant 0 : i32
    %c0_i32_0 = arith.constant 0 : i32
    %c0_i32_1 = arith.constant 0 : i32
    return %arg0, %c0_i32, %c0_i32_0 : i32, i32, i32
  }
  func.func @transform_28(%arg0: i32) -> (i32, i32, i32) {
    %c0_i32 = arith.constant 0 : i32
    %c0_i32_0 = arith.constant 0 : i32
    %c0_i32_1 = arith.constant 0 : i32
    return %arg0, %c0_i32, %c0_i32_0 : i32, i32, i32
  }
  func.func @transform_29(%arg0: i32) -> (i32, i32, i32) {
    %c0_i32 = arith.constant 0 : i32
    %c0_i32_0 = arith.constant 0 : i32
    %c0_i32_1 = arith.constant 0 : i32
    return %arg0, %c0_i32, %c0_i32_0 : i32, i32, i32
  }
  func.func @transform_30(%arg0: i32) -> (i32, i32, i32) {
    %c0_i32 = arith.constant 0 : i32
    %c0_i32_0 = arith.constant 0 : i32
    %c0_i32_1 = arith.constant 0 : i32
    return %arg0, %c0_i32, %c0_i32_0 : i32, i32, i32
  }
  func.func @transform_31(%arg0: i32) -> (i32, i32) {
    %c0_i32 = arith.constant 0 : i32
    %c0_i32_0 = arith.constant 0 : i32
    %c0_i32_1 = arith.constant 0 : i32
    return %c0_i32, %c0_i32_0 : i32, i32
  }
}

</mosaic_0001>

<llo_original>
// kernel: tile.38
$region0: #{tile.38}
  #allocation0 [shape = 's32[1]{0}', space=sflag, size = 0x4, scoped, tag = 'scoped memory for tile.38']
  %s0 = inlined_call_operand.vmem [shape: f32[8,16], index: 0, kind: input, shape index: {}]
  %s1 = inlined_call_operand.vmem [shape: f32[2,8,2,16], index: 1, kind: output, shape index: {}]
  // Predicated region
  $region2: #{tile.38} parent=0 // pred_check
    _
  $region3: #{tile.38} parent=0 // pred_check_branch
    %3 = sbr.rel (0) target = $region5
  $region4: #{tile.38} parent=0 // pred_region
    _
  $region5: #{tile.38} parent=0 // pred_fallthru
    _
  %v4 = vld [vmem:[%s0] ss:$0 sm:$0xff]
  %5 = vst [vmem:[%s1] sm:$0x3] %v4
  %s6 = scalar_lea.vmem %s1, 16
  %7 = vst [vmem:[%s6] sm:$0x3] %v4
  %s8 = scalar_lea.vmem %s0, 1
  %v9 = vld [vmem:[%s8] ss:$0 sm:$0xff]
  %s10 = scalar_lea.vmem %s1, 2
  %11 = vst [vmem:[%s10] sm:$0x3] %v9
  %s12 = scalar_lea.vmem %s1, 18
  %13 = vst [vmem:[%s12] sm:$0x3] %v9
  %s14 = scalar_lea.vmem %s0, 2
  %v15 = vld [vmem:[%s14] ss:$0 sm:$0xff]
  %s16 = scalar_lea.vmem %s1, 4
  %17 = vst [vmem:[%s16] sm:$0x3] %v15
  %s18 = scalar_lea.vmem %s1, 20
  %19 = vst [vmem:[%s18] sm:$0x3] %v15
  %s20 = scalar_lea.vmem %s0, 3
  %v21 = vld [vmem:[%s20] ss:$0 sm:$0xff]
  %s22 = scalar_lea.vmem %s1, 6
  %23 = vst [vmem:[%s22] sm:$0x3] %v21
  %s24 = scalar_lea.vmem %s1, 22
  %25 = vst [vmem:[%s24] sm:$0x3] %v21
  %s26 = scalar_lea.vmem %s0, 4
  %v27 = vld [vmem:[%s26] ss:$0 sm:$0xff]
  %s28 = scalar_lea.vmem %s1, 8
  %29 = vst [vmem:[%s28] sm:$0x3] %v27
  %s30 = scalar_lea.vmem %s1, 24
  %31 = vst [vmem:[%s30] sm:$0x3] %v27
  %s32 = scalar_lea.vmem %s0, 5
  %v33 = vld [vmem:[%s32] ss:$0 sm:$0xff]
  %s34 = scalar_lea.vmem %s1, 10
  %35 = vst [vmem:[%s34] sm:$0x3] %v33
  %s36 = scalar_lea.vmem %s1, 26
  %37 = vst [vmem:[%s36] sm:$0x3] %v33
  %s38 = scalar_lea.vmem %s0, 6
  %v39 = vld [vmem:[%s38] ss:$0 sm:$0xff]
  %s40 = scalar_lea.vmem %s1, 12
  %41 = vst [vmem:[%s40] sm:$0x3] %v39
  %s42 = scalar_lea.vmem %s1, 28
  %43 = vst [vmem:[%s42] sm:$0x3] %v39
  %s44 = scalar_lea.vmem %s0, 7
  %v45 = vld [vmem:[%s44] ss:$0 sm:$0xff]
  %s46 = scalar_lea.vmem %s1, 14
  %47 = vst [vmem:[%s46] sm:$0x3] %v45
  %s48 = scalar_lea.vmem %s1, 30
  %49 = vst [vmem:[%s48] sm:$0x3] %v45

// kernel: tile.39
$region0: #{tile.39}
  %s0 = inlined_call_operand.vmem [shape: f32[2,8,2,16], index: 0, kind: input, shape index: {}]
  %s1 = inlined_call_operand.vmem [shape: f32[16,32], index: 1, kind: output, shape index: {}]
  $region1: #{tile.39} parent=0
    #allocation0 [shape = 'u8[65536]{0}', space=vmem, size = 0x10000, scoped, tag = 'scoped mem for input reshape']
    %s3 = ssub.s32 4, 1
    %s4 = scalar_lea.vmem %s0, 30
    %v5 = vld [vmem:[%s4] sm:%s3]
    %s6 = scalar_lea.vmem [#allocation0], 120
    %7 = vst [vmem:[%s6] sm:%s3] %v5
    %s8 = scalar_lea.vmem %s0, 28
    %v9 = vld [vmem:[%s8] sm:%s3]
    %s10 = scalar_lea.vmem [#allocation0], 112
    %11 = vst [vmem:[%s10] sm:%s3] %v9
    %s12 = scalar_lea.vmem %s0, 26
    %v13 = vld [vmem:[%s12] sm:%s3]
    %s14 = scalar_lea.vmem [#allocation0], 104
    %15 = vst [vmem:[%s14] sm:%s3] %v13
    %s16 = scalar_lea.vmem %s0, 24
    %v17 = vld [vmem:[%s16] sm:%s3]
    %s18 = scalar_lea.vmem [#allocation0], 96
    %19 = vst [vmem:[%s18] sm:%s3] %v17
    %s20 = scalar_lea.vmem %s0, 22
    %v21 = vld [vmem:[%s20] sm:%s3]
    %s22 = scalar_lea.vmem [#allocation0], 88
    %23 = vst [vmem:[%s22] sm:%s3] %v21
    %s24 = scalar_lea.vmem %s0, 20
    %v25 = vld [vmem:[%s24] sm:%s3]
    %s26 = scalar_lea.vmem [#allocation0], 80
    %27 = vst [vmem:[%s26] sm:%s3] %v25
    %s28 = scalar_lea.vmem %s0, 18
    %v29 = vld [vmem:[%s28] sm:%s3]
    %s30 = scalar_lea.vmem [#allocation0], 72
    %31 = vst [vmem:[%s30] sm:%s3] %v29
    %s32 = scalar_lea.vmem %s0, 16
    %v33 = vld [vmem:[%s32] sm:%s3]
    %s34 = scalar_lea.vmem [#allocation0], 64
    %35 = vst [vmem:[%s34] sm:%s3] %v33
    %s36 = scalar_lea.vmem %s0, 14
    %v37 = vld [vmem:[%s36] sm:%s3]
    %s38 = scalar_lea.vmem [#allocation0], 56
    %39 = vst [vmem:[%s38] sm:%s3] %v37
    %s40 = scalar_lea.vmem %s0, 12
    %v41 = vld [vmem:[%s40] sm:%s3]
    %s42 = scalar_lea.vmem [#allocation0], 48
    %43 = vst [vmem:[%s42] sm:%s3] %v41
    %s44 = scalar_lea.vmem %s0, 10
    %v45 = vld [vmem:[%s44] sm:%s3]
    %s46 = scalar_lea.vmem [#allocation0], 40
    %47 = vst [vmem:[%s46] sm:%s3] %v45
    %s48 = scalar_lea.vmem %s0, 8
    %v49 = vld [vmem:[%s48] sm:%s3]
    %s50 = scalar_lea.vmem [#allocation0], 32
    %51 = vst [vmem:[%s50] sm:%s3] %v49
    %s52 = scalar_lea.vmem %s0, 6
    %v53 = vld [vmem:[%s52] sm:%s3]
    %s54 = scalar_lea.vmem [#allocation0], 24
    %55 = vst [vmem:[%s54] sm:%s3] %v53
    %s56 = scalar_lea.vmem %s0, 4
    %v57 = vld [vmem:[%s56] sm:%s3]
    %s58 = scalar_lea.vmem [#allocation0], 16
    %59 = vst [vmem:[%s58] sm:%s3] %v57
    %s60 = scalar_lea.vmem %s0, 2
    %v61 = vld [vmem:[%s60] sm:%s3]
    %s62 = scalar_lea.vmem [#allocation0], 8
    %63 = vst [vmem:[%s62] sm:%s3] %v61
    %v64 = vld [vmem:[%s0] sm:%s3]
    %65 = vst [vmem:[#allocation0] sm:%s3] %v64
    %v66 = vld [vmem:[#allocation0] ss:$8 sm:$0xf]
    %v67 = vld [vmem:[#allocation0] ss:$8 sm:$0xf0]
    %vm68 = vcmask 1047556
    %v69 = vsel %vm68, %v67, %v66
    %vm70 = vcmask 130048
    %71 = vst.msk [vmem:[%s1] sm:$0xff] %vm70, %v69
    %s72 = scalar_lea.vmem [#allocation0], 64
    %v73 = vld [vmem:[%s72] ss:$8 sm:$0xf]
    %s74 = scalar_lea.vmem [#allocation0], 64
    %v75 = vld [vmem:[%s74] ss:$8 sm:$0xf0]
    %vm76 = vcmask 1047556
    %v77 = vsel %vm76, %v75, %v73
    %vm78 = vcmask 130048
    %s79 = scalar_lea.vmem %s1, 8
    %80 = vst.msk [vmem:[%s79] sm:$0xff] %vm78, %v77
    %s81 = scalar_lea.vmem [#allocation0], 1
    %v82 = vld [vmem:[%s81] ss:$8 sm:$0xf]
    %s83 = scalar_lea.vmem [#allocation0], 1
    %v84 = vld [vmem:[%s83] ss:$8 sm:$0xf0]
    %vm85 = vcmask 1047556
    %v86 = vsel %vm85, %v84, %v82
    %87 = vrot.lane.b32.xlu0 %v86, 16
    %v88 = vpop.permute.xlu0 %87
    %vm89 = vcmask 261248
    %90 = vst.msk [vmem:[%s1] sm:$0xff] %vm89, %v88
    %s91 = scalar_lea.vmem [#allocation0], 65
    %v92 = vld [vmem:[%s91] ss:$8 sm:$0xf]
    %s93 = scalar_lea.vmem [#allocation0], 65
    %v94 = vld [vmem:[%s93] ss:$8 sm:$0xf0]
    %vm95 = vcmask 1047556
    %v96 = vsel %vm95, %v94, %v92
    %97 = vrot.lane.b32.xlu0 %v96, 16
    %v98 = vpop.permute.xlu0 %97
    %vm99 = vcmask 261248
    %s100 = scalar_lea.vmem %s1, 8
    %101 = vst.msk [vmem:[%s100] sm:$0xff] %vm99, %v98

// kernel: tile.23
$region0: #{tile.23}
  #allocation0 [shape = 's32[1]{0}', space=sflag, size = 0x4, scoped, tag = 'scoped memory for tile.23']
  %s0 = inlined_call_operand.vmem [shape: f32[8,16], index: 0, kind: input, shape index: {}]
  %s1 = inlined_call_operand.vmem [shape: f32[2,8,4,16], index: 1, kind: output, shape index: {}]
  // Predicated region
  $region2: #{tile.23} parent=0 // pred_check
    _
  $region3: #{tile.23} parent=0 // pred_check_branch
    %3 = sbr.rel (0) target = $region5
  $region4: #{tile.23} parent=0 // pred_region
    _
  $region5: #{tile.23} parent=0 // pred_fallthru
    _
  %v4 = vld [vmem:[%s0] ss:$0 sm:$0xff]
  %5 = vst [vmem:[%s1] sm:$0xf] %v4
  %s6 = scalar_lea.vmem %s1, 32
  %7 = vst [vmem:[%s6] sm:$0xf] %v4
  %s8 = scalar_lea.vmem %s0, 1
  %v9 = vld [vmem:[%s8] ss:$0 sm:$0xff]
  %s10 = scalar_lea.vmem %s1, 4
  %11 = vst [vmem:[%s10] sm:$0xf] %v9
  %s12 = scalar_lea.vmem %s1, 36
  %13 = vst [vmem:[%s12] sm:$0xf] %v9
  %s14 = scalar_lea.vmem %s0, 2
  %v15 = vld [vmem:[%s14] ss:$0 sm:$0xff]
  %s16 = scalar_lea.vmem %s1, 8
  %17 = vst [vmem:[%s16] sm:$0xf] %v15
  %s18 = scalar_lea.vmem %s1, 40
  %19 = vst [vmem:[%s18] sm:$0xf] %v15
  %s20 = scalar_lea.vmem %s0, 3
  %v21 = vld [vmem:[%s20] ss:$0 sm:$0xff]
  %s22 = scalar_lea.vmem %s1, 12
  %23 = vst [vmem:[%s22] sm:$0xf] %v21
  %s24 = scalar_lea.vmem %s1, 44
  %25 = vst [vmem:[%s24] sm:$0xf] %v21
  %s26 = scalar_lea.vmem %s0, 4
  %v27 = vld [vmem:[%s26] ss:$0 sm:$0xff]
  %s28 = scalar_lea.vmem %s1, 16
  %29 = vst [vmem:[%s28] sm:$0xf] %v27
  %s30 = scalar_lea.vmem %s1, 48
  %31 = vst [vmem:[%s30] sm:$0xf] %v27
  %s32 = scalar_lea.vmem %s0, 5
  %v33 = vld [vmem:[%s32] ss:$0 sm:$0xff]
  %s34 = scalar_lea.vmem %s1, 20
  %35 = vst [vmem:[%s34] sm:$0xf] %v33
  %s36 = scalar_lea.vmem %s1, 52
  %37 = vst [vmem:[%s36] sm:$0xf] %v33
  %s38 = scalar_lea.vmem %s0, 6
  %v39 = vld [vmem:[%s38] ss:$0 sm:$0xff]
  %s40 = scalar_lea.vmem %s1, 24
  %41 = vst [vmem:[%s40] sm:$0xf] %v39
  %s42 = scalar_lea.vmem %s1, 56
  %43 = vst [vmem:[%s42] sm:$0xf] %v39
  %s44 = scalar_lea.vmem %s0, 7
  %v45 = vld [vmem:[%s44] ss:$0 sm:$0xff]
  %s46 = scalar_lea.vmem %s1, 28
  %47 = vst [vmem:[%s46] sm:$0xf] %v45
  %s48 = scalar_lea.vmem %s1, 60
  %49 = vst [vmem:[%s48] sm:$0xf] %v45

// kernel: tile.24
$region0: #{tile.24}
  %s0 = inlined_call_operand.vmem [shape: f32[2,8,4,16], index: 0, kind: input, shape index: {}]
  %s1 = inlined_call_operand.vmem [shape: f32[16,64], index: 1, kind: output, shape index: {}]
  $region1: #{tile.24} parent=0
    #allocation0 [shape = 'u8[65536]{0}', space=vmem, size = 0x10000, scoped, tag = 'scoped mem for input reshape']
    %s3 = ssub.s32 16, 1
    %s4 = scalar_lea.vmem %s0, 60
    %v5 = vld [vmem:[%s4] sm:%s3]
    %s6 = scalar_lea.vmem [#allocation0], 120
    %7 = vst [vmem:[%s6] sm:%s3] %v5
    %s8 = scalar_lea.vmem %s0, 56
    %v9 = vld [vmem:[%s8] sm:%s3]
    %s10 = scalar_lea.vmem [#allocation0], 112
    %11 = vst [vmem:[%s10] sm:%s3] %v9
    %s12 = scalar_lea.vmem %s0, 52
    %v13 = vld [vmem:[%s12] sm:%s3]
    %s14 = scalar_lea.vmem [#allocation0], 104
    %15 = vst [vmem:[%s14] sm:%s3] %v13
    %s16 = scalar_lea.vmem %s0, 48
    %v17 = vld [vmem:[%s16] sm:%s3]
    %s18 = scalar_lea.vmem [#allocation0], 96
    %19 = vst [vmem:[%s18] sm:%s3] %v17
    %s20 = scalar_lea.vmem %s0, 44
    %v21 = vld [vmem:[%s20] sm:%s3]
    %s22 = scalar_lea.vmem [#allocation0], 88
    %23 = vst [vmem:[%s22] sm:%s3] %v21
    %s24 = scalar_lea.vmem %s0, 40
    %v25 = vld [vmem:[%s24] sm:%s3]
    %s26 = scalar_lea.vmem [#allocation0], 80
    %27 = vst [vmem:[%s26] sm:%s3] %v25
    %s28 = scalar_lea.vmem %s0, 36
    %v29 = vld [vmem:[%s28] sm:%s3]
    %s30 = scalar_lea.vmem [#allocation0], 72
    %31 = vst [vmem:[%s30] sm:%s3] %v29
    %s32 = scalar_lea.vmem %s0, 32
    %v33 = vld [vmem:[%s32] sm:%s3]
    %s34 = scalar_lea.vmem [#allocation0], 64
    %35 = vst [vmem:[%s34] sm:%s3] %v33
    %s36 = scalar_lea.vmem %s0, 28
    %v37 = vld [vmem:[%s36] sm:%s3]
    %s38 = scalar_lea.vmem [#allocation0], 56
    %39 = vst [vmem:[%s38] sm:%s3] %v37
    %s40 = scalar_lea.vmem %s0, 24
    %v41 = vld [vmem:[%s40] sm:%s3]
    %s42 = scalar_lea.vmem [#allocation0], 48
    %43 = vst [vmem:[%s42] sm:%s3] %v41
    %s44 = scalar_lea.vmem %s0, 20
    %v45 = vld [vmem:[%s44] sm:%s3]
    %s46 = scalar_lea.vmem [#allocation0], 40
    %47 = vst [vmem:[%s46] sm:%s3] %v45
    %s48 = scalar_lea.vmem %s0, 16
    %v49 = vld [vmem:[%s48] sm:%s3]
    %s50 = scalar_lea.vmem [#allocation0], 32
    %51 = vst [vmem:[%s50] sm:%s3] %v49
    %s52 = scalar_lea.vmem %s0, 12
    %v53 = vld [vmem:[%s52] sm:%s3]
    %s54 = scalar_lea.vmem [#allocation0], 24
    %55 = vst [vmem:[%s54] sm:%s3] %v53
    %s56 = scalar_lea.vmem %s0, 8
    %v57 = vld [vmem:[%s56] sm:%s3]
    %s58 = scalar_lea.vmem [#allocation0], 16
    %59 = vst [vmem:[%s58] sm:%s3] %v57
    %s60 = scalar_lea.vmem %s0, 4
    %v61 = vld [vmem:[%s60] sm:%s3]
    %s62 = scalar_lea.vmem [#allocation0], 8
    %63 = vst [vmem:[%s62] sm:%s3] %v61
    %v64 = vld [vmem:[%s0] sm:%s3]
    %65 = vst [vmem:[#allocation0] sm:%s3] %v64
    %v66 = vld [vmem:[#allocation0] ss:$8 sm:$0xf]
    %v67 = vld [vmem:[#allocation0] ss:$8 sm:$0xf0]
    %vm68 = vcmask 1047556
    %v69 = vsel %vm68, %v67, %v66
    %vm70 = vcmask 130048
    %71 = vst.msk [vmem:[%s1] sm:$0xff] %vm70, %v69
    %s72 = scalar_lea.vmem [#allocation0], 64
    %v73 = vld [vmem:[%s72] ss:$8 sm:$0xf]
    %s74 = scalar_lea.vmem [#allocation0], 64
    %v75 = vld [vmem:[%s74] ss:$8 sm:$0xf0]
    %vm76 = vcmask 1047556
    %v77 = vsel %vm76, %v75, %v73
    %vm78 = vcmask 130048
    %s79 = scalar_lea.vmem %s1, 8
    %80 = vst.msk [vmem:[%s79] sm:$0xff] %vm78, %v77
    %s81 = scalar_lea.vmem [#allocation0], 3
    %v82 = vld [vmem:[%s81] ss:$8 sm:$0xf]
    %s83 = scalar_lea.vmem [#allocation0], 3
    %v84 = vld [vmem:[%s83] ss:$8 sm:$0xf0]
    %vm85 = vcmask 1047556
    %v86 = vsel %vm85, %v84, %v82
    %87 = vrot.lane.b32.xlu0 %v86, 48
    %v88 = vpop.permute.xlu0 %87
    %vm89 = vcmask 523648
    %90 = vst.msk [vmem:[%s1] sm:$0xff] %vm89, %v88
    %s91 = scalar_lea.vmem [#allocation0], 67
    %v92 = vld [vmem:[%s91] ss:$8 sm:$0xf]
    %s93 = scalar_lea.vmem [#allocation0], 67
    %v94 = vld [vmem:[%s93] ss:$8 sm:$0xf0]
    %vm95 = vcmask 1047556
    %v96 = vsel %vm95, %v94, %v92
    %97 = vrot.lane.b32.xlu0 %v96, 48
    %v98 = vpop.permute.xlu0 %97
    %vm99 = vcmask 523648
    %s100 = scalar_lea.vmem %s1, 8
    %101 = vst.msk [vmem:[%s100] sm:$0xff] %vm99, %v98
    %s102 = scalar_lea.vmem [#allocation0], 2
    %v103 = vld [vmem:[%s102] ss:$8 sm:$0xf]
    %s104 = scalar_lea.vmem [#allocation0], 2
    %v105 = vld [vmem:[%s104] ss:$8 sm:$0xf0]
    %vm106 = vcmask 1047556
    %v107 = vsel %vm106, %v105, %v103
    %108 = vrot.lane.b32.xlu0 %v107, 32
    %v109 = vpop.permute.xlu0 %108
    %vm110 = vcmask 392448
    %111 = vst.msk [vmem:[%s1] sm:$0xff] %vm110, %v109
    %s112 = scalar_lea.vmem [#allocation0], 66
    %v113 = vld [vmem:[%s112] ss:$8 sm:$0xf]
    %s114 = scalar_lea.vmem [#allocation0], 66
    %v115 = vld [vmem:[%s114] ss:$8 sm:$0xf0]
    %vm116 = vcmask 1047556
    %v117 = vsel %vm116, %v115, %v113
    %118 = vrot.lane.b32.xlu0 %v117, 32
    %v119 = vpop.permute.xlu0 %118
    %vm120 = vcmask 392448
    %s121 = scalar_lea.vmem %s1, 8
    %122 = vst.msk [vmem:[%s121] sm:$0xff] %vm120, %v119
    %s123 = scalar_lea.vmem [#allocation0], 1
    %v124 = vld [vmem:[%s123] ss:$8 sm:$0xf]
    %s125 = scalar_lea.vmem [#allocation0], 1
    %v126 = vld [vmem:[%s125] ss:$8 sm:$0xf0]
    %vm127 = vcmask 1047556
    %v128 = vsel %vm127, %v126, %v124
    %129 = vrot.lane.b32.xlu0 %v128, 16
    %v130 = vpop.permute.xlu0 %129
    %vm131 = vcmask 261248
    %132 = vst.msk [vmem:[%s1] sm:$0xff] %vm131, %v130
    %s133 = scalar_lea.vmem [#allocation0], 65
    %v134 = vld [vmem:[%s133] ss:$8 sm:$0xf]
    %s135 = scalar_lea.vmem [#allocation0], 65
    %v136 = vld [vmem:[%s135] ss:$8 sm:$0xf0]
    %vm137 = vcmask 1047556
    %v138 = vsel %vm137, %v136, %v134
    %139 = vrot.lane.b32.xlu0 %v138, 16
    %v140 = vpop.permute.xlu0 %139
    %vm141 = vcmask 261248
    %s142 = scalar_lea.vmem %s1, 8
    %143 = vst.msk [vmem:[%s142] sm:$0xff] %vm141, %v140

// kernel: forward.1
$region0: #{forward.1}
  #allocation0 [shape = 'u32[]', space=smem, size = 0x4, offset = 0x4, fixed_abs, tag = 'smem constant byte address 0x4 - core index']
  #allocation1 [shape = 'u32[72,128]{1,0:T(1,128)}', space=vmem, size = 0x9000, scoped, tag = 'internal scratch']
  #allocation2 [shape = 'f32[16,128]{1,0:T(8,128)}', space=vmem, size = 0x2000, scoped, tag = 'scratch operand']
  %s0 = inlined_call_operand.smem [shape: u32[32], index: -1, kind: input, shape index: {}]
  %s1 = sld [smem:[%s0]]
  %s2 = scalar_lea.smem %s0, 1
  %s3 = sld [smem:[%s2]]
  %s4 = scalar_lea.smem %s0, 2
  %s5 = sld [smem:[%s4]]
  %s6 = scalar_lea.smem %s0, 3
  %s7 = sld [smem:[%s6]]
  %s8 = scalar_lea.smem %s0, 4
  %s9 = sld [smem:[%s8]]
  %s10 = scalar_lea.smem %s0, 5
  %s11 = sld [smem:[%s10]]
  %s12 = scalar_lea.smem %s0, 6
  %s13 = sld [smem:[%s12]]
  %s14 = scalar_lea.smem %s0, 7
  %s15 = sld [smem:[%s14]]
  %s16 = scalar_lea.smem %s0, 8
  %s17 = sld [smem:[%s16]]
  %s18 = scalar_lea.smem %s0, 9
  %s19 = sld [smem:[%s18]]
  %s20 = scalar_lea.smem %s0, 10
  %s21 = sld [smem:[%s20]]
  %s22 = scalar_lea.smem %s0, 11
  %s23 = sld [smem:[%s22]]
  %s24 = scalar_lea.smem %s0, 12
  %s25 = sld [smem:[%s24]]
  %s26 = scalar_lea.smem %s0, 13
  %s27 = sld [smem:[%s26]]
  %s28 = scalar_lea.smem %s0, 14
  %s29 = sld [smem:[%s28]]
  %s30 = scalar_lea.smem %s0, 15
  %s31 = sld [smem:[%s30]]
  %s32 = scalar_lea.smem %s0, 16
  %s33 = sld [smem:[%s32]]
  %s34 = scalar_lea.smem %s0, 17
  %s35 = sld [smem:[%s34]]
  %s36 = scalar_lea.smem %s0, 18
  %s37 = sld [smem:[%s36]]
  %s38 = scalar_lea.smem %s0, 19
  %s39 = sld [smem:[%s38]]
  %s40 = scalar_lea.smem %s0, 20
  %s41 = sld [smem:[%s40]]
  %s42 = scalar_lea.smem %s0, 21
  %s43 = sld [smem:[%s42]]
  %s44 = scalar_lea.smem %s0, 22
  %s45 = sld [smem:[%s44]]
  %s46 = scalar_lea.smem %s0, 23
  %s47 = sld [smem:[%s46]]
  %s48 = scalar_lea.smem %s0, 24
  %s49 = sld [smem:[%s48]]
  %s50 = scalar_lea.smem %s0, 25
  %s51 = sld [smem:[%s50]]
  %s52 = scalar_lea.smem %s0, 26
  %s53 = sld [smem:[%s52]]
  %s54 = scalar_lea.smem %s0, 27
  %s55 = sld [smem:[%s54]]
  %s56 = scalar_lea.smem %s0, 28
  %s57 = sld [smem:[%s56]]
  %s58 = scalar_lea.smem %s0, 29
  %s59 = sld [smem:[%s58]]
  %s60 = scalar_lea.smem %s0, 30
  %s61 = sld [smem:[%s60]]
  %s62 = scalar_lea.smem %s0, 31
  %s63 = sld [smem:[%s62]]
  %s64 = sld [smem:[#allocation0]]
  $region177: #{forward.1} parent=0
    _
  %s66 = ssub.s32 1, %s64
  %s67 = scalar_select 0, %s66, %s64
  $region1: #{forward.1} parent=0
    #allocation3 [shape = 'u8[1048576]{0}', space=vmem, size = 0x100000, scoped, tag = 'input window, operand 28']
    #allocation4 [shape = 's32[2]{0}', space=sflag, size = 0x8, scoped, tag = 'scoped memory for forward.1']
    #allocation5 [shape = 's32[2]{0}', space=sflag, size = 0x8, scoped, tag = 'scoped memory for forward.1']
    #allocation6 [shape = 'u8[1048576]{0}', space=vmem, size = 0x100000, scoped, tag = 'input window, operand 29']
    #allocation7 [shape = 's32[2]{0}', space=sflag, size = 0x8, scoped, tag = 'scoped memory for forward.1']
    #allocation8 [shape = 'u8[1048576]{0}', space=vmem, size = 0x100000, scoped, tag = 'input window, operand 30']
    #allocation9 [shape = 'u8[32768]{0}', space=vmem, size = 0x8000, scoped, tag = 'output window, operand 0, single buffered']
    %68 = vsyncpa [#allocation4], 0
    %s69 = scalar_lea.sflag [#allocation4], 1
    %70 = vsyncpa %s69, 0
    %71 = vsyncpa [#allocation7], 0
    %s72 = scalar_lea.sflag [#allocation7], 1
    %73 = vsyncpa %s72, 0
    %74 = vsyncpa [#allocation5], 0
    loop: start=0, step=1, limit=4
    $region2: #{forward.1} parent=1 // loop_pre_header
      _
    $region3: #{forward.1} parent=1 // loop_header
      %s76 = sphi 0, %s80
      %p77 = scmp.ge.s32.totalorder %s76, 4
      %s84 = sphi 0, %s84
      %s86 = sphi 0, %s84
      %s87 = sphi 0, %s86
      %s101 = sphi 0, %s87
      %s105 = sphi 0, %s105
      %s107 = sphi 0, %s105
      %s108 = sphi 0, %s107
      %s122 = sphi 0, %s108
      %s126 = sphi 0, %s126
      %s128 = sphi 0, %s126
      %s129 = sphi 0, %s128
      %s143 = sphi 0, %s129
      %s147 = sphi 0, %s147
      %s149 = sphi 0, %s147
      %s150 = sphi 0, %s149
      %s164 = sphi 0, %s150
      %s168 = sphi 0, %s168
      %s170 = sphi 0, %s168
      %s171 = sphi 0, %s170
      %s185 = sphi 0, %s171
      %s189 = sphi 0, %s189
      %s191 = sphi 0, %s189
      %s192 = sphi 0, %s191
      %s206 = sphi 0, %s192
      %s210 = sphi 0, %s210
      %s212 = sphi 0, %s210
      %s213 = sphi 0, %s212
      %s227 = sphi 0, %s213
      %s231 = sphi 0, %s231
      %s233 = sphi 0, %s231
      %s234 = sphi 0, %s233
      %s248 = sphi 0, %s234
      %s252 = sphi 0, %s252
      %s254 = sphi 0, %s252
      %s255 = sphi 0, %s254
      %s269 = sphi 0, %s255
      %s273 = sphi 0, %s273
      %s275 = sphi 0, %s273
      %s276 = sphi 0, %s275
      %s290 = sphi 0, %s276
      %s294 = sphi 0, %s294
      %s296 = sphi 0, %s294
      %s297 = sphi 0, %s296
      %s311 = sphi 0, %s297
      %s315 = sphi 0, %s315
      %s317 = sphi 0, %s315
      %s318 = sphi 0, %s317
      %s332 = sphi 0, %s318
      %s338 = sphi 0, %s340
      %s341 = sphi 0, %s338
      %s342 = sphi 0, %s341
      %s358 = sphi 0, %s342
      %s364 = sphi 0, %s366
      %s367 = sphi 0, %s364
      %s368 = sphi 0, %s367
      %s384 = sphi 0, %s368
      %s390 = sphi 0, %s392
      %s393 = sphi 0, %s390
      %s394 = sphi 0, %s393
      %s410 = sphi 0, %s394
      %s416 = sphi 0, %s418
      %s419 = sphi 0, %s416
      %s420 = sphi 0, %s419
      %s436 = sphi 0, %s420
      %s442 = sphi 0, %s444
      %s445 = sphi 0, %s442
      %s446 = sphi 0, %s445
      %s462 = sphi 0, %s446
      %s468 = sphi 0, %s470
      %s471 = sphi 0, %s468
      %s472 = sphi 0, %s471
      %s488 = sphi 0, %s472
      %s494 = sphi 0, %s496
      %s497 = sphi 0, %s494
      %s498 = sphi 0, %s497
      %s514 = sphi 0, %s498
      %s520 = sphi 0, %s522
      %s523 = sphi 0, %s520
      %s524 = sphi 0, %s523
      %s540 = sphi 0, %s524
      %s546 = sphi 0, %s548
      %s549 = sphi 0, %s546
      %s550 = sphi 0, %s549
      %s566 = sphi 0, %s550
      %s572 = sphi 0, %s574
      %s575 = sphi 0, %s572
      %s576 = sphi 0, %s575
      %s592 = sphi 0, %s576
      %s598 = sphi 0, %s600
      %s601 = sphi 0, %s598
      %s602 = sphi 0, %s601
      %s618 = sphi 0, %s602
      %s624 = sphi 0, %s626
      %s627 = sphi 0, %s624
      %s628 = sphi 0, %s627
      %s644 = sphi 0, %s628
      %s650 = sphi 0, %s652
      %s653 = sphi 0, %s650
      %s654 = sphi 0, %s653
      %s670 = sphi 0, %s654
      %s676 = sphi 0, %s678
      %s679 = sphi 0, %s676
      %s680 = sphi 0, %s679
      %s696 = sphi 0, %s680
      %s702 = sphi 0, %s704
      %s705 = sphi 0, %s702
      %s706 = sphi 0, %s705
      %s722 = sphi 0, %s706
      %s728 = sphi 0, %s730
      %s731 = sphi 0, %s728
      %s732 = sphi 0, %s731
      %s748 = sphi 0, %s732
      %s754 = sphi 0, %s756
      %s757 = sphi 0, %s754
      %s758 = sphi 0, %s757
      %s774 = sphi 0, %s758
      %s780 = sphi 0, %s782
      %s783 = sphi 0, %s780
      %s784 = sphi 0, %s783
      %s800 = sphi 0, %s784
      %s806 = sphi 0, %s808
      %s809 = sphi 0, %s806
      %s810 = sphi 0, %s809
      %s826 = sphi 0, %s810
      %s830 = sphi 0, %s830
      %s832 = sphi 0, %s830
      %s833 = sphi 0, %s832
      %s847 = sphi 0, %s833
    $region4: #{forward.1} parent=1 // loop_header_branch
      %79 = sbr.rel (%p77) target = $region8
    $region5: #{forward.1} parent=1 // loop_body
      %s81 = ssub.s32 %s76, 1
      %s82 = ssub.s32 %s76, 2
      %s83 = sadd.s32 %s76, 1
      %s85 = sadd.s32 %s84, 1
      %p88 = scmp.eq.s32.totalorder %s76, 1
      %p89 = scmp.ne.s32.totalorder %s84, %s86
      %p90 = scmp.eq.s32.totalorder %s76, 0
      %p91 = por %p89, %p90
      %p92 = scmp.ne.s32.totalorder %s84, %s86
      %p93 = scmp.eq.s32.totalorder %s81, 1
      %p94 = por %p92, %p93
      %p95 = scmp.ne.s32.totalorder %s86, %s87
      %p96 = scmp.eq.s32.totalorder %s81, 0
      %p97 = por %p95, %p96
      %p98 = scmp.ne.s32.totalorder %s86, %s87
      %p99 = scmp.eq.s32.totalorder %s82, 1
      %p100 = por %p98, %p99
      %p102 = scmp.ne.s32.totalorder %s87, %s101
      %p103 = scmp.eq.s32.totalorder %s82, 0
      %p104 = por %p102, %p103
      %s106 = sadd.s32 %s105, 1
      %p109 = scmp.eq.s32.totalorder %s76, 1
      %p110 = scmp.ne.s32.totalorder %s105, %s107
      %p111 = scmp.eq.s32.totalorder %s76, 0
      %p112 = por %p110, %p111
      %p113 = scmp.ne.s32.totalorder %s105, %s107
      %p114 = scmp.eq.s32.totalorder %s81, 1
      %p115 = por %p113, %p114
      %p116 = scmp.ne.s32.totalorder %s107, %s108
      %p117 = scmp.eq.s32.totalorder %s81, 0
      %p118 = por %p116, %p117
      %p119 = scmp.ne.s32.totalorder %s107, %s108
      %p120 = scmp.eq.s32.totalorder %s82, 1
      %p121 = por %p119, %p120
      %p123 = scmp.ne.s32.totalorder %s108, %s122
      %p124 = scmp.eq.s32.totalorder %s82, 0
      %p125 = por %p123, %p124
      %s127 = sadd.s32 %s126, 1
      %p130 = scmp.eq.s32.totalorder %s76, 1
      %p131 = scmp.ne.s32.totalorder %s126, %s128
      %p132 = scmp.eq.s32.totalorder %s76, 0
      %p133 = por %p131, %p132
      %p134 = scmp.ne.s32.totalorder %s126, %s128
      %p135 = scmp.eq.s32.totalorder %s81, 1
      %p136 = por %p134, %p135
      %p137 = scmp.ne.s32.totalorder %s128, %s129
      %p138 = scmp.eq.s32.totalorder %s81, 0
      %p139 = por %p137, %p138
      %p140 = scmp.ne.s32.totalorder %s128, %s129
      %p141 = scmp.eq.s32.totalorder %s82, 1
      %p142 = por %p140, %p141
      %p144 = scmp.ne.s32.totalorder %s129, %s143
      %p145 = scmp.eq.s32.totalorder %s82, 0
      %p146 = por %p144, %p145
      %s148 = sadd.s32 %s147, 1
      %p151 = scmp.eq.s32.totalorder %s76, 1
      %p152 = scmp.ne.s32.totalorder %s147, %s149
      %p153 = scmp.eq.s32.totalorder %s76, 0
      %p154 = por %p152, %p153
      %p155 = scmp.ne.s32.totalorder %s147, %s149
      %p156 = scmp.eq.s32.totalorder %s81, 1
      %p157 = por %p155, %p156
      %p158 = scmp.ne.s32.totalorder %s149, %s150
      %p159 = scmp.eq.s32.totalorder %s81, 0
      %p160 = por %p158, %p159
      %p161 = scmp.ne.s32.totalorder %s149, %s150
      %p162 = scmp.eq.s32.totalorder %s82, 1
      %p163 = por %p161, %p162
      %p165 = scmp.ne.s32.totalorder %s150, %s164
      %p166 = scmp.eq.s32.totalorder %s82, 0
      %p167 = por %p165, %p166
      %s169 = sadd.s32 %s168, 1
      %p172 = scmp.eq.s32.totalorder %s76, 1
      %p173 = scmp.ne.s32.totalorder %s168, %s170
      %p174 = scmp.eq.s32.totalorder %s76, 0
      %p175 = por %p173, %p174
      %p176 = scmp.ne.s32.totalorder %s168, %s170
      %p177 = scmp.eq.s32.totalorder %s81, 1
      %p178 = por %p176, %p177
      %p179 = scmp.ne.s32.totalorder %s170, %s171
      %p180 = scmp.eq.s32.totalorder %s81, 0
      %p181 = por %p179, %p180
      %p182 = scmp.ne.s32.totalorder %s170, %s171
      %p183 = scmp.eq.s32.totalorder %s82, 1
      %p184 = por %p182, %p183
      %p186 = scmp.ne.s32.totalorder %s171, %s185
      %p187 = scmp.eq.s32.totalorder %s82, 0
      %p188 = por %p186, %p187
      %s190 = sadd.s32 %s189, 1
      %p193 = scmp.eq.s32.totalorder %s76, 1
      %p194 = scmp.ne.s32.totalorder %s189, %s191
      %p195 = scmp.eq.s32.totalorder %s76, 0
      %p196 = por %p194, %p195
      %p197 = scmp.ne.s32.totalorder %s189, %s191
      %p198 = scmp.eq.s32.totalorder %s81, 1
      %p199 = por %p197, %p198
      %p200 = scmp.ne.s32.totalorder %s191, %s192
      %p201 = scmp.eq.s32.totalorder %s81, 0
      %p202 = por %p200, %p201
      %p203 = scmp.ne.s32.totalorder %s191, %s192
      %p204 = scmp.eq.s32.totalorder %s82, 1
      %p205 = por %p203, %p204
      %p207 = scmp.ne.s32.totalorder %s192, %s206
      %p208 = scmp.eq.s32.totalorder %s82, 0
      %p209 = por %p207, %p208
      %s211 = sadd.s32 %s210, 1
      %p214 = scmp.eq.s32.totalorder %s76, 1
      %p215 = scmp.ne.s32.totalorder %s210, %s212
      %p216 = scmp.eq.s32.totalorder %s76, 0
      %p217 = por %p215, %p216
      %p218 = scmp.ne.s32.totalorder %s210, %s212
      %p219 = scmp.eq.s32.totalorder %s81, 1
      %p220 = por %p218, %p219
      %p221 = scmp.ne.s32.totalorder %s212, %s213
      %p222 = scmp.eq.s32.totalorder %s81, 0
      %p223 = por %p221, %p222
      %p224 = scmp.ne.s32.totalorder %s212, %s213
      %p225 = scmp.eq.s32.totalorder %s82, 1
      %p226 = por %p224, %p225
      %p228 = scmp.ne.s32.totalorder %s213, %s227
      %p229 = scmp.eq.s32.totalorder %s82, 0
      %p230 = por %p228, %p229
      %s232 = sadd.s32 %s231, 1
      %p235 = scmp.eq.s32.totalorder %s76, 1
      %p236 = scmp.ne.s32.totalorder %s231, %s233
      %p237 = scmp.eq.s32.totalorder %s76, 0
      %p238 = por %p236, %p237
      %p239 = scmp.ne.s32.totalorder %s231, %s233
      %p240 = scmp.eq.s32.totalorder %s81, 1
      %p241 = por %p239, %p240
      %p242 = scmp.ne.s32.totalorder %s233, %s234
      %p243 = scmp.eq.s32.totalorder %s81, 0
      %p244 = por %p242, %p243
      %p245 = scmp.ne.s32.totalorder %s233, %s234
      %p246 = scmp.eq.s32.totalorder %s82, 1
      %p247 = por %p245, %p246
      %p249 = scmp.ne.s32.totalorder %s234, %s248
      %p250 = scmp.eq.s32.totalorder %s82, 0
      %p251 = por %p249, %p250
      %s253 = sadd.s32 %s252, 1
      %p256 = scmp.eq.s32.totalorder %s76, 1
      %p257 = scmp.ne.s32.totalorder %s252, %s254
      %p258 = scmp.eq.s32.totalorder %s76, 0
      %p259 = por %p257, %p258
      %p260 = scmp.ne.s32.totalorder %s252, %s254
      %p261 = scmp.eq.s32.totalorder %s81, 1
      %p262 = por %p260, %p261
      %p263 = scmp.ne.s32.totalorder %s254, %s255
      %p264 = scmp.eq.s32.totalorder %s81, 0
      %p265 = por %p263, %p264
      %p266 = scmp.ne.s32.totalorder %s254, %s255
      %p267 = scmp.eq.s32.totalorder %s82, 1
      %p268 = por %p266, %p267
      %p270 = scmp.ne.s32.totalorder %s255, %s269
      %p271 = scmp.eq.s32.totalorder %s82, 0
      %p272 = por %p270, %p271
      %s274 = sadd.s32 %s273, 1
      %p277 = scmp.eq.s32.totalorder %s76, 1
      %p278 = scmp.ne.s32.totalorder %s273, %s275
      %p279 = scmp.eq.s32.totalorder %s76, 0
      %p280 = por %p278, %p279
      %p281 = scmp.ne.s32.totalorder %s273, %s275
      %p282 = scmp.eq.s32.totalorder %s81, 1
      %p283 = por %p281, %p282
      %p284 = scmp.ne.s32.totalorder %s275, %s276
      %p285 = scmp.eq.s32.totalorder %s81, 0
      %p286 = por %p284, %p285
      %p287 = scmp.ne.s32.totalorder %s275, %s276
      %p288 = scmp.eq.s32.totalorder %s82, 1
      %p289 = por %p287, %p288
      %p291 = scmp.ne.s32.totalorder %s276, %s290
      %p292 = scmp.eq.s32.totalorder %s82, 0
      %p293 = por %p291, %p292
      %s295 = sadd.s32 %s294, 1
      %p298 = scmp.eq.s32.totalorder %s76, 1
      %p299 = scmp.ne.s32.totalorder %s294, %s296
      %p300 = scmp.eq.s32.totalorder %s76, 0
      %p301 = por %p299, %p300
      %p302 = scmp.ne.s32.totalorder %s294, %s296
      %p303 = scmp.eq.s32.totalorder %s81, 1
      %p304 = por %p302, %p303
      %p305 = scmp.ne.s32.totalorder %s296, %s297
      %p306 = scmp.eq.s32.totalorder %s81, 0
      %p307 = por %p305, %p306
      %p308 = scmp.ne.s32.totalorder %s296, %s297
      %p309 = scmp.eq.s32.totalorder %s82, 1
      %p310 = por %p308, %p309
      %p312 = scmp.ne.s32.totalorder %s297, %s311
      %p313 = scmp.eq.s32.totalorder %s82, 0
      %p314 = por %p312, %p313
      %s316 = sadd.s32 %s315, 1
      %p319 = scmp.eq.s32.totalorder %s76, 1
      %p320 = scmp.ne.s32.totalorder %s315, %s317
      %p321 = scmp.eq.s32.totalorder %s76, 0
      %p322 = por %p320, %p321
      %p323 = scmp.ne.s32.totalorder %s315, %s317
      %p324 = scmp.eq.s32.totalorder %s81, 1
      %p325 = por %p323, %p324
      %p326 = scmp.ne.s32.totalorder %s317, %s318
      %p327 = scmp.eq.s32.totalorder %s81, 0
      %p328 = por %p326, %p327
      %p329 = scmp.ne.s32.totalorder %s317, %s318
      %p330 = scmp.eq.s32.totalorder %s82, 1
      %p331 = por %p329, %p330
      %p333 = scmp.ne.s32.totalorder %s318, %s332
      %p334 = scmp.eq.s32.totalorder %s82, 0
      %p335 = por %p333, %p334
      %s336 = ssub.s32 %s76, %s83
      %p337 = scmp.eq.s32.totalorder %s336, 0
      %s339 = sadd.s32 %s338, 1
      %s340 = scalar_select %p337, %s338, %s339
      %p343 = pneg %p337
      %p344 = scmp.eq.s32.totalorder %s76, 1
      %p345 = por %p343, %p344
      %p346 = scmp.ne.s32.totalorder %s338, %s341
      %p347 = scmp.eq.s32.totalorder %s76, 0
      %p348 = por %p346, %p347
      %p349 = scmp.ne.s32.totalorder %s338, %s341
      %p350 = scmp.eq.s32.totalorder %s81, 1
      %p351 = por %p349, %p350
      %p352 = scmp.ne.s32.totalorder %s341, %s342
      %p353 = scmp.eq.s32.totalorder %s81, 0
      %p354 = por %p352, %p353
      %p355 = scmp.ne.s32.totalorder %s341, %s342
      %p356 = scmp.eq.s32.totalorder %s82, 1
      %p357 = por %p355, %p356
      %p359 = scmp.ne.s32.totalorder %s342, %s358
      %p360 = scmp.eq.s32.totalorder %s82, 0
      %p361 = por %p359, %p360
      %s362 = ssub.s32 %s76, %s83
      %p363 = scmp.eq.s32.totalorder %s362, 0
      %s365 = sadd.s32 %s364, 1
      %s366 = scalar_select %p363, %s364, %s365
      %p369 = pneg %p363
      %p370 = scmp.eq.s32.totalorder %s76, 1
      %p371 = por %p369, %p370
      %p372 = scmp.ne.s32.totalorder %s364, %s367
      %p373 = scmp.eq.s32.totalorder %s76, 0
      %p374 = por %p372, %p373
      %p375 = scmp.ne.s32.totalorder %s364, %s367
      %p376 = scmp.eq.s32.totalorder %s81, 1
      %p377 = por %p375, %p376
      %p378 = scmp.ne.s32.totalorder %s367, %s368
      %p379 = scmp.eq.s32.totalorder %s81, 0
      %p380 = por %p378, %p379
      %p381 = scmp.ne.s32.totalorder %s367, %s368
      %p382 = scmp.eq.s32.totalorder %s82, 1
      %p383 = por %p381, %p382
      %p385 = scmp.ne.s32.totalorder %s368, %s384
      %p386 = scmp.eq.s32.totalorder %s82, 0
      %p387 = por %p385, %p386
      %s388 = ssub.s32 %s76, %s83
      %p389 = scmp.eq.s32.totalorder %s388, 0
      %s391 = sadd.s32 %s390, 1
      %s392 = scalar_select %p389, %s390, %s391
      %p395 = pneg %p389
      %p396 = scmp.eq.s32.totalorder %s76, 1
      %p397 = por %p395, %p396
      %p398 = scmp.ne.s32.totalorder %s390, %s393
      %p399 = scmp.eq.s32.totalorder %s76, 0
      %p400 = por %p398, %p399
      %p401 = scmp.ne.s32.totalorder %s390, %s393
      %p402 = scmp.eq.s32.totalorder %s81, 1
      %p403 = por %p401, %p402
      %p404 = scmp.ne.s32.totalorder %s393, %s394
      %p405 = scmp.eq.s32.totalorder %s81, 0
      %p406 = por %p404, %p405
      %p407 = scmp.ne.s32.totalorder %s393, %s394
      %p408 = scmp.eq.s32.totalorder %s82, 1
      %p409 = por %p407, %p408
      %p411 = scmp.ne.s32.totalorder %s394, %s410
      %p412 = scmp.eq.s32.totalorder %s82, 0
      %p413 = por %p411, %p412
      %s414 = ssub.s32 %s76, %s83
      %p415 = scmp.eq.s32.totalorder %s414, 0
      %s417 = sadd.s32 %s416, 1
      %s418 = scalar_select %p415, %s416, %s417
      %p421 = pneg %p415
      %p422 = scmp.eq.s32.totalorder %s76, 1
      %p423 = por %p421, %p422
      %p424 = scmp.ne.s32.totalorder %s416, %s419
      %p425 = scmp.eq.s32.totalorder %s76, 0
      %p426 = por %p424, %p425
      %p427 = scmp.ne.s32.totalorder %s416, %s419
      %p428 = scmp.eq.s32.totalorder %s81, 1
      %p429 = por %p427, %p428
      %p430 = scmp.ne.s32.totalorder %s419, %s420
      %p431 = scmp.eq.s32.totalorder %s81, 0
      %p432 = por %p430, %p431
      %p433 = scmp.ne.s32.totalorder %s419, %s420
      %p434 = scmp.eq.s32.totalorder %s82, 1
      %p435 = por %p433, %p434
      %p437 = scmp.ne.s32.totalorder %s420, %s436
      %p438 = scmp.eq.s32.totalorder %s82, 0
      %p439 = por %p437, %p438
      %s440 = ssub.s32 %s76, %s83
      %p441 = scmp.eq.s32.totalorder %s440, 0
      %s443 = sadd.s32 %s442, 1
      %s444 = scalar_select %p441, %s442, %s443
      %p447 = pneg %p441
      %p448 = scmp.eq.s32.totalorder %s76, 1
      %p449 = por %p447, %p448
      %p450 = scmp.ne.s32.totalorder %s442, %s445
      %p451 = scmp.eq.s32.totalorder %s76, 0
      %p452 = por %p450, %p451
      %p453 = scmp.ne.s32.totalorder %s442, %s445
      %p454 = scmp.eq.s32.totalorder %s81, 1
      %p455 = por %p453, %p454
      %p456 = scmp.ne.s32.totalorder %s445, %s446
      %p457 = scmp.eq.s32.totalorder %s81, 0
      %p458 = por %p456, %p457
      %p459 = scmp.ne.s32.totalorder %s445, %s446
      %p460 = scmp.eq.s32.totalorder %s82, 1
      %p461 = por %p459, %p460
      %p463 = scmp.ne.s32.totalorder %s446, %s462
      %p464 = scmp.eq.s32.totalorder %s82, 0
      %p465 = por %p463, %p464
      %s466 = ssub.s32 %s76, %s83
      %p467 = scmp.eq.s32.totalorder %s466, 0
      %s469 = sadd.s32 %s468, 1
      %s470 = scalar_select %p467, %s468, %s469
      %p473 = pneg %p467
      %p474 = scmp.eq.s32.totalorder %s76, 1
      %p475 = por %p473, %p474
      %p476 = scmp.ne.s32.totalorder %s468, %s471
      %p477 = scmp.eq.s32.totalorder %s76, 0
      %p478 = por %p476, %p477
      %p479 = scmp.ne.s32.totalorder %s468, %s471
      %p480 = scmp.eq.s32.totalorder %s81, 1
      %p481 = por %p479, %p480
      %p482 = scmp.ne.s32.totalorder %s471, %s472
      %p483 = scmp.eq.s32.totalorder %s81, 0
      %p484 = por %p482, %p483
      %p485 = scmp.ne.s32.totalorder %s471, %s472
      %p486 = scmp.eq.s32.totalorder %s82, 1
      %p487 = por %p485, %p486
      %p489 = scmp.ne.s32.totalorder %s472, %s488
      %p490 = scmp.eq.s32.totalorder %s82, 0
      %p491 = por %p489, %p490
      %s492 = ssub.s32 %s76, %s83
      %p493 = scmp.eq.s32.totalorder %s492, 0
      %s495 = sadd.s32 %s494, 1
      %s496 = scalar_select %p493, %s494, %s495
      %p499 = pneg %p493
      %p500 = scmp.eq.s32.totalorder %s76, 1
      %p501 = por %p499, %p500
      %p502 = scmp.ne.s32.totalorder %s494, %s497
      %p503 = scmp.eq.s32.totalorder %s76, 0
      %p504 = por %p502, %p503
      %p505 = scmp.ne.s32.totalorder %s494, %s497
      %p506 = scmp.eq.s32.totalorder %s81, 1
      %p507 = por %p505, %p506
      %p508 = scmp.ne.s32.totalorder %s497, %s498
      %p509 = scmp.eq.s32.totalorder %s81, 0
      %p510 = por %p508, %p509
      %p511 = scmp.ne.s32.totalorder %s497, %s498
      %p512 = scmp.eq.s32.totalorder %s82, 1
      %p513 = por %p511, %p512
      %p515 = scmp.ne.s32.totalorder %s498, %s514
      %p516 = scmp.eq.s32.totalorder %s82, 0
      %p517 = por %p515, %p516
      %s518 = ssub.s32 %s76, %s83
      %p519 = scmp.eq.s32.totalorder %s518, 0
      %s521 = sadd.s32 %s520, 1
      %s522 = scalar_select %p519, %s520, %s521
      %p525 = pneg %p519
      %p526 = scmp.eq.s32.totalorder %s76, 1
      %p527 = por %p525, %p526
      %p528 = scmp.ne.s32.totalorder %s520, %s523
      %p529 = scmp.eq.s32.totalorder %s76, 0
      %p530 = por %p528, %p529
      %p531 = scmp.ne.s32.totalorder %s520, %s523
      %p532 = scmp.eq.s32.totalorder %s81, 1
      %p533 = por %p531, %p532
      %p534 = scmp.ne.s32.totalorder %s523, %s524
      %p535 = scmp.eq.s32.totalorder %s81, 0
      %p536 = por %p534, %p535
      %p537 = scmp.ne.s32.totalorder %s523, %s524
      %p538 = scmp.eq.s32.totalorder %s82, 1
      %p539 = por %p537, %p538
      %p541 = scmp.ne.s32.totalorder %s524, %s540
      %p542 = scmp.eq.s32.totalorder %s82, 0
      %p543 = por %p541, %p542
      %s544 = ssub.s32 %s76, %s83
      %p545 = scmp.eq.s32.totalorder %s544, 0
      %s547 = sadd.s32 %s546, 1
      %s548 = scalar_select %p545, %s546, %s547
      %p551 = pneg %p545
      %p552 = scmp.eq.s32.totalorder %s76, 1
      %p553 = por %p551, %p552
      %p554 = scmp.ne.s32.totalorder %s546, %s549
      %p555 = scmp.eq.s32.totalorder %s76, 0
      %p556 = por %p554, %p555
      %p557 = scmp.ne.s32.totalorder %s546, %s549
      %p558 = scmp.eq.s32.totalorder %s81, 1
      %p559 = por %p557, %p558
      %p560 = scmp.ne.s32.totalorder %s549, %s550
      %p561 = scmp.eq.s32.totalorder %s81, 0
      %p562 = por %p560, %p561
      %p563 = scmp.ne.s32.totalorder %s549, %s550
      %p564 = scmp.eq.s32.totalorder %s82, 1
      %p565 = por %p563, %p564
      %p567 = scmp.ne.s32.totalorder %s550, %s566
      %p568 = scmp.eq.s32.totalorder %s82, 0
      %p569 = por %p567, %p568
      %s570 = ssub.s32 %s76, %s83
      %p571 = scmp.eq.s32.totalorder %s570, 0
      %s573 = sadd.s32 %s572, 1
      %s574 = scalar_select %p571, %s572, %s573
      %p577 = pneg %p571
      %p578 = scmp.eq.s32.totalorder %s76, 1
      %p579 = por %p577, %p578
      %p580 = scmp.ne.s32.totalorder %s572, %s575
      %p581 = scmp.eq.s32.totalorder %s76, 0
      %p582 = por %p580, %p581
      %p583 = scmp.ne.s32.totalorder %s572, %s575
      %p584 = scmp.eq.s32.totalorder %s81, 1
      %p585 = por %p583, %p584
      %p586 = scmp.ne.s32.totalorder %s575, %s576
      %p587 = scmp.eq.s32.totalorder %s81, 0
      %p588 = por %p586, %p587
      %p589 = scmp.ne.s32.totalorder %s575, %s576
      %p590 = scmp.eq.s32.totalorder %s82, 1
      %p591 = por %p589, %p590
      %p593 = scmp.ne.s32.totalorder %s576, %s592
      %p594 = scmp.eq.s32.totalorder %s82, 0
      %p595 = por %p593, %p594
      %s596 = ssub.s32 %s76, %s83
      %p597 = scmp.eq.s32.totalorder %s596, 0
      %s599 = sadd.s32 %s598, 1
      %s600 = scalar_select %p597, %s598, %s599
      %p603 = pneg %p597
      %p604 = scmp.eq.s32.totalorder %s76, 1
      %p605 = por %p603, %p604
      %p606 = scmp.ne.s32.totalorder %s598, %s601
      %p607 = scmp.eq.s32.totalorder %s76, 0
      %p608 = por %p606, %p607
      %p609 = scmp.ne.s32.totalorder %s598, %s601
      %p610 = scmp.eq.s32.totalorder %s81, 1
      %p611 = por %p609, %p610
      %p612 = scmp.ne.s32.totalorder %s601, %s602
      %p613 = scmp.eq.s32.totalorder %s81, 0
      %p614 = por %p612, %p613
      %p615 = scmp.ne.s32.totalorder %s601, %s602
      %p616 = scmp.eq.s32.totalorder %s82, 1
      %p617 = por %p615, %p616
      %p619 = scmp.ne.s32.totalorder %s602, %s618
      %p620 = scmp.eq.s32.totalorder %s82, 0
      %p621 = por %p619, %p620
      %s622 = ssub.s32 %s76, %s83
      %p623 = scmp.eq.s32.totalorder %s622, 0
      %s625 = sadd.s32 %s624, 1
      %s626 = scalar_select %p623, %s624, %s625
      %p629 = pneg %p623
      %p630 = scmp.eq.s32.totalorder %s76, 1
      %p631 = por %p629, %p630
      %p632 = scmp.ne.s32.totalorder %s624, %s627
      %p633 = scmp.eq.s32.totalorder %s76, 0
      %p634 = por %p632, %p633
      %p635 = scmp.ne.s32.totalorder %s624, %s627
      %p636 = scmp.eq.s32.totalorder %s81, 1
      %p637 = por %p635, %p636
      %p638 = scmp.ne.s32.totalorder %s627, %s628
      %p639 = scmp.eq.s32.totalorder %s81, 0
      %p640 = por %p638, %p639
      %p641 = scmp.ne.s32.totalorder %s627, %s628
      %p642 = scmp.eq.s32.totalorder %s82, 1
      %p643 = por %p641, %p642
      %p645 = scmp.ne.s32.totalorder %s628, %s644
      %p646 = scmp.eq.s32.totalorder %s82, 0
      %p647 = por %p645, %p646
      %s648 = ssub.s32 %s76, %s83
      %p649 = scmp.eq.s32.totalorder %s648, 0
      %s651 = sadd.s32 %s650, 1
      %s652 = scalar_select %p649, %s650, %s651
      %p655 = pneg %p649
      %p656 = scmp.eq.s32.totalorder %s76, 1
      %p657 = por %p655, %p656
      %p658 = scmp.ne.s32.totalorder %s650, %s653
      %p659 = scmp.eq.s32.totalorder %s76, 0
      %p660 = por %p658, %p659
      %p661 = scmp.ne.s32.totalorder %s650, %s653
      %p662 = scmp.eq.s32.totalorder %s81, 1
      %p663 = por %p661, %p662
      %p664 = scmp.ne.s32.totalorder %s653, %s654
      %p665 = scmp.eq.s32.totalorder %s81, 0
      %p666 = por %p664, %p665
      %p667 = scmp.ne.s32.totalorder %s653, %s654
      %p668 = scmp.eq.s32.totalorder %s82, 1
      %p669 = por %p667, %p668
      %p671 = scmp.ne.s32.totalorder %s654, %s670
      %p672 = scmp.eq.s32.totalorder %s82, 0
      %p673 = por %p671, %p672
      %s674 = ssub.s32 %s76, %s83
      %p675 = scmp.eq.s32.totalorder %s674, 0
      %s677 = sadd.s32 %s676, 1
      %s678 = scalar_select %p675, %s676, %s677
      %p681 = pneg %p675
      %p682 = scmp.eq.s32.totalorder %s76, 1
      %p683 = por %p681, %p682
      %p684 = scmp.ne.s32.totalorder %s676, %s679
      %p685 = scmp.eq.s32.totalorder %s76, 0
      %p686 = por %p684, %p685
      %p687 = scmp.ne.s32.totalorder %s676, %s679
      %p688 = scmp.eq.s32.totalorder %s81, 1
      %p689 = por %p687, %p688
      %p690 = scmp.ne.s32.totalorder %s679, %s680
      %p691 = scmp.eq.s32.totalorder %s81, 0
      %p692 = por %p690, %p691
      %p693 = scmp.ne.s32.totalorder %s679, %s680
      %p694 = scmp.eq.s32.totalorder %s82, 1
      %p695 = por %p693, %p694
      %p697 = scmp.ne.s32.totalorder %s680, %s696
      %p698 = scmp.eq.s32.totalorder %s82, 0
      %p699 = por %p697, %p698
      %s700 = ssub.s32 %s76, %s83
      %p701 = scmp.eq.s32.totalorder %s700, 0
      %s703 = sadd.s32 %s702, 1
      %s704 = scalar_select %p701, %s702, %s703
      %p707 = pneg %p701
      %p708 = scmp.eq.s32.totalorder %s76, 1
      %p709 = por %p707, %p708
      %p710 = scmp.ne.s32.totalorder %s702, %s705
      %p711 = scmp.eq.s32.totalorder %s76, 0
      %p712 = por %p710, %p711
      %p713 = scmp.ne.s32.totalorder %s702, %s705
      %p714 = scmp.eq.s32.totalorder %s81, 1
      %p715 = por %p713, %p714
      %p716 = scmp.ne.s32.totalorder %s705, %s706
      %p717 = scmp.eq.s32.totalorder %s81, 0
      %p718 = por %p716, %p717
      %p719 = scmp.ne.s32.totalorder %s705, %s706
      %p720 = scmp.eq.s32.totalorder %s82, 1
      %p721 = por %p719, %p720
      %p723 = scmp.ne.s32.totalorder %s706, %s722
      %p724 = scmp.eq.s32.totalorder %s82, 0
      %p725 = por %p723, %p724
      %s726 = ssub.s32 %s76, %s83
      %p727 = scmp.eq.s32.totalorder %s726, 0
      %s729 = sadd.s32 %s728, 1
      %s730 = scalar_select %p727, %s728, %s729
      %p733 = pneg %p727
      %p734 = scmp.eq.s32.totalorder %s76, 1
      %p735 = por %p733, %p734
      %p736 = scmp.ne.s32.totalorder %s728, %s731
      %p737 = scmp.eq.s32.totalorder %s76, 0
      %p738 = por %p736, %p737
      %p739 = scmp.ne.s32.totalorder %s728, %s731
      %p740 = scmp.eq.s32.totalorder %s81, 1
      %p741 = por %p739, %p740
      %p742 = scmp.ne.s32.totalorder %s731, %s732
      %p743 = scmp.eq.s32.totalorder %s81, 0
      %p744 = por %p742, %p743
      %p745 = scmp.ne.s32.totalorder %s731, %s732
      %p746 = scmp.eq.s32.totalorder %s82, 1
      %p747 = por %p745, %p746
      %p749 = scmp.ne.s32.totalorder %s732, %s748
      %p750 = scmp.eq.s32.totalorder %s82, 0
      %p751 = por %p749, %p750
      %s752 = ssub.s32 %s76, %s83
      %p753 = scmp.eq.s32.totalorder %s752, 0
      %s755 = sadd.s32 %s754, 1
      %s756 = scalar_select %p753, %s754, %s755
      %p759 = pneg %p753
      %p760 = scmp.eq.s32.totalorder %s76, 1
      %p761 = por %p759, %p760
      %p762 = scmp.ne.s32.totalorder %s754, %s757
      %p763 = scmp.eq.s32.totalorder %s76, 0
      %p764 = por %p762, %p763
      %p765 = scmp.ne.s32.totalorder %s754, %s757
      %p766 = scmp.eq.s32.totalorder %s81, 1
      %p767 = por %p765, %p766
      %p768 = scmp.ne.s32.totalorder %s757, %s758
      %p769 = scmp.eq.s32.totalorder %s81, 0
      %p770 = por %p768, %p769
      %p771 = scmp.ne.s32.totalorder %s757, %s758
      %p772 = scmp.eq.s32.totalorder %s82, 1
      %p773 = por %p771, %p772
      %p775 = scmp.ne.s32.totalorder %s758, %s774
      %p776 = scmp.eq.s32.totalorder %s82, 0
      %p777 = por %p775, %p776
      %s778 = ssub.s32 %s76, %s83
      %p779 = scmp.eq.s32.totalorder %s778, 0
      %s781 = sadd.s32 %s780, 1
      %s782 = scalar_select %p779, %s780, %s781
      %p785 = pneg %p779
      %p786 = scmp.eq.s32.totalorder %s76, 1
      %p787 = por %p785, %p786
      %p788 = scmp.ne.s32.totalorder %s780, %s783
      %p789 = scmp.eq.s32.totalorder %s76, 0
      %p790 = por %p788, %p789
      %p791 = scmp.ne.s32.totalorder %s780, %s783
      %p792 = scmp.eq.s32.totalorder %s81, 1
      %p793 = por %p791, %p792
      %p794 = scmp.ne.s32.totalorder %s783, %s784
      %p795 = scmp.eq.s32.totalorder %s81, 0
      %p796 = por %p794, %p795
      %p797 = scmp.ne.s32.totalorder %s783, %s784
      %p798 = scmp.eq.s32.totalorder %s82, 1
      %p799 = por %p797, %p798
      %p801 = scmp.ne.s32.totalorder %s784, %s800
      %p802 = scmp.eq.s32.totalorder %s82, 0
      %p803 = por %p801, %p802
      %s804 = ssub.s32 %s76, %s83
      %p805 = scmp.eq.s32.totalorder %s804, 0
      %s807 = sadd.s32 %s806, 1
      %s808 = scalar_select %p805, %s806, %s807
      %p811 = pneg %p805
      %p812 = scmp.eq.s32.totalorder %s76, 1
      %p813 = por %p811, %p812
      %p814 = scmp.ne.s32.totalorder %s806, %s809
      %p815 = scmp.eq.s32.totalorder %s76, 0
      %p816 = por %p814, %p815
      %p817 = scmp.ne.s32.totalorder %s806, %s809
      %p818 = scmp.eq.s32.totalorder %s81, 1
      %p819 = por %p817, %p818
      %p820 = scmp.ne.s32.totalorder %s809, %s810
      %p821 = scmp.eq.s32.totalorder %s81, 0
      %p822 = por %p820, %p821
      %p823 = scmp.ne.s32.totalorder %s809, %s810
      %p824 = scmp.eq.s32.totalorder %s82, 1
      %p825 = por %p823, %p824
      %p827 = scmp.ne.s32.totalorder %s810, %s826
      %p828 = scmp.eq.s32.totalorder %s82, 0
      %p829 = por %p827, %p828
      %s831 = sadd.s32 %s830, 1
      %p834 = scmp.eq.s32.totalorder %s76, 1
      %p835 = scmp.ne.s32.totalorder %s830, %s832
      %p836 = scmp.eq.s32.totalorder %s76, 0
      %p837 = por %p835, %p836
      %p838 = scmp.ne.s32.totalorder %s830, %s832
      %p839 = scmp.eq.s32.totalorder %s81, 1
      %p840 = por %p838, %p839
      %p841 = scmp.ne.s32.totalorder %s832, %s833
      %p842 = scmp.eq.s32.totalorder %s81, 0
      %p843 = por %p841, %p842
      %p844 = scmp.ne.s32.totalorder %s832, %s833
      %p845 = scmp.eq.s32.totalorder %s82, 1
      %p846 = por %p844, %p845
      %p848 = scmp.ne.s32.totalorder %s833, %s847
      %p849 = scmp.eq.s32.totalorder %s82, 0
      %p850 = por %p848, %p849
      %p851 = scmp.le.s32.totalorder 1, %s76
      %p852 = scmp.lt.s32.totalorder %s76, 3
      %p853 = pnand %p851, %p852
      %p854 = pneg %p853
      // Predicated region
      $region9: #{forward.1} parent=5 // pred_check
        _
      $region10: #{forward.1} parent=5 // pred_check_branch
        %856 = sbr.rel (%p853) target = $region12
      $region11: #{forward.1} parent=5 // pred_region
        %s857 = ssub.s32 %s76, 1
        // Predicated region
        $region13: #{forward.1} parent=11 // pred_check
          %p858 = pneg %p97
        $region14: #{forward.1} parent=11 // pred_check_branch
          %860 = sbr.rel (%p858) target = $region16
        $region15: #{forward.1} parent=11 // pred_region
          _
        $region16: #{forward.1} parent=11 // pred_fallthru
          _
        // Predicated region
        $region17: #{forward.1} parent=11 // pred_check
          %p861 = pneg %p118
        $region18: #{forward.1} parent=11 // pred_check_branch
          %863 = sbr.rel (%p861) target = $region20
        $region19: #{forward.1} parent=11 // pred_region
          _
        $region20: #{forward.1} parent=11 // pred_fallthru
          _
        // Predicated region
        $region21: #{forward.1} parent=11 // pred_check
          %p864 = pneg %p139
        $region22: #{forward.1} parent=11 // pred_check_branch
          %866 = sbr.rel (%p864) target = $region24
        $region23: #{forward.1} parent=11 // pred_region
          _
        $region24: #{forward.1} parent=11 // pred_fallthru
          _
        // Predicated region
        $region25: #{forward.1} parent=11 // pred_check
          %p867 = pneg %p160
        $region26: #{forward.1} parent=11 // pred_check_branch
          %869 = sbr.rel (%p867) target = $region28
        $region27: #{forward.1} parent=11 // pred_region
          _
        $region28: #{forward.1} parent=11 // pred_fallthru
          _
        // Predicated region
        $region29: #{forward.1} parent=11 // pred_check
          %p870 = pneg %p181
        $region30: #{forward.1} parent=11 // pred_check_branch
          %872 = sbr.rel (%p870) target = $region32
        $region31: #{forward.1} parent=11 // pred_region
          _
        $region32: #{forward.1} parent=11 // pred_fallthru
          _
        // Predicated region
        $region33: #{forward.1} parent=11 // pred_check
          %p873 = pneg %p202
        $region34: #{forward.1} parent=11 // pred_check_branch
          %875 = sbr.rel (%p873) target = $region36
        $region35: #{forward.1} parent=11 // pred_region
          _
        $region36: #{forward.1} parent=11 // pred_fallthru
          _
        // Predicated region
        $region37: #{forward.1} parent=11 // pred_check
          %p876 = pneg %p223
        $region38: #{forward.1} parent=11 // pred_check_branch
          %878 = sbr.rel (%p876) target = $region40
        $region39: #{forward.1} parent=11 // pred_region
          _
        $region40: #{forward.1} parent=11 // pred_fallthru
          _
        // Predicated region
        $region41: #{forward.1} parent=11 // pred_check
          %p879 = pneg %p244
        $region42: #{forward.1} parent=11 // pred_check_branch
          %881 = sbr.rel (%p879) target = $region44
        $region43: #{forward.1} parent=11 // pred_region
          _
        $region44: #{forward.1} parent=11 // pred_fallthru
          _
        // Predicated region
        $region45: #{forward.1} parent=11 // pred_check
          %p882 = pneg %p265
        $region46: #{forward.1} parent=11 // pred_check_branch
          %884 = sbr.rel (%p882) target = $region48
        $region47: #{forward.1} parent=11 // pred_region
          _
        $region48: #{forward.1} parent=11 // pred_fallthru
          _
        // Predicated region
        $region49: #{forward.1} parent=11 // pred_check
          %p885 = pneg %p286
        $region50: #{forward.1} parent=11 // pred_check_branch
          %887 = sbr.rel (%p885) target = $region52
        $region51: #{forward.1} parent=11 // pred_region
          _
        $region52: #{forward.1} parent=11 // pred_fallthru
          _
        // Predicated region
        $region53: #{forward.1} parent=11 // pred_check
          %p888 = pneg %p307
        $region54: #{forward.1} parent=11 // pred_check_branch
          %890 = sbr.rel (%p888) target = $region56
        $region55: #{forward.1} parent=11 // pred_region
          _
        $region56: #{forward.1} parent=11 // pred_fallthru
          _
        // Predicated region
        $region57: #{forward.1} parent=11 // pred_check
          %p891 = pneg %p328
        $region58: #{forward.1} parent=11 // pred_check_branch
          %893 = sbr.rel (%p891) target = $region60
        $region59: #{forward.1} parent=11 // pred_region
          _
        $region60: #{forward.1} parent=11 // pred_fallthru
          _
      $region12: #{forward.1} parent=5 // pred_fallthru
        _
      %p894 = scmp.lt.s32.totalorder %s76, 2
      // Predicated region
      $region61: #{forward.1} parent=5 // pred_check
        %p895 = pneg %p894
      $region62: #{forward.1} parent=5 // pred_check_branch
        %897 = sbr.rel (%p895) target = $region64
      $region63: #{forward.1} parent=5 // pred_region
        // Predicated region
        $region65: #{forward.1} parent=63 // pred_check
          %p898 = pneg %p348
        $region66: #{forward.1} parent=63 // pred_check_branch
          %900 = sbr.rel (%p898) target = $region68
        $region67: #{forward.1} parent=63 // pred_region
          %p901 = scmp.lt.s32.totalorder %s76, 1
          %s902 = scalar_select %p901, %s76, 1
          %s903 = scalar_lea.vmem %s25, %s902
        $region68: #{forward.1} parent=63 // pred_fallthru
          _
        // Predicated region
        $region69: #{forward.1} parent=63 // pred_check
          %p904 = pneg %p374
        $region70: #{forward.1} parent=63 // pred_check_branch
          %906 = sbr.rel (%p904) target = $region72
        $region71: #{forward.1} parent=63 // pred_region
          %p907 = scmp.lt.s32.totalorder %s76, 1
          %s908 = scalar_select %p907, %s76, 1
          %s909 = smul.addr %s908, 16
          %s910 = smul.addr %s909, 8
          %s911 = scalar_lea.vmem %s27, %s910
        $region72: #{forward.1} parent=63 // pred_fallthru
          _
        // Predicated region
        $region73: #{forward.1} parent=63 // pred_check
          %p912 = pneg %p400
        $region74: #{forward.1} parent=63 // pred_check_branch
          %914 = sbr.rel (%p912) target = $region76
        $region75: #{forward.1} parent=63 // pred_region
          %p915 = scmp.lt.s32.totalorder %s76, 1
          %s916 = scalar_select %p915, %s76, 1
          %s917 = smul.addr %s916, 16
          %s918 = smul.addr %s917, 8
          %s919 = scalar_lea.vmem %s29, %s918
        $region76: #{forward.1} parent=63 // pred_fallthru
          _
        // Predicated region
        $region77: #{forward.1} parent=63 // pred_check
          %p920 = pneg %p426
        $region78: #{forward.1} parent=63 // pred_check_branch
          %922 = sbr.rel (%p920) target = $region80
        $region79: #{forward.1} parent=63 // pred_region
          %p923 = scmp.lt.s32.totalorder %s76, 1
          %s924 = scalar_select %p923, %s76, 1
          %s925 = smul.addr %s924, 16
          %s926 = smul.addr %s925, 8
          %s927 = scalar_lea.vmem %s31, %s926
        $region80: #{forward.1} parent=63 // pred_fallthru
          _
        // Predicated region
        $region81: #{forward.1} parent=63 // pred_check
          %p928 = pneg %p452
        $region82: #{forward.1} parent=63 // pred_check_branch
          %930 = sbr.rel (%p928) target = $region84
        $region83: #{forward.1} parent=63 // pred_region
          %p931 = scmp.lt.s32.totalorder %s76, 1
          %s932 = scalar_select %p931, %s76, 1
          %s933 = smul.addr %s932, 16
          %s934 = smul.addr %s933, 8
          %s935 = scalar_lea.vmem %s33, %s934
        $region84: #{forward.1} parent=63 // pred_fallthru
          _
        // Predicated region
        $region85: #{forward.1} parent=63 // pred_check
          %p936 = pneg %p478
        $region86: #{forward.1} parent=63 // pred_check_branch
          %938 = sbr.rel (%p936) target = $region88
        $region87: #{forward.1} parent=63 // pred_region
          %p939 = scmp.lt.s32.totalorder %s76, 1
          %s940 = scalar_select %p939, %s76, 1
          %s941 = smul.addr %s940, 16
          %s942 = smul.addr %s941, 8
          %s943 = scalar_lea.vmem %s35, %s942
        $region88: #{forward.1} parent=63 // pred_fallthru
          _
        // Predicated region
        $region89: #{forward.1} parent=63 // pred_check
          %p944 = pneg %p504
        $region90: #{forward.1} parent=63 // pred_check_branch
          %946 = sbr.rel (%p944) target = $region92
        $region91: #{forward.1} parent=63 // pred_region
          %p947 = scmp.lt.s32.totalorder %s76, 1
          %s948 = scalar_select %p947, %s76, 1
          %s949 = smul.addr %s948, 8
          %s950 = smul.addr %s949, 8
          %s951 = scalar_lea.vmem %s37, %s950
        $region92: #{forward.1} parent=63 // pred_fallthru
          _
        // Predicated region
        $region93: #{forward.1} parent=63 // pred_check
          %p952 = pneg %p530
        $region94: #{forward.1} parent=63 // pred_check_branch
          %954 = sbr.rel (%p952) target = $region96
        $region95: #{forward.1} parent=63 // pred_region
          %p955 = scmp.lt.s32.totalorder %s76, 1
          %s956 = scalar_select %p955, %s76, 1
          %s957 = smul.addr %s956, 8
          %s958 = smul.addr %s957, 8
          %s959 = scalar_lea.vmem %s39, %s958
        $region96: #{forward.1} parent=63 // pred_fallthru
          _
        // Predicated region
        $region97: #{forward.1} parent=63 // pred_check
          %p960 = pneg %p556
        $region98: #{forward.1} parent=63 // pred_check_branch
          %962 = sbr.rel (%p960) target = $region100
        $region99: #{forward.1} parent=63 // pred_region
          %p963 = scmp.lt.s32.totalorder %s76, 1
          %s964 = scalar_select %p963, %s76, 1
          %s965 = smul.addr %s964, 4
          %s966 = smul.addr %s965, 8
          %s967 = scalar_lea.vmem %s41, %s966
        $region100: #{forward.1} parent=63 // pred_fallthru
          _
        // Predicated region
        $region101: #{forward.1} parent=63 // pred_check
          %p968 = pneg %p582
        $region102: #{forward.1} parent=63 // pred_check_branch
          %970 = sbr.rel (%p968) target = $region104
        $region103: #{forward.1} parent=63 // pred_region
          %p971 = scmp.lt.s32.totalorder %s76, 1
          %s972 = scalar_select %p971, %s76, 1
          %s973 = smul.addr %s972, 4
          %s974 = smul.addr %s973, 8
          %s975 = scalar_lea.vmem %s43, %s974
        $region104: #{forward.1} parent=63 // pred_fallthru
          _
        // Predicated region
        $region105: #{forward.1} parent=63 // pred_check
          %p976 = pneg %p608
        $region106: #{forward.1} parent=63 // pred_check_branch
          %978 = sbr.rel (%p976) target = $region108
        $region107: #{forward.1} parent=63 // pred_region
          %p979 = scmp.lt.s32.totalorder %s76, 1
          %s980 = scalar_select %p979, %s76, 1
          %s981 = smul.addr %s980, 8
          %s982 = smul.addr %s981, 8
          %s983 = scalar_lea.vmem %s45, %s982
        $region108: #{forward.1} parent=63 // pred_fallthru
          _
        // Predicated region
        $region109: #{forward.1} parent=63 // pred_check
          %p984 = pneg %p634
        $region110: #{forward.1} parent=63 // pred_check_branch
          %986 = sbr.rel (%p984) target = $region112
        $region111: #{forward.1} parent=63 // pred_region
          %p987 = scmp.lt.s32.totalorder %s76, 1
          %s988 = scalar_select %p987, %s76, 1
          %s989 = scalar_lea.vmem %s47, %s988
        $region112: #{forward.1} parent=63 // pred_fallthru
          _
        // Predicated region
        $region113: #{forward.1} parent=63 // pred_check
          %p990 = pneg %p660
        $region114: #{forward.1} parent=63 // pred_check_branch
          %992 = sbr.rel (%p990) target = $region116
        $region115: #{forward.1} parent=63 // pred_region
          %p993 = scmp.lt.s32.totalorder %s76, 1
          %s994 = scalar_select %p993, %s76, 1
          %s995 = scalar_lea.vmem %s49, %s994
        $region116: #{forward.1} parent=63 // pred_fallthru
          _
        // Predicated region
        $region117: #{forward.1} parent=63 // pred_check
          %p996 = pneg %p686
        $region118: #{forward.1} parent=63 // pred_check_branch
          %998 = sbr.rel (%p996) target = $region120
        $region119: #{forward.1} parent=63 // pred_region
          %p999 = scmp.lt.s32.totalorder %s76, 1
          %s1000 = scalar_select %p999, %s76, 1
          %s1001 = smul.addr %s1000, 4
          %s1002 = smul.addr %s1001, 8
          %s1003 = scalar_lea.vmem %s51, %s1002
        $region120: #{forward.1} parent=63 // pred_fallthru
          _
        // Predicated region
        $region121: #{forward.1} parent=63 // pred_check
          %p1004 = pneg %p712
        $region122: #{forward.1} parent=63 // pred_check_branch
          %1006 = sbr.rel (%p1004) target = $region124
        $region123: #{forward.1} parent=63 // pred_region
          %p1007 = scmp.lt.s32.totalorder %s76, 1
          %s1008 = scalar_select %p1007, %s76, 1
          %s1009 = scalar_lea.vmem %s53, %s1008
        $region124: #{forward.1} parent=63 // pred_fallthru
          _
        // Predicated region
        $region125: #{forward.1} parent=63 // pred_check
          %p1010 = pneg %p738
        $region126: #{forward.1} parent=63 // pred_check_branch
          %1012 = sbr.rel (%p1010) target = $region128
        $region127: #{forward.1} parent=63 // pred_region
          %p1013 = scmp.lt.s32.totalorder %s76, 1
          %s1014 = scalar_select %p1013, %s76, 1
          %s1015 = smul.addr %s1014, 16
          %s1016 = smul.addr %s1015, 8
          %s1017 = scalar_lea.vmem %s55, %s1016
        $region128: #{forward.1} parent=63 // pred_fallthru
          _
        // Predicated region
        $region129: #{forward.1} parent=63 // pred_check
          %p1018 = pneg %p764
        $region130: #{forward.1} parent=63 // pred_check_branch
          %1020 = sbr.rel (%p1018) target = $region132
        $region131: #{forward.1} parent=63 // pred_region
          %s1021 = sand.u32 %s754, 1
          %s1022 = scalar_lea.sflag [#allocation4], %s1021
          %s1023 = sand.u32 %s754, 1
          %s1024 = smul.addr %s1023, 1024
          %s1025 = scalar_lea.vmem [#allocation3], %s1024
          %1027 = vsyncadd %s1022, 0
          %s1028 = smul.addr %s76, 128
          %s1029 = smul.addr %s1028, 8
          %s1030 = scalar_lea.hbm %s57, %s1029
          %s1031 = sshll.u32 %s1030, 4
          %s1032 = int_to_ptr.hbm [resolvable:$true] %s1031
          %s1033 = sshll.u32 %s1025, 4
          %s1034 = int_to_ptr.vmem [resolvable:$true] %s1033
          %1039 = dma.hbm_to_vmem [thread:$0]  %s1032, 16384, %s1034, %s1022, 1024, 1024, 64
        $region132: #{forward.1} parent=63 // pred_fallthru
          _
        // Predicated region
        $region133: #{forward.1} parent=63 // pred_check
          %p1040 = pneg %p790
        $region134: #{forward.1} parent=63 // pred_check_branch
          %1042 = sbr.rel (%p1040) target = $region136
        $region135: #{forward.1} parent=63 // pred_region
          %s1043 = sand.u32 %s76, 1
          %s1044 = scalar_lea.sflag [#allocation7], %s1043
          %s1045 = sand.u32 %s780, 1
          %s1046 = smul.addr %s1045, 1024
          %s1047 = scalar_lea.vmem [#allocation6], %s1046
          %1049 = vsyncadd %s1044, 0
          %s1050 = smul.addr %s76, 128
          %s1051 = smul.addr %s1050, 8
          %s1052 = scalar_lea.hbm %s59, %s1051
          %s1053 = sshll.u32 %s1052, 4
          %s1054 = int_to_ptr.hbm [resolvable:$true] %s1053
          %s1055 = sshll.u32 %s1047, 4
          %s1056 = int_to_ptr.vmem [resolvable:$true] %s1055
          %1061 = dma.hbm_to_vmem [thread:$0]  %s1054, 16384, %s1056, %s1044, 1024, 1024, 64
        $region136: #{forward.1} parent=63 // pred_fallthru
          _
        // Predicated region
        $region137: #{forward.1} parent=63 // pred_check
          %p1062 = pneg %p816
        $region138: #{forward.1} parent=63 // pred_check_branch
          %1064 = sbr.rel (%p1062) target = $region140
        $region139: #{forward.1} parent=63 // pred_region
          %s1065 = sand.u32 %s76, 1
          %s1066 = scalar_lea.sflag [#allocation7], %s1065
          %s1067 = sand.u32 %s806, 1
          %s1068 = smul.addr %s1067, 1024
          %s1069 = scalar_lea.vmem [#allocation8], %s1068
          %1071 = vsyncadd %s1066, 0
          %s1072 = smul.addr %s76, 128
          %s1073 = smul.addr %s1072, 8
          %s1074 = scalar_lea.hbm %s61, %s1073
          %s1075 = sshll.u32 %s1074, 4
          %s1076 = int_to_ptr.hbm [resolvable:$true] %s1075
          %s1077 = sshll.u32 %s1069, 4
          %s1078 = int_to_ptr.vmem [resolvable:$true] %s1077
          %1083 = dma.hbm_to_vmem [thread:$0]  %s1076, 16384, %s1078, %s1066, 128, 128, 8
        $region140: #{forward.1} parent=63 // pred_fallthru
          _
      $region64: #{forward.1} parent=5 // pred_fallthru
        _
      %p1084 = scmp.le.s32.totalorder 1, %s76
      %p1085 = scmp.lt.s32.totalorder %s76, 3
      %p1086 = pnand %p1084, %p1085
      %p1087 = pneg %p1086
      // Predicated region
      $region141: #{forward.1} parent=5 // pred_check
        _
      $region142: #{forward.1} parent=5 // pred_check_branch
        %1089 = sbr.rel (%p1086) target = $region144
      $region143: #{forward.1} parent=5 // pred_region
        %s1090 = ssub.s32 %s76, 1
        %s1091 = sand.u32 %s757, 1
        %s1092 = scalar_lea.sflag [#allocation4], %s1091
        %s1093 = sand.u32 %s757, 1
        %s1094 = smul.addr %s1093, 1024
        %s1095 = scalar_lea.vmem [#allocation3], %s1094
        // Predicated region
        $region145: #{forward.1} parent=143 // pred_check
          %p1096 = pneg %p770
        $region146: #{forward.1} parent=143 // pred_check_branch
          %1098 = sbr.rel (%p1096) target = $region148
        $region147: #{forward.1} parent=143 // pred_region
          %1100 = dma.done %s1092, 16384
        $region148: #{forward.1} parent=143 // pred_fallthru
          _
        %s1101 = sand.u32 %s81, 1
        %s1102 = scalar_lea.sflag [#allocation7], %s1101
        %s1103 = sand.u32 %s783, 1
        %s1104 = smul.addr %s1103, 1024
        %s1105 = scalar_lea.vmem [#allocation6], %s1104
        // Predicated region
        $region149: #{forward.1} parent=143 // pred_check
          %p1106 = pneg %p796
        $region150: #{forward.1} parent=143 // pred_check_branch
          %1108 = sbr.rel (%p1106) target = $region152
        $region151: #{forward.1} parent=143 // pred_region
          %1110 = dma.done %s1102, 16384
        $region152: #{forward.1} parent=143 // pred_fallthru
          _
        %s1111 = sand.u32 %s81, 1
        %s1112 = scalar_lea.sflag [#allocation7], %s1111
        %s1113 = sand.u32 %s809, 1
        %s1114 = smul.addr %s1113, 1024
        %s1115 = scalar_lea.vmem [#allocation8], %s1114
        // Predicated region
        $region153: #{forward.1} parent=143 // pred_check
          %p1116 = pneg %p822
        $region154: #{forward.1} parent=143 // pred_check_branch
          %1118 = sbr.rel (%p1116) target = $region156
        $region155: #{forward.1} parent=143 // pred_region
          %1120 = dma.done %s1112, 16384
        $region156: #{forward.1} parent=143 // pred_fallthru
          _
        %p1121 = pneg %p97
        %p1122 = pneg %p94
        %p1123 = pneg %p118
        %p1124 = pneg %p115
        %p1125 = pneg %p139
        %p1126 = pneg %p136
        %p1127 = pneg %p160
        %p1128 = pneg %p157
        %p1129 = pneg %p181
        %p1130 = pneg %p178
        %p1131 = pneg %p202
        %p1132 = pneg %p199
        %p1133 = pneg %p223
        %p1134 = pneg %p220
        %p1135 = pneg %p244
        %p1136 = pneg %p241
        %p1137 = pneg %p265
        %p1138 = pneg %p262
        %p1139 = pneg %p286
        %p1140 = pneg %p283
        %p1141 = pneg %p307
        %p1142 = pneg %p304
        %p1143 = pneg %p328
        %p1144 = pneg %p325
        %p1145 = scmp.lt.s32.totalorder %s81, 1
        %s1146 = scalar_select %p1145, %s81, 1
        %s1147 = scalar_lea.vmem %s25, %s1146
        %p1148 = pneg %p354
        %p1149 = pneg %p351
        %p1150 = scmp.lt.s32.totalorder %s81, 1
        %s1151 = scalar_select %p1150, %s81, 1
        %s1152 = smul.addr %s1151, 16
        %s1153 = smul.addr %s1152, 8
        %s1154 = scalar_lea.vmem %s27, %s1153
        %p1155 = pneg %p380
        %p1156 = pneg %p377
        %p1157 = scmp.lt.s32.totalorder %s81, 1
        %s1158 = scalar_select %p1157, %s81, 1
        %s1159 = smul.addr %s1158, 16
        %s1160 = smul.addr %s1159, 8
        %s1161 = scalar_lea.vmem %s29, %s1160
        %p1162 = pneg %p406
        %p1163 = pneg %p403
        %p1164 = scmp.lt.s32.totalorder %s81, 1
        %s1165 = scalar_select %p1164, %s81, 1
        %s1166 = smul.addr %s1165, 16
        %s1167 = smul.addr %s1166, 8
        %s1168 = scalar_lea.vmem %s31, %s1167
        %p1169 = pneg %p432
        %p1170 = pneg %p429
        %p1171 = scmp.lt.s32.totalorder %s81, 1
        %s1172 = scalar_select %p1171, %s81, 1
        %s1173 = smul.addr %s1172, 16
        %s1174 = smul.addr %s1173, 8
        %s1175 = scalar_lea.vmem %s33, %s1174
        %p1176 = pneg %p458
        %p1177 = pneg %p455
        %p1178 = scmp.lt.s32.totalorder %s81, 1
        %s1179 = scalar_select %p1178, %s81, 1
        %s1180 = smul.addr %s1179, 16
        %s1181 = smul.addr %s1180, 8
        %s1182 = scalar_lea.vmem %s35, %s1181
        %p1183 = pneg %p484
        %p1184 = pneg %p481
        %p1185 = scmp.lt.s32.totalorder %s81, 1
        %s1186 = scalar_select %p1185, %s81, 1
        %s1187 = smul.addr %s1186, 8
        %s1188 = smul.addr %s1187, 8
        %s1189 = scalar_lea.vmem %s37, %s1188
        %p1190 = pneg %p510
        %p1191 = pneg %p507
        %p1192 = scmp.lt.s32.totalorder %s81, 1
        %s1193 = scalar_select %p1192, %s81, 1
        %s1194 = smul.addr %s1193, 8
        %s1195 = smul.addr %s1194, 8
        %s1196 = scalar_lea.vmem %s39, %s1195
        %p1197 = pneg %p536
        %p1198 = pneg %p533
        %p1199 = scmp.lt.s32.totalorder %s81, 1
        %s1200 = scalar_select %p1199, %s81, 1
        %s1201 = smul.addr %s1200, 4
        %s1202 = smul.addr %s1201, 8
        %s1203 = scalar_lea.vmem %s41, %s1202
        %p1204 = pneg %p562
        %p1205 = pneg %p559
        %p1206 = scmp.lt.s32.totalorder %s81, 1
        %s1207 = scalar_select %p1206, %s81, 1
        %s1208 = smul.addr %s1207, 4
        %s1209 = smul.addr %s1208, 8
        %s1210 = scalar_lea.vmem %s43, %s1209
        %p1211 = pneg %p588
        %p1212 = pneg %p585
        %p1213 = scmp.lt.s32.totalorder %s81, 1
        %s1214 = scalar_select %p1213, %s81, 1
        %s1215 = smul.addr %s1214, 8
        %s1216 = smul.addr %s1215, 8
        %s1217 = scalar_lea.vmem %s45, %s1216
        %p1218 = pneg %p614
        %p1219 = pneg %p611
        %p1220 = scmp.lt.s32.totalorder %s81, 1
        %s1221 = scalar_select %p1220, %s81, 1
        %s1222 = scalar_lea.vmem %s47, %s1221
        %p1223 = pneg %p640
        %p1224 = pneg %p637
        %p1225 = scmp.lt.s32.totalorder %s81, 1
        %s1226 = scalar_select %p1225, %s81, 1
        %s1227 = scalar_lea.vmem %s49, %s1226
        %p1228 = pneg %p666
        %p1229 = pneg %p663
        %p1230 = scmp.lt.s32.totalorder %s81, 1
        %s1231 = scalar_select %p1230, %s81, 1
        %s1232 = smul.addr %s1231, 4
        %s1233 = smul.addr %s1232, 8
        %s1234 = scalar_lea.vmem %s51, %s1233
        %p1235 = pneg %p692
        %p1236 = pneg %p689
        %p1237 = scmp.lt.s32.totalorder %s81, 1
        %s1238 = scalar_select %p1237, %s81, 1
        %s1239 = scalar_lea.vmem %s53, %s1238
        %p1240 = pneg %p718
        %p1241 = pneg %p715
        %p1242 = scmp.lt.s32.totalorder %s81, 1
        %s1243 = scalar_select %p1242, %s81, 1
        %s1244 = smul.addr %s1243, 16
        %s1245 = smul.addr %s1244, 8
        %s1246 = scalar_lea.vmem %s55, %s1245
        %p1247 = pneg %p744
        %p1248 = pneg %p741
        %s1249 = sand.u32 %s757, 1
        %s1250 = scalar_lea.sflag [#allocation4], %s1249
        %s1251 = sand.u32 %s757, 1
        %s1252 = smul.addr %s1251, 1024
        %s1253 = scalar_lea.vmem [#allocation3], %s1252
        %p1254 = pneg %p770
        %p1255 = pneg %p767
        %s1256 = sand.u32 %s81, 1
        %s1257 = scalar_lea.sflag [#allocation7], %s1256
        %s1258 = sand.u32 %s783, 1
        %s1259 = smul.addr %s1258, 1024
        %s1260 = scalar_lea.vmem [#allocation6], %s1259
        %p1261 = pneg %p796
        %p1262 = pneg %p793
        %s1263 = sand.u32 %s81, 1
        %s1264 = scalar_lea.sflag [#allocation7], %s1263
        %s1265 = sand.u32 %s809, 1
        %s1266 = smul.addr %s1265, 1024
        %s1267 = scalar_lea.vmem [#allocation8], %s1266
        %p1268 = pneg %p822
        %p1269 = pneg %p819
        %p1270 = pneg %p843
        %p1271 = pneg %p840
        %p1272 = scmp.lt.s32.totalorder %s81, 1
        %s1273 = scalar_select %p1272, %s81, 1
        %s1274 = scalar_lea.vmem %s25, %s1273
        %p1275 = scmp.lt.s32.totalorder %s81, 1
        %s1276 = scalar_select %p1275, %s81, 1
        %s1277 = smul.addr %s1276, 16
        %s1278 = smul.addr %s1277, 8
        %s1279 = scalar_lea.vmem %s27, %s1278
        %p1280 = scmp.lt.s32.totalorder %s81, 1
        %s1281 = scalar_select %p1280, %s81, 1
        %s1282 = smul.addr %s1281, 16
        %s1283 = smul.addr %s1282, 8
        %s1284 = scalar_lea.vmem %s29, %s1283
        %p1285 = scmp.lt.s32.totalorder %s81, 1
        %s1286 = scalar_select %p1285, %s81, 1
        %s1287 = smul.addr %s1286, 16
        %s1288 = smul.addr %s1287, 8
        %s1289 = scalar_lea.vmem %s31, %s1288
        %p1290 = scmp.lt.s32.totalorder %s81, 1
        %s1291 = scalar_select %p1290, %s81, 1
        %s1292 = smul.addr %s1291, 16
        %s1293 = smul.addr %s1292, 8
        %s1294 = scalar_lea.vmem %s33, %s1293
        %p1295 = scmp.lt.s32.totalorder %s81, 1
        %s1296 = scalar_select %p1295, %s81, 1
        %s1297 = smul.addr %s1296, 16
        %s1298 = smul.addr %s1297, 8
        %s1299 = scalar_lea.vmem %s35, %s1298
        %p1300 = scmp.lt.s32.totalorder %s81, 1
        %s1301 = scalar_select %p1300, %s81, 1
        %s1302 = smul.addr %s1301, 8
        %s1303 = smul.addr %s1302, 8
        %s1304 = scalar_lea.vmem %s37, %s1303
        %p1305 = scmp.lt.s32.totalorder %s81, 1
        %s1306 = scalar_select %p1305, %s81, 1
        %s1307 = smul.addr %s1306, 8
        %s1308 = smul.addr %s1307, 8
        %s1309 = scalar_lea.vmem %s39, %s1308
        %p1310 = scmp.lt.s32.totalorder %s81, 1
        %s1311 = scalar_select %p1310, %s81, 1
        %s1312 = smul.addr %s1311, 4
        %s1313 = smul.addr %s1312, 8
        %s1314 = scalar_lea.vmem %s41, %s1313
        %p1315 = scmp.lt.s32.totalorder %s81, 1
        %s1316 = scalar_select %p1315, %s81, 1
        %s1317 = smul.addr %s1316, 4
        %s1318 = smul.addr %s1317, 8
        %s1319 = scalar_lea.vmem %s43, %s1318
        %p1320 = scmp.lt.s32.totalorder %s81, 1
        %s1321 = scalar_select %p1320, %s81, 1
        %s1322 = smul.addr %s1321, 8
        %s1323 = smul.addr %s1322, 8
        %s1324 = scalar_lea.vmem %s45, %s1323
        %p1325 = scmp.lt.s32.totalorder %s81, 1
        %s1326 = scalar_select %p1325, %s81, 1
        %s1327 = scalar_lea.vmem %s47, %s1326
        %p1328 = scmp.lt.s32.totalorder %s81, 1
        %s1329 = scalar_select %p1328, %s81, 1
        %s1330 = scalar_lea.vmem %s49, %s1329
        %p1331 = scmp.lt.s32.totalorder %s81, 1
        %s1332 = scalar_select %p1331, %s81, 1
        %s1333 = smul.addr %s1332, 4
        %s1334 = smul.addr %s1333, 8
        %s1335 = scalar_lea.vmem %s51, %s1334
        %p1336 = scmp.lt.s32.totalorder %s81, 1
        %s1337 = scalar_select %p1336, %s81, 1
        %s1338 = scalar_lea.vmem %s53, %s1337
        %p1339 = scmp.lt.s32.totalorder %s81, 1
        %s1340 = scalar_select %p1339, %s81, 1
        %s1341 = smul.addr %s1340, 16
        %s1342 = smul.addr %s1341, 8
        %s1343 = scalar_lea.vmem %s55, %s1342
        %p1344 = scmp.eq.s32.totalorder %s81, 0
        // Predicated region
        $region157: #{forward.1} parent=143 // pred_check
          %p1345 = pneg %p1344
        $region158: #{forward.1} parent=143 // pred_check_branch
          %1347 = sbr.rel (%p1345) target = $region160
        $region159: #{forward.1} parent=143 // pred_region
          %v1348 = vld [vmem:[%s1] sm:$0xff]
          %v1349 = vld [vmem:[%s1 + $0x8] sm:$0xff]
          %1350 = vst [vmem:[#allocation2] sm:$0xff] %v1348
          %1351 = vst [vmem:[#allocation2 + $0x8] sm:$0xff] %v1349
        $region160: #{forward.1} parent=143 // pred_fallthru
          _
        %v1352 = vld [vmem:[#allocation2] sm:$0xff]
        %v1353 = vld [vmem:[#allocation2 + $0x8] sm:$0xff]
        %v1354 = vmul.f32 %v1352, %v1352
        %v1355 = vmul.f32 %v1353, %v1353
        %1356 = vadd.xlane.f32.xlu0 %v1354
        %v1357 = vpop.xlane.xlu0 %1356
        %1358 = vadd.xlane.f32.xlu0 %v1355
        %v1359 = vpop.xlane.xlu0 %1358
        %v1360 = vrcp.pop 128.0
        %v1361 = vmul.f32 128.0, %v1360
        %v1362 = vsub.f32 1.0, %v1361
        %v1363 = vmul.f32 %v1360, %v1362
        %v1364 = vadd.f32 %v1360, %v1363
        %vm1365 = vweird.f32 %v1360
        %v1366 = vsel %vm1365, %v1360, %v1364
        %v1367 = vmul.f32 %v1357, %v1366
        %v1368 = vmul.f32 %v1359, %v1366
        %v1369 = vadd.f32 %v1367, 1e-05
        %v1370 = vadd.f32 %v1368, 1e-05
        %v1371 = vrsqrt.pop %v1369
        %v1372 = vmul.f32 %v1371, %v1369
        %v1373 = vmul.f32 %v1372, %v1371
        %v1374 = vmul.f32 0.5, %v1373
        %v1375 = vsub.f32 1.5, %v1374
        %v1376 = vmul.f32 %v1371, %v1375
        %vm1377 = vweird.f32 %v1369
        %vm1378 = vweird.f32 %v1371
        %vm1379 = vmor %vm1377, %vm1378
        %v1380 = vsel %vm1379, %v1371, %v1376
        %v1381 = vrsqrt.pop %v1370
        %v1382 = vmul.f32 %v1381, %v1370
        %v1383 = vmul.f32 %v1382, %v1381
        %v1384 = vmul.f32 0.5, %v1383
        %v1385 = vsub.f32 1.5, %v1384
        %v1386 = vmul.f32 %v1381, %v1385
        %vm1387 = vweird.f32 %v1370
        %vm1388 = vweird.f32 %v1381
        %vm1389 = vmor %vm1387, %vm1388
        %v1390 = vsel %vm1389, %v1381, %v1386
        %v1391 = vmul.f32 %v1352, %v1380
        %v1392 = vmul.f32 %v1353, %v1390
        %v1393 = vld [vmem:[%s1274] sm:$0x1]
        %v1395 = vperm.slane %v1393, 0
        %v1397 = vmul.f32 %v1391, %v1395
        %v1398 = vmul.f32 %v1392, %v1395
        %v1399 = vld [vmem:[%s1279] sm:$0xff]
        %v1400 = vld [vmem:[%s1279 + $0x8] sm:$0xff]
        %v1401 = vld [vmem:[%s1279 + $0x10] sm:$0xff]
        %v1402 = vld [vmem:[%s1279 + $0x18] sm:$0xff]
        %v1403 = vld [vmem:[%s1279 + $0x20] sm:$0xff]
        %v1404 = vld [vmem:[%s1279 + $0x28] sm:$0xff]
        %v1405 = vld [vmem:[%s1279 + $0x30] sm:$0xff]
        %v1406 = vld [vmem:[%s1279 + $0x38] sm:$0xff]
        %v1407 = vld [vmem:[%s1279 + $0x40] sm:$0xff]
        %v1408 = vld [vmem:[%s1279 + $0x48] sm:$0xff]
        %v1409 = vld [vmem:[%s1279 + $0x50] sm:$0xff]
        %v1410 = vld [vmem:[%s1279 + $0x58] sm:$0xff]
        %v1411 = vld [vmem:[%s1279 + $0x60] sm:$0xff]
        %v1412 = vld [vmem:[%s1279 + $0x68] sm:$0xff]
        %v1413 = vld [vmem:[%s1279 + $0x70] sm:$0xff]
        %v1414 = vld [vmem:[%s1279 + $0x78] sm:$0xff]
        %1415 = vmatpush.msra.mxu0 %v1414
        %1416 = vmatpush.msra.mxu0 %v1413
        %1417 = vmatpush.msra.mxu0 %v1412
        %1418 = vmatpush.msra.mxu0 %v1411
        %1419 = vmatpush.msra.mxu0 %v1410
        %1420 = vmatpush.msra.mxu0 %v1409
        %1421 = vmatpush.msra.mxu0 %v1408
        %1422 = vmatpush.msra.mxu0 %v1407
        %1423 = vmatpush.msra.mxu0 %v1406
        %1424 = vmatpush.msra.mxu0 %v1405
        %1425 = vmatpush.msra.mxu0 %v1404
        %1426 = vmatpush.msra.mxu0 %v1403
        %1427 = vmatpush.msra.mxu0 %v1402
        %1428 = vmatpush.msra.mxu0 %v1401
        %1429 = vmatpush.msra.mxu0 %v1400
        %1430 = vmatpush.msra.mxu0 %v1399
        %1431 = vmatmul.f32.gmra.mxu0 %v1397
        %v1432 = vpop.f32.mrf.mxu0
        %v1433 = vadd.f32 0.0, %v1432
        %1434 = vmatmul.f32.gmra.mxu0 %v1398
        %v1435 = vpop.f32.mrf.mxu0
        %v1436 = vadd.f32 0.0, %v1435
        %1437 = vdwg.mxu0
        %v1438 = vld [vmem:[%s1284] sm:$0xff]
        %v1439 = vld [vmem:[%s1284 + $0x8] sm:$0xff]
        %v1440 = vld [vmem:[%s1284 + $0x10] sm:$0xff]
        %v1441 = vld [vmem:[%s1284 + $0x18] sm:$0xff]
        %v1442 = vld [vmem:[%s1284 + $0x20] sm:$0xff]
        %v1443 = vld [vmem:[%s1284 + $0x28] sm:$0xff]
        %v1444 = vld [vmem:[%s1284 + $0x30] sm:$0xff]
        %v1445 = vld [vmem:[%s1284 + $0x38] sm:$0xff]
        %v1446 = vld [vmem:[%s1284 + $0x40] sm:$0xff]
        %v1447 = vld [vmem:[%s1284 + $0x48] sm:$0xff]
        %v1448 = vld [vmem:[%s1284 + $0x50] sm:$0xff]
        %v1449 = vld [vmem:[%s1284 + $0x58] sm:$0xff]
        %v1450 = vld [vmem:[%s1284 + $0x60] sm:$0xff]
        %v1451 = vld [vmem:[%s1284 + $0x68] sm:$0xff]
        %v1452 = vld [vmem:[%s1284 + $0x70] sm:$0xff]
        %v1453 = vld [vmem:[%s1284 + $0x78] sm:$0xff]
        %1454 = vmatpush.msra.mxu0 %v1453
        %1455 = vmatpush.msra.mxu0 %v1452
        %1456 = vmatpush.msra.mxu0 %v1451
        %1457 = vmatpush.msra.mxu0 %v1450
        %1458 = vmatpush.msra.mxu0 %v1449
        %1459 = vmatpush.msra.mxu0 %v1448
        %1460 = vmatpush.msra.mxu0 %v1447
        %1461 = vmatpush.msra.mxu0 %v1446
        %1462 = vmatpush.msra.mxu0 %v1445
        %1463 = vmatpush.msra.mxu0 %v1444
        %1464 = vmatpush.msra.mxu0 %v1443
        %1465 = vmatpush.msra.mxu0 %v1442
        %1466 = vmatpush.msra.mxu0 %v1441
        %1467 = vmatpush.msra.mxu0 %v1440
        %1468 = vmatpush.msra.mxu0 %v1439
        %1469 = vmatpush.msra.mxu0 %v1438
        %1470 = vmatmul.f32.gmra.mxu0 %v1397
        %v1471 = vpop.f32.mrf.mxu0
        %v1472 = vadd.f32 0.0, %v1471
        %1473 = vmatmul.f32.gmra.mxu0 %v1398
        %v1474 = vpop.f32.mrf.mxu0
        %v1475 = vadd.f32 0.0, %v1474
        %1476 = vdwg.mxu0
        %v1477 = vld [vmem:[%s1289] sm:$0xff]
        %v1478 = vld [vmem:[%s1289 + $0x8] sm:$0xff]
        %v1479 = vld [vmem:[%s1289 + $0x10] sm:$0xff]
        %v1480 = vld [vmem:[%s1289 + $0x18] sm:$0xff]
        %v1481 = vld [vmem:[%s1289 + $0x20] sm:$0xff]
        %v1482 = vld [vmem:[%s1289 + $0x28] sm:$0xff]
        %v1483 = vld [vmem:[%s1289 + $0x30] sm:$0xff]
        %v1484 = vld [vmem:[%s1289 + $0x38] sm:$0xff]
        %v1485 = vld [vmem:[%s1289 + $0x40] sm:$0xff]
        %v1486 = vld [vmem:[%s1289 + $0x48] sm:$0xff]
        %v1487 = vld [vmem:[%s1289 + $0x50] sm:$0xff]
        %v1488 = vld [vmem:[%s1289 + $0x58] sm:$0xff]
        %v1489 = vld [vmem:[%s1289 + $0x60] sm:$0xff]
        %v1490 = vld [vmem:[%s1289 + $0x68] sm:$0xff]
        %v1491 = vld [vmem:[%s1289 + $0x70] sm:$0xff]
        %v1492 = vld [vmem:[%s1289 + $0x78] sm:$0xff]
        %1493 = vmatpush.msra.mxu0 %v1492
        %1494 = vmatpush.msra.mxu0 %v1491
        %1495 = vmatpush.msra.mxu0 %v1490
        %1496 = vmatpush.msra.mxu0 %v1489
        %1497 = vmatpush.msra.mxu0 %v1488
        %1498 = vmatpush.msra.mxu0 %v1487
        %1499 = vmatpush.msra.mxu0 %v1486
        %1500 = vmatpush.msra.mxu0 %v1485
        %1501 = vmatpush.msra.mxu0 %v1484
        %1502 = vmatpush.msra.mxu0 %v1483
        %1503 = vmatpush.msra.mxu0 %v1482
        %1504 = vmatpush.msra.mxu0 %v1481
        %1505 = vmatpush.msra.mxu0 %v1480
        %1506 = vmatpush.msra.mxu0 %v1479
        %1507 = vmatpush.msra.mxu0 %v1478
        %1508 = vmatpush.msra.mxu0 %v1477
        %1509 = vmatmul.f32.gmra.mxu0 %v1397
        %v1510 = vpop.f32.mrf.mxu0
        %v1511 = vadd.f32 0.0, %v1510
        %1512 = vmatmul.f32.gmra.mxu0 %v1398
        %v1513 = vpop.f32.mrf.mxu0
        %v1514 = vadd.f32 0.0, %v1513
        %1515 = vdwg.mxu0
        %v1516 = vld [vmem:[%s1294] sm:$0xff]
        %v1517 = vld [vmem:[%s1294 + $0x8] sm:$0xff]
        %v1518 = vld [vmem:[%s1294 + $0x10] sm:$0xff]
        %v1519 = vld [vmem:[%s1294 + $0x18] sm:$0xff]
        %v1520 = vld [vmem:[%s1294 + $0x20] sm:$0xff]
        %v1521 = vld [vmem:[%s1294 + $0x28] sm:$0xff]
        %v1522 = vld [vmem:[%s1294 + $0x30] sm:$0xff]
        %v1523 = vld [vmem:[%s1294 + $0x38] sm:$0xff]
        %v1524 = vld [vmem:[%s1294 + $0x40] sm:$0xff]
        %v1525 = vld [vmem:[%s1294 + $0x48] sm:$0xff]
        %v1526 = vld [vmem:[%s1294 + $0x50] sm:$0xff]
        %v1527 = vld [vmem:[%s1294 + $0x58] sm:$0xff]
        %v1528 = vld [vmem:[%s1294 + $0x60] sm:$0xff]
        %v1529 = vld [vmem:[%s1294 + $0x68] sm:$0xff]
        %v1530 = vld [vmem:[%s1294 + $0x70] sm:$0xff]
        %v1531 = vld [vmem:[%s1294 + $0x78] sm:$0xff]
        %1532 = vmatpush.msra.mxu0 %v1531
        %1533 = vmatpush.msra.mxu0 %v1530
        %1534 = vmatpush.msra.mxu0 %v1529
        %1535 = vmatpush.msra.mxu0 %v1528
        %1536 = vmatpush.msra.mxu0 %v1527
        %1537 = vmatpush.msra.mxu0 %v1526
        %1538 = vmatpush.msra.mxu0 %v1525
        %1539 = vmatpush.msra.mxu0 %v1524
        %1540 = vmatpush.msra.mxu0 %v1523
        %1541 = vmatpush.msra.mxu0 %v1522
        %1542 = vmatpush.msra.mxu0 %v1521
        %1543 = vmatpush.msra.mxu0 %v1520
        %1544 = vmatpush.msra.mxu0 %v1519
        %1545 = vmatpush.msra.mxu0 %v1518
        %1546 = vmatpush.msra.mxu0 %v1517
        %1547 = vmatpush.msra.mxu0 %v1516
        %1548 = vmatmul.f32.gmra.mxu0 %v1397
        %v1549 = vpop.f32.mrf.mxu0
        %v1550 = vadd.f32 0.0, %v1549
        %1551 = vmatmul.f32.gmra.mxu0 %v1398
        %v1552 = vpop.f32.mrf.mxu0
        %v1553 = vadd.f32 0.0, %v1552
        %1554 = vdwg.mxu0
        %v1555 = vld [vmem:[%s1299] sm:$0xff]
        %v1556 = vld [vmem:[%s1299 + $0x8] sm:$0xff]
        %v1557 = vld [vmem:[%s1299 + $0x10] sm:$0xff]
        %v1558 = vld [vmem:[%s1299 + $0x18] sm:$0xff]
        %v1559 = vld [vmem:[%s1299 + $0x20] sm:$0xff]
        %v1560 = vld [vmem:[%s1299 + $0x28] sm:$0xff]
        %v1561 = vld [vmem:[%s1299 + $0x30] sm:$0xff]
        %v1562 = vld [vmem:[%s1299 + $0x38] sm:$0xff]
        %v1563 = vld [vmem:[%s1299 + $0x40] sm:$0xff]
        %v1564 = vld [vmem:[%s1299 + $0x48] sm:$0xff]
        %v1565 = vld [vmem:[%s1299 + $0x50] sm:$0xff]
        %v1566 = vld [vmem:[%s1299 + $0x58] sm:$0xff]
        %v1567 = vld [vmem:[%s1299 + $0x60] sm:$0xff]
        %v1568 = vld [vmem:[%s1299 + $0x68] sm:$0xff]
        %v1569 = vld [vmem:[%s1299 + $0x70] sm:$0xff]
        %v1570 = vld [vmem:[%s1299 + $0x78] sm:$0xff]
        %1571 = vmatpush.msra.mxu0 %v1570
        %1572 = vmatpush.msra.mxu0 %v1569
        %1573 = vmatpush.msra.mxu0 %v1568
        %1574 = vmatpush.msra.mxu0 %v1567
        %1575 = vmatpush.msra.mxu0 %v1566
        %1576 = vmatpush.msra.mxu0 %v1565
        %1577 = vmatpush.msra.mxu0 %v1564
        %1578 = vmatpush.msra.mxu0 %v1563
        %1579 = vmatpush.msra.mxu0 %v1562
        %1580 = vmatpush.msra.mxu0 %v1561
        %1581 = vmatpush.msra.mxu0 %v1560
        %1582 = vmatpush.msra.mxu0 %v1559
        %1583 = vmatpush.msra.mxu0 %v1558
        %1584 = vmatpush.msra.mxu0 %v1557
        %1585 = vmatpush.msra.mxu0 %v1556
        %1586 = vmatpush.msra.mxu0 %v1555
        %1587 = vmatmul.f32.gmra.mxu0 %v1397
        %v1588 = vpop.f32.mrf.mxu0
        %v1589 = vadd.f32 0.0, %v1588
        %1590 = vmatmul.f32.gmra.mxu0 %v1398
        %v1591 = vpop.f32.mrf.mxu0
        %v1592 = vadd.f32 0.0, %v1591
        %1593 = vdwg.mxu0
        %v1594 = vld [vmem:[%s3] sm:$0xff]
        %v1595 = vld [vmem:[%s3 + $0x8] sm:$0xff]
        %v1596 = vld [vmem:[%s5] sm:$0xff]
        %v1597 = vld [vmem:[%s5 + $0x8] sm:$0xff]
        %v1598 = vld [vmem:[%s7] sm:$0xff]
        %v1599 = vld [vmem:[%s7 + $0x8] sm:$0xff]
        %v1600 = vld [vmem:[%s9] sm:$0xff]
        %v1601 = vld [vmem:[%s9 + $0x8] sm:$0xff]
        %v1602 = vmul.f32 %v1433, %v1594
        %v1603 = vmul.f32 %v1436, %v1595
        %v1604 = vmul.f32 %v1472, %v1596
        %v1605 = vmul.f32 %v1475, %v1597
        %v1606 = vsub.f32 %v1602, %v1604
        %v1607 = vsub.f32 %v1603, %v1605
        %v1608 = vmul.f32 %v1472, %v1594
        %v1609 = vmul.f32 %v1475, %v1595
        %v1610 = vmul.f32 %v1433, %v1596
        %v1611 = vmul.f32 %v1436, %v1597
        %v1612 = vadd.f32 %v1608, %v1610
        %v1613 = vadd.f32 %v1609, %v1611
        %v1614 = vmul.f32 %v1511, %v1598
        %v1615 = vmul.f32 %v1514, %v1599
        %v1616 = vmul.f32 %v1550, %v1600
        %v1617 = vmul.f32 %v1553, %v1601
        %v1618 = vsub.f32 %v1614, %v1616
        %v1619 = vsub.f32 %v1615, %v1617
        %v1620 = vmul.f32 %v1550, %v1598
        %v1621 = vmul.f32 %v1553, %v1599
        %v1622 = vmul.f32 %v1511, %v1600
        %v1623 = vmul.f32 %v1514, %v1601
        %v1624 = vadd.f32 %v1620, %v1622
        %v1625 = vadd.f32 %v1621, %v1623
        %v1626 = vld [vmem:[%s1304] sm:$0xff]
        %v1627 = vld [vmem:[%s1304 + $0x8] sm:$0xff]
        %v1628 = vld [vmem:[%s1304 + $0x10] sm:$0xff]
        %v1629 = vld [vmem:[%s1304 + $0x18] sm:$0xff]
        %v1630 = vld [vmem:[%s1304 + $0x20] sm:$0xff]
        %v1631 = vld [vmem:[%s1304 + $0x28] sm:$0xff]
        %v1632 = vld [vmem:[%s1304 + $0x30] sm:$0xff]
        %v1633 = vld [vmem:[%s1304 + $0x38] sm:$0xff]
        %v1634 = vld [vmem:[%s1309] sm:$0xff]
        %v1635 = vld [vmem:[%s1309 + $0x8] sm:$0xff]
        %v1636 = vld [vmem:[%s1309 + $0x10] sm:$0xff]
        %v1637 = vld [vmem:[%s1309 + $0x18] sm:$0xff]
        %v1638 = vld [vmem:[%s1309 + $0x20] sm:$0xff]
        %v1639 = vld [vmem:[%s1309 + $0x28] sm:$0xff]
        %v1640 = vld [vmem:[%s1309 + $0x30] sm:$0xff]
        %v1641 = vld [vmem:[%s1309 + $0x38] sm:$0xff]
        %vm1642 = vcmask 523264
        %v1644 = vsel %vm1642, %v1612, 0
        %v1647 = vsel %vm1642, %v1613, 0
        %1649 = vmatpush.msra.mxu0 0.0
        %1650 = vmatpush.msra.mxu0 0.0
        %1651 = vmatpush.msra.mxu0 0.0
        %1652 = vmatpush.msra.mxu0 0.0
        %1653 = vmatpush.msra.mxu0 0.0
        %1654 = vmatpush.msra.mxu0 0.0
        %1655 = vmatpush.msra.mxu0 0.0
        %1656 = vmatpush.msra.mxu0 0.0
        %1657 = vmatpush.msra.mxu0 %v1641
        %1658 = vmatpush.msra.mxu0 %v1640
        %1659 = vmatpush.msra.mxu0 %v1639
        %1660 = vmatpush.msra.mxu0 %v1638
        %1661 = vmatpush.msra.mxu0 %v1637
        %1662 = vmatpush.msra.mxu0 %v1636
        %1663 = vmatpush.msra.mxu0 %v1635
        %1664 = vmatpush.msra.mxu0 %v1634
        %1665 = vmatmul.f32.gmra.mxu0 %v1644
        %v1666 = vpop.f32.mrf.mxu0
        %v1667 = vadd.f32 0.0, %v1666
        %1668 = vmatmul.f32.gmra.mxu0 %v1647
        %v1669 = vpop.f32.mrf.mxu0
        %v1670 = vadd.f32 0.0, %v1669
        %1671 = vdwg.mxu0
        %v1673 = vsel %vm1642, %v1606, 0
        %v1676 = vsel %vm1642, %v1607, 0
        %1678 = vmatpush.msra.mxu0 0.0
        %1679 = vmatpush.msra.mxu0 0.0
        %1680 = vmatpush.msra.mxu0 0.0
        %1681 = vmatpush.msra.mxu0 0.0
        %1682 = vmatpush.msra.mxu0 0.0
        %1683 = vmatpush.msra.mxu0 0.0
        %1684 = vmatpush.msra.mxu0 0.0
        %1685 = vmatpush.msra.mxu0 0.0
        %1686 = vmatpush.msra.mxu0 %v1633
        %1687 = vmatpush.msra.mxu0 %v1632
        %1688 = vmatpush.msra.mxu0 %v1631
        %1689 = vmatpush.msra.mxu0 %v1630
        %1690 = vmatpush.msra.mxu0 %v1629
        %1691 = vmatpush.msra.mxu0 %v1628
        %1692 = vmatpush.msra.mxu0 %v1627
        %1693 = vmatpush.msra.mxu0 %v1626
        %1694 = vmatmul.f32.gmra.mxu0 %v1673
        %v1695 = vpop.f32.mrf.mxu0
        %v1696 = vadd.f32 %v1667, %v1695
        %1697 = vmatmul.f32.gmra.mxu0 %v1676
        %v1698 = vpop.f32.mrf.mxu0
        %v1699 = vadd.f32 %v1670, %v1698
        %1700 = vdwg.mxu0
        %v1701 = vld [vmem:[%s1314] sm:$0xff]
        %v1702 = vld [vmem:[%s1314 + $0x8] sm:$0xff]
        %v1703 = vld [vmem:[%s1314 + $0x10] sm:$0xff]
        %v1704 = vld [vmem:[%s1314 + $0x18] sm:$0xff]
        %v1705 = vld [vmem:[%s1319] sm:$0xff]
        %v1706 = vld [vmem:[%s1319 + $0x8] sm:$0xff]
        %v1707 = vld [vmem:[%s1319 + $0x10] sm:$0xff]
        %v1708 = vld [vmem:[%s1319 + $0x18] sm:$0xff]
        %vm1709 = vcmask 261120
        %v1711 = vsel %vm1709, %v1624, 0
        %v1714 = vsel %vm1709, %v1625, 0
        %1716 = vmatpush.msra.mxu0 0.0
        %1717 = vmatpush.msra.mxu0 0.0
        %1718 = vmatpush.msra.mxu0 0.0
        %1719 = vmatpush.msra.mxu0 0.0
        %1720 = vmatpush.msra.mxu0 0.0
        %1721 = vmatpush.msra.mxu0 0.0
        %1722 = vmatpush.msra.mxu0 0.0
        %1723 = vmatpush.msra.mxu0 0.0
        %1724 = vmatpush.msra.mxu0 0.0
        %1725 = vmatpush.msra.mxu0 0.0
        %1726 = vmatpush.msra.mxu0 0.0
        %1727 = vmatpush.msra.mxu0 0.0
        %1728 = vmatpush.msra.mxu0 %v1708
        %1729 = vmatpush.msra.mxu0 %v1707
        %1730 = vmatpush.msra.mxu0 %v1706
        %1731 = vmatpush.msra.mxu0 %v1705
        %1732 = vmatmul.f32.gmra.mxu0 %v1711
        %v1733 = vpop.f32.mrf.mxu0
        %v1734 = vadd.f32 0.0, %v1733
        %1735 = vmatmul.f32.gmra.mxu0 %v1714
        %v1736 = vpop.f32.mrf.mxu0
        %v1737 = vadd.f32 0.0, %v1736
        %1738 = vdwg.mxu0
        %v1740 = vsel %vm1709, %v1618, 0
        %v1743 = vsel %vm1709, %v1619, 0
        %1745 = vmatpush.msra.mxu0 0.0
        %1746 = vmatpush.msra.mxu0 0.0
        %1747 = vmatpush.msra.mxu0 0.0
        %1748 = vmatpush.msra.mxu0 0.0
        %1749 = vmatpush.msra.mxu0 0.0
        %1750 = vmatpush.msra.mxu0 0.0
        %1751 = vmatpush.msra.mxu0 0.0
        %1752 = vmatpush.msra.mxu0 0.0
        %1753 = vmatpush.msra.mxu0 0.0
        %1754 = vmatpush.msra.mxu0 0.0
        %1755 = vmatpush.msra.mxu0 0.0
        %1756 = vmatpush.msra.mxu0 0.0
        %1757 = vmatpush.msra.mxu0 %v1704
        %1758 = vmatpush.msra.mxu0 %v1703
        %1759 = vmatpush.msra.mxu0 %v1702
        %1760 = vmatpush.msra.mxu0 %v1701
        %1761 = vmatmul.f32.gmra.mxu0 %v1740
        %v1762 = vpop.f32.mrf.mxu0
        %v1763 = vadd.f32 %v1734, %v1762
        %1764 = vmatmul.f32.gmra.mxu0 %v1743
        %v1765 = vpop.f32.mrf.mxu0
        %v1766 = vadd.f32 %v1737, %v1765
        %1767 = vdwg.mxu0
        %v1768 = vld [vmem:[%s1324] sm:$0xff]
        %v1769 = vld [vmem:[%s1324 + $0x8] sm:$0xff]
        %v1770 = vld [vmem:[%s1324 + $0x10] sm:$0xff]
        %v1771 = vld [vmem:[%s1324 + $0x18] sm:$0xff]
        %v1772 = vld [vmem:[%s1324 + $0x20] sm:$0xff]
        %v1773 = vld [vmem:[%s1324 + $0x28] sm:$0xff]
        %v1774 = vld [vmem:[%s1324 + $0x30] sm:$0xff]
        %v1775 = vld [vmem:[%s1324 + $0x38] sm:$0xff]
        %v1777 = vsel %vm1642, %v1589, 0
        %v1780 = vsel %vm1642, %v1592, 0
        %1782 = vmatpush.msra.mxu0 0.0
        %1783 = vmatpush.msra.mxu0 0.0
        %1784 = vmatpush.msra.mxu0 0.0
        %1785 = vmatpush.msra.mxu0 0.0
        %1786 = vmatpush.msra.mxu0 0.0
        %1787 = vmatpush.msra.mxu0 0.0
        %1788 = vmatpush.msra.mxu0 0.0
        %1789 = vmatpush.msra.mxu0 0.0
        %1790 = vmatpush.msra.mxu0 %v1775
        %1791 = vmatpush.msra.mxu0 %v1774
        %1792 = vmatpush.msra.mxu0 %v1773
        %1793 = vmatpush.msra.mxu0 %v1772
        %1794 = vmatpush.msra.mxu0 %v1771
        %1795 = vmatpush.msra.mxu0 %v1770
        %1796 = vmatpush.msra.mxu0 %v1769
        %1797 = vmatpush.msra.mxu0 %v1768
        %1798 = vmatmul.f32.gmra.mxu0 %v1777
        %v1799 = vpop.f32.mrf.mxu0
        %v1800 = vadd.f32 0.0, %v1799
        %1801 = vmatmul.f32.gmra.mxu0 %v1780
        %v1802 = vpop.f32.mrf.mxu0
        %v1803 = vadd.f32 0.0, %v1802
        %1804 = vdwg.mxu0
        %v1805 = vld [vmem:[%s1327] sm:$0x1]
        %v1806 = vld [vmem:[%s1330] sm:$0x1]
        %v1807 = vmul.f32 %v1696, %v1696
        %v1808 = vmul.f32 %v1699, %v1699
        %v1809 = vld [vmem:[%s15] sm:$0xff]
        %v1810 = vld [vmem:[%s15 + $0x8] sm:$0xff]
        %v1811 = vld [vmem:[%s15 + $0x10] sm:$0xff]
        %v1812 = vld [vmem:[%s15 + $0x18] sm:$0xff]
        %v1814 = vsel %vm1709, %v1807, 0
        %v1817 = vsel %vm1709, %v1808, 0
        %1819 = vmatpush.msra.mxu0 0.0
        %1820 = vmatpush.msra.mxu0 0.0
        %1821 = vmatpush.msra.mxu0 0.0
        %1822 = vmatpush.msra.mxu0 0.0
        %1823 = vmatpush.msra.mxu0 0.0
        %1824 = vmatpush.msra.mxu0 0.0
        %1825 = vmatpush.msra.mxu0 0.0
        %1826 = vmatpush.msra.mxu0 0.0
        %1827 = vmatpush.msra.mxu0 0.0
        %1828 = vmatpush.msra.mxu0 0.0
        %1829 = vmatpush.msra.mxu0 0.0
        %1830 = vmatpush.msra.mxu0 0.0
        %1831 = vmatpush.msra.mxu0 %v1812
        %1832 = vmatpush.msra.mxu0 %v1811
        %1833 = vmatpush.msra.mxu0 %v1810
        %1834 = vmatpush.msra.mxu0 %v1809
        %1835 = vmatmul.f32.gmra.mxu0 %v1814
        %v1836 = vpop.f32.mrf.mxu0
        %v1837 = vadd.f32 1e-05, %v1836
        %1838 = vmatmul.f32.gmra.mxu0 %v1817
        %v1839 = vpop.f32.mrf.mxu0
        %v1840 = vadd.f32 1e-05, %v1839
        %1841 = vdwg.mxu0
        %v1842 = vrsqrt.pop %v1837
        %v1843 = vmul.f32 %v1842, %v1837
        %v1844 = vmul.f32 %v1843, %v1842
        %v1845 = vmul.f32 0.5, %v1844
        %v1846 = vsub.f32 1.5, %v1845
        %v1847 = vmul.f32 %v1842, %v1846
        %vm1848 = vweird.f32 %v1837
        %vm1849 = vweird.f32 %v1842
        %vm1850 = vmor %vm1848, %vm1849
        %v1851 = vsel %vm1850, %v1842, %v1847
        %v1852 = vrsqrt.pop %v1840
        %v1853 = vmul.f32 %v1852, %v1840
        %v1854 = vmul.f32 %v1853, %v1852
        %v1855 = vmul.f32 0.5, %v1854
        %v1856 = vsub.f32 1.5, %v1855
        %v1857 = vmul.f32 %v1852, %v1856
        %vm1858 = vweird.f32 %v1840
        %vm1859 = vweird.f32 %v1852
        %vm1860 = vmor %vm1858, %vm1859
        %v1861 = vsel %vm1860, %v1852, %v1857
        %v1862 = vmul.f32 %v1696, %v1851
        %v1863 = vmul.f32 %v1699, %v1861
        %v1865 = vperm.slane %v1805, 0
        %v1867 = vmul.f32 %v1862, %v1865
        %v1868 = vmul.f32 %v1863, %v1865
        %v1869 = vmul.f32 %v1763, %v1763
        %v1870 = vmul.f32 %v1766, %v1766
        %v1871 = vld [vmem:[%s17] sm:$0xff]
        %v1872 = vld [vmem:[%s17 + $0x8] sm:$0xff]
        %vm1873 = vcmask 130048
        %v1875 = vsel %vm1873, %v1869, 0
        %v1878 = vsel %vm1873, %v1870, 0
        %1880 = vmatpush.msra.mxu0 0.0
        %1881 = vmatpush.msra.mxu0 0.0
        %1882 = vmatpush.msra.mxu0 0.0
        %1883 = vmatpush.msra.mxu0 0.0
        %1884 = vmatpush.msra.mxu0 0.0
        %1885 = vmatpush.msra.mxu0 0.0
        %1886 = vmatpush.msra.mxu0 0.0
        %1887 = vmatpush.msra.mxu0 0.0
        %1888 = vmatpush.msra.mxu0 0.0
        %1889 = vmatpush.msra.mxu0 0.0
        %1890 = vmatpush.msra.mxu0 0.0
        %1891 = vmatpush.msra.mxu0 0.0
        %1892 = vmatpush.msra.mxu0 0.0
        %1893 = vmatpush.msra.mxu0 0.0
        %1894 = vmatpush.msra.mxu0 %v1872
        %1895 = vmatpush.msra.mxu0 %v1871
        %1896 = vmatmul.f32.gmra.mxu0 %v1875
        %v1897 = vpop.f32.mrf.mxu0
        %v1898 = vadd.f32 1e-05, %v1897
        %1899 = vmatmul.f32.gmra.mxu0 %v1878
        %v1900 = vpop.f32.mrf.mxu0
        %v1901 = vadd.f32 1e-05, %v1900
        %1902 = vdwg.mxu0
        %v1903 = vrsqrt.pop %v1898
        %v1904 = vmul.f32 %v1903, %v1898
        %v1905 = vmul.f32 %v1904, %v1903
        %v1906 = vmul.f32 0.5, %v1905
        %v1907 = vsub.f32 1.5, %v1906
        %v1908 = vmul.f32 %v1903, %v1907
        %vm1909 = vweird.f32 %v1898
        %vm1910 = vweird.f32 %v1903
        %vm1911 = vmor %vm1909, %vm1910
        %v1912 = vsel %vm1911, %v1903, %v1908
        %v1913 = vrsqrt.pop %v1901
        %v1914 = vmul.f32 %v1913, %v1901
        %v1915 = vmul.f32 %v1914, %v1913
        %v1916 = vmul.f32 0.5, %v1915
        %v1917 = vsub.f32 1.5, %v1916
        %v1918 = vmul.f32 %v1913, %v1917
        %vm1919 = vweird.f32 %v1901
        %vm1920 = vweird.f32 %v1913
        %vm1921 = vmor %vm1919, %vm1920
        %v1922 = vsel %vm1921, %v1913, %v1918
        %v1923 = vmul.f32 %v1763, %v1912
        %v1924 = vmul.f32 %v1766, %v1922
        %v1926 = vperm.slane %v1806, 0
        %v1928 = vmul.f32 %v1923, %v1926
        %v1929 = vmul.f32 %v1924, %v1926
        %v1930 = vmul.f32 %v1800, %v1800
        %v1931 = vmul.f32 %v1803, %v1803
        %v1933 = vsel %vm1873, %v1930, 0
        %v1936 = vsel %vm1873, %v1931, 0
        %1938 = vmatpush.msra.mxu0 0.0
        %1939 = vmatpush.msra.mxu0 0.0
        %1940 = vmatpush.msra.mxu0 0.0
        %1941 = vmatpush.msra.mxu0 0.0
        %1942 = vmatpush.msra.mxu0 0.0
        %1943 = vmatpush.msra.mxu0 0.0
        %1944 = vmatpush.msra.mxu0 0.0
        %1945 = vmatpush.msra.mxu0 0.0
        %1946 = vmatpush.msra.mxu0 0.0
        %1947 = vmatpush.msra.mxu0 0.0
        %1948 = vmatpush.msra.mxu0 0.0
        %1949 = vmatpush.msra.mxu0 0.0
        %1950 = vmatpush.msra.mxu0 0.0
        %1951 = vmatpush.msra.mxu0 0.0
        %1952 = vmatpush.msra.mxu0 %v1872
        %1953 = vmatpush.msra.mxu0 %v1871
        %1954 = vmatmul.f32.gmra.mxu0 %v1933
        %v1955 = vpop.f32.mrf.mxu0
        %v1956 = vadd.f32 1e-05, %v1955
        %1957 = vmatmul.f32.gmra.mxu0 %v1936
        %v1958 = vpop.f32.mrf.mxu0
        %v1959 = vadd.f32 1e-05, %v1958
        %1960 = vdwg.mxu0
        %v1961 = vrsqrt.pop %v1956
        %v1962 = vmul.f32 %v1961, %v1956
        %v1963 = vmul.f32 %v1962, %v1961
        %v1964 = vmul.f32 0.5, %v1963
        %v1965 = vsub.f32 1.5, %v1964
        %v1966 = vmul.f32 %v1961, %v1965
        %vm1967 = vweird.f32 %v1956
        %vm1968 = vweird.f32 %v1961
        %vm1969 = vmor %vm1967, %vm1968
        %v1970 = vsel %vm1969, %v1961, %v1966
        %v1971 = vrsqrt.pop %v1959
        %v1972 = vmul.f32 %v1971, %v1959
        %v1973 = vmul.f32 %v1972, %v1971
        %v1974 = vmul.f32 0.5, %v1973
        %v1975 = vsub.f32 1.5, %v1974
        %v1976 = vmul.f32 %v1971, %v1975
        %vm1977 = vweird.f32 %v1959
        %vm1978 = vweird.f32 %v1971
        %vm1979 = vmor %vm1977, %vm1978
        %v1980 = vsel %vm1979, %v1971, %v1976
        %v1981 = vmul.f32 %v1800, %v1970
        %v1982 = vmul.f32 %v1803, %v1980
        %v1983 = vmul.f32 %v1981, %v1926
        %v1984 = vmul.f32 %v1982, %v1926
        %vm1985 = vcmp.gt.f32.partialorder %v1867, 0.0
        %vm1986 = vcmp.gt.f32.partialorder %v1868, 0.0
        %v1987 = vadd.f32 %v1867, 1.0
        %v1988 = vadd.f32 %v1868, 1.0
        %v1989 = vmul.f32 %v1867, 1.442695
        %v1990 = vpow.pop %v1989
        %v1991 = vmul.f32 %v1868, 1.442695
        %v1992 = vpow.pop %v1991
        %v1993 = vsel %vm1985, %v1987, %v1990
        %v1994 = vsel %vm1986, %v1988, %v1992
        %vm1995 = vcmp.gt.f32.partialorder %v1928, 0.0
        %vm1996 = vcmp.gt.f32.partialorder %v1929, 0.0
        %v1997 = vadd.f32 %v1928, 1.0
        %v1998 = vadd.f32 %v1929, 1.0
        %v1999 = vmul.f32 %v1928, 1.442695
        %v2000 = vpow.pop %v1999
        %v2001 = vmul.f32 %v1929, 1.442695
        %v2002 = vpow.pop %v2001
        %v2003 = vsel %vm1995, %v1997, %v2000
        %v2004 = vsel %vm1996, %v1998, %v2002
        %v2005 = vld [vmem:[%s11] sm:$0xff]
        %v2006 = vld [vmem:[%s11 + $0x8] sm:$0xff]
        %v2008 = vsel %vm1873, %v2003, 0
        %v2011 = vsel %vm1873, %v2004, 0
        %2013 = vmatpush.msra.mxu0 0.0
        %2014 = vmatpush.msra.mxu0 0.0
        %2015 = vmatpush.msra.mxu0 0.0
        %2016 = vmatpush.msra.mxu0 0.0
        %2017 = vmatpush.msra.mxu0 0.0
        %2018 = vmatpush.msra.mxu0 0.0
        %2019 = vmatpush.msra.mxu0 0.0
        %2020 = vmatpush.msra.mxu0 0.0
        %2021 = vmatpush.msra.mxu0 0.0
        %2022 = vmatpush.msra.mxu0 0.0
        %2023 = vmatpush.msra.mxu0 0.0
        %2024 = vmatpush.msra.mxu0 0.0
        %2025 = vmatpush.msra.mxu0 0.0
        %2026 = vmatpush.msra.mxu0 0.0
        %2027 = vmatpush.msra.mxu0 %v2006
        %2028 = vmatpush.msra.mxu0 %v2005
        %2029 = vmatmul.f32.gmra.mxu0 %v2008
        %v2030 = vpop.f32.mrf.mxu0
        %v2031 = vadd.f32 0.0, %v2030
        %2032 = vmatmul.f32.gmra.mxu0 %v2011
        %v2033 = vpop.f32.mrf.mxu0
        %v2034 = vadd.f32 0.0, %v2033
        %2035 = vdwg.mxu0
        %v2037 = vsel %vm1873, %v1983, 0
        %v2040 = vsel %vm1873, %v1984, 0
        %2042 = vmatpush.msra.mxu0 0.0
        %2043 = vmatpush.msra.mxu0 0.0
        %2044 = vmatpush.msra.mxu0 0.0
        %2045 = vmatpush.msra.mxu0 0.0
        %2046 = vmatpush.msra.mxu0 0.0
        %2047 = vmatpush.msra.mxu0 0.0
        %2048 = vmatpush.msra.mxu0 0.0
        %2049 = vmatpush.msra.mxu0 0.0
        %2050 = vmatpush.msra.mxu0 0.0
        %2051 = vmatpush.msra.mxu0 0.0
        %2052 = vmatpush.msra.mxu0 0.0
        %2053 = vmatpush.msra.mxu0 0.0
        %2054 = vmatpush.msra.mxu0 0.0
        %2055 = vmatpush.msra.mxu0 0.0
        %2056 = vmatpush.msra.mxu0 %v2006
        %2057 = vmatpush.msra.mxu0 %v2005
        %2058 = vmatmul.f32.gmra.mxu0 %v2037
        %v2059 = vpop.f32.mrf.mxu0
        %v2060 = vadd.f32 0.0, %v2059
        %2061 = vmatmul.f32.gmra.mxu0 %v2040
        %v2062 = vpop.f32.mrf.mxu0
        %v2063 = vadd.f32 0.0, %v2062
        %2064 = vdwg.mxu0
        %v2065 = vld [vmem:[%s13] sm:$0xff]
        %v2066 = vld [vmem:[%s13 + $0x8] sm:$0xff]
        %v2067 = vld [vmem:[%s13 + $0x10] sm:$0xff]
        %v2068 = vld [vmem:[%s13 + $0x18] sm:$0xff]
        %2069 = vxpose.xlu0.b32.start [1/16] %v2031, 128
        %2070 = vxpose.xlu0.b32.cont [2/16] 0.0, 128
        %2071 = vxpose.xlu0.b32.cont [3/16] 0.0, 128
        %2072 = vxpose.xlu0.b32.cont [4/16] 0.0, 128
        %2073 = vxpose.xlu0.b32.cont [5/16] 0.0, 128
        %2074 = vxpose.xlu0.b32.cont [6/16] 0.0, 128
        %2075 = vxpose.xlu0.b32.cont [7/16] 0.0, 128
        %2076 = vxpose.xlu0.b32.cont [8/16] 0.0, 128
        %2077 = vxpose.xlu0.b32.cont [9/16] 0.0, 128
        %2078 = vxpose.xlu0.b32.cont [10/16] 0.0, 128
        %2079 = vxpose.xlu0.b32.cont [11/16] 0.0, 128
        %2080 = vxpose.xlu0.b32.cont [12/16] 0.0, 128
        %2081 = vxpose.xlu0.b32.cont [13/16] 0.0, 128
        %2082 = vxpose.xlu0.b32.cont [14/16] 0.0, 128
        %2083 = vxpose.xlu0.b32.cont [15/16] 0.0, 128
        %2084 = vxpose.xlu0.b32.end [16/16] 0.0, 128
        %v2085 = vpop.trf.xlu0
        %v2086 = vpop.trf.xlu0
        %v2087 = vpop.trf.xlu0
        %v2088 = vpop.trf.xlu0
        %v2089 = vpop.trf.xlu0
        %v2090 = vpop.trf.xlu0
        %v2091 = vpop.trf.xlu0
        %v2092 = vpop.trf.xlu0
        %v2093 = vpop.trf.xlu0
        %v2094 = vpop.trf.xlu0
        %v2095 = vpop.trf.xlu0
        %v2096 = vpop.trf.xlu0
        %v2097 = vpop.trf.xlu0
        %v2098 = vpop.trf.xlu0
        %v2099 = vpop.trf.xlu0
        %v2100 = vpop.trf.xlu0
        %vm2101 = vcmask 64512
        %v2103 = vsel %vm2101, %v2085, 0
        %v2106 = vsel %vm2101, %v2086, 0
        %v2109 = vsel %vm2101, %v2087, 0
        %v2112 = vsel %vm2101, %v2088, 0
        %2114 = vmatpush.msra.mxu0 0.0
        %2115 = vmatpush.msra.mxu0 0.0
        %2116 = vmatpush.msra.mxu0 0.0
        %2117 = vmatpush.msra.mxu0 0.0
        %2118 = vmatpush.msra.mxu0 0.0
        %2119 = vmatpush.msra.mxu0 0.0
        %2120 = vmatpush.msra.mxu0 0.0
        %2121 = vmatpush.msra.mxu0 0.0
        %2122 = vmatpush.msra.mxu0 0.0
        %2123 = vmatpush.msra.mxu0 0.0
        %2124 = vmatpush.msra.mxu0 0.0
        %2125 = vmatpush.msra.mxu0 0.0
        %2126 = vmatpush.msra.mxu0 0.0
        %2127 = vmatpush.msra.mxu0 0.0
        %2128 = vmatpush.msra.mxu0 0.0
        %2129 = vmatpush.msra.mxu0 %v2060
        %2130 = vmatmul.f32.gmra.mxu0 %v2103
        %v2131 = vpop.f32.mrf.mxu0
        %v2132 = vadd.f32 0.0, %v2131
        %2133 = vmatmul.f32.gmra.mxu0 %v2106
        %v2134 = vpop.f32.mrf.mxu0
        %v2135 = vadd.f32 0.0, %v2134
        %2136 = vmatmul.f32.gmra.mxu0 %v2109
        %v2137 = vpop.f32.mrf.mxu0
        %v2138 = vadd.f32 0.0, %v2137
        %2139 = vmatmul.f32.gmra.mxu0 %v2112
        %v2140 = vpop.f32.mrf.mxu0
        %v2141 = vadd.f32 0.0, %v2140
        %2142 = vdwg.mxu0
        %v2143 = vmul.f32 %v2132, %v2065
        %v2144 = vmul.f32 %v2135, %v2066
        %v2145 = vmul.f32 %v2138, %v2067
        %v2146 = vmul.f32 %v2141, %v2068
        %v2148 = vsel %vm1709, %v1993, 0
        %2150 = vmatpush.msra.mxu0 0.0
        %2151 = vmatpush.msra.mxu0 0.0
        %2152 = vmatpush.msra.mxu0 0.0
        %2153 = vmatpush.msra.mxu0 0.0
        %2154 = vmatpush.msra.mxu0 0.0
        %2155 = vmatpush.msra.mxu0 0.0
        %2156 = vmatpush.msra.mxu0 0.0
        %2157 = vmatpush.msra.mxu0 0.0
        %2158 = vmatpush.msra.mxu0 0.0
        %2159 = vmatpush.msra.mxu0 0.0
        %2160 = vmatpush.msra.mxu0 0.0
        %2161 = vmatpush.msra.mxu0 0.0
        %2162 = vmatpush.msra.mxu0 %v2146
        %2163 = vmatpush.msra.mxu0 %v2145
        %2164 = vmatpush.msra.mxu0 %v2144
        %2165 = vmatpush.msra.mxu0 %v2143
        %2166 = vmatmul.f32.gmra.mxu0 %v2148
        %v2167 = vpop.f32.mrf.mxu0
        %v2168 = vadd.f32 0.0, %v2167
        %2169 = vdwg.mxu0
        %2170 = vxpose.xlu0.b32.start [1/16] %v2034, 128
        %2171 = vxpose.xlu0.b32.cont [2/16] 0.0, 128
        %2172 = vxpose.xlu0.b32.cont [3/16] 0.0, 128
        %2173 = vxpose.xlu0.b32.cont [4/16] 0.0, 128
        %2174 = vxpose.xlu0.b32.cont [5/16] 0.0, 128
        %2175 = vxpose.xlu0.b32.cont [6/16] 0.0, 128
        %2176 = vxpose.xlu0.b32.cont [7/16] 0.0, 128
        %2177 = vxpose.xlu0.b32.cont [8/16] 0.0, 128
        %2178 = vxpose.xlu0.b32.cont [9/16] 0.0, 128
        %2179 = vxpose.xlu0.b32.cont [10/16] 0.0, 128
        %2180 = vxpose.xlu0.b32.cont [11/16] 0.0, 128
        %2181 = vxpose.xlu0.b32.cont [12/16] 0.0, 128
        %2182 = vxpose.xlu0.b32.cont [13/16] 0.0, 128
        %2183 = vxpose.xlu0.b32.cont [14/16] 0.0, 128
        %2184 = vxpose.xlu0.b32.cont [15/16] 0.0, 128
        %2185 = vxpose.xlu0.b32.end [16/16] 0.0, 128
        %v2186 = vpop.trf.xlu0
        %v2187 = vpop.trf.xlu0
        %v2188 = vpop.trf.xlu0
        %v2189 = vpop.trf.xlu0
        %v2190 = vpop.trf.xlu0
        %v2191 = vpop.trf.xlu0
        %v2192 = vpop.trf.xlu0
        %v2193 = vpop.trf.xlu0
        %v2194 = vpop.trf.xlu0
        %v2195 = vpop.trf.xlu0
        %v2196 = vpop.trf.xlu0
        %v2197 = vpop.trf.xlu0
        %v2198 = vpop.trf.xlu0
        %v2199 = vpop.trf.xlu0
        %v2200 = vpop.trf.xlu0
        %v2201 = vpop.trf.xlu0
        %v2203 = vsel %vm2101, %v2186, 0
        %v2206 = vsel %vm2101, %v2187, 0
        %v2209 = vsel %vm2101, %v2188, 0
        %v2212 = vsel %vm2101, %v2189, 0
        %2214 = vmatpush.msra.mxu0 0.0
        %2215 = vmatpush.msra.mxu0 0.0
        %2216 = vmatpush.msra.mxu0 0.0
        %2217 = vmatpush.msra.mxu0 0.0
        %2218 = vmatpush.msra.mxu0 0.0
        %2219 = vmatpush.msra.mxu0 0.0
        %2220 = vmatpush.msra.mxu0 0.0
        %2221 = vmatpush.msra.mxu0 0.0
        %2222 = vmatpush.msra.mxu0 0.0
        %2223 = vmatpush.msra.mxu0 0.0
        %2224 = vmatpush.msra.mxu0 0.0
        %2225 = vmatpush.msra.mxu0 0.0
        %2226 = vmatpush.msra.mxu0 0.0
        %2227 = vmatpush.msra.mxu0 0.0
        %2228 = vmatpush.msra.mxu0 0.0
        %2229 = vmatpush.msra.mxu0 %v2063
        %2230 = vmatmul.f32.gmra.mxu0 %v2203
        %v2231 = vpop.f32.mrf.mxu0
        %v2232 = vadd.f32 0.0, %v2231
        %2233 = vmatmul.f32.gmra.mxu0 %v2206
        %v2234 = vpop.f32.mrf.mxu0
        %v2235 = vadd.f32 0.0, %v2234
        %2236 = vmatmul.f32.gmra.mxu0 %v2209
        %v2237 = vpop.f32.mrf.mxu0
        %v2238 = vadd.f32 0.0, %v2237
        %2239 = vmatmul.f32.gmra.mxu0 %v2212
        %v2240 = vpop.f32.mrf.mxu0
        %v2241 = vadd.f32 0.0, %v2240
        %2242 = vdwg.mxu0
        %v2243 = vmul.f32 %v2232, %v2065
        %v2244 = vmul.f32 %v2235, %v2066
        %v2245 = vmul.f32 %v2238, %v2067
        %v2246 = vmul.f32 %v2241, %v2068
        %v2248 = vsel %vm1709, %v1994, 0
        %2250 = vmatpush.msra.mxu0 0.0
        %2251 = vmatpush.msra.mxu0 0.0
        %2252 = vmatpush.msra.mxu0 0.0
        %2253 = vmatpush.msra.mxu0 0.0
        %2254 = vmatpush.msra.mxu0 0.0
        %2255 = vmatpush.msra.mxu0 0.0
        %2256 = vmatpush.msra.mxu0 0.0
        %2257 = vmatpush.msra.mxu0 0.0
        %2258 = vmatpush.msra.mxu0 0.0
        %2259 = vmatpush.msra.mxu0 0.0
        %2260 = vmatpush.msra.mxu0 0.0
        %2261 = vmatpush.msra.mxu0 0.0
        %2262 = vmatpush.msra.mxu0 %v2246
        %2263 = vmatpush.msra.mxu0 %v2245
        %2264 = vmatpush.msra.mxu0 %v2244
        %2265 = vmatpush.msra.mxu0 %v2243
        %2266 = vmatmul.f32.gmra.mxu0 %v2248
        %v2267 = vpop.f32.mrf.mxu0
        %v2268 = vadd.f32 0.0, %v2267
        %2269 = vdwg.mxu0
        %v2270 = vmul.f32 %v2168, 0.125
        %v2271 = vmul.f32 %v2268, 0.125
        %v2272 = vld [vmem:[%s1335] sm:$0xff]
        %v2273 = vld [vmem:[%s1335 + $0x8] sm:$0xff]
        %v2274 = vld [vmem:[%s1335 + $0x10] sm:$0xff]
        %v2275 = vld [vmem:[%s1335 + $0x18] sm:$0xff]
        %v2277 = vsel %vm1709, %v2270, 0
        %v2280 = vsel %vm1709, %v2271, 0
        %2282 = vmatpush.msra.mxu0 0.0
        %2283 = vmatpush.msra.mxu0 0.0
        %2284 = vmatpush.msra.mxu0 0.0
        %2285 = vmatpush.msra.mxu0 0.0
        %2286 = vmatpush.msra.mxu0 0.0
        %2287 = vmatpush.msra.mxu0 0.0
        %2288 = vmatpush.msra.mxu0 0.0
        %2289 = vmatpush.msra.mxu0 0.0
        %2290 = vmatpush.msra.mxu0 0.0
        %2291 = vmatpush.msra.mxu0 0.0
        %2292 = vmatpush.msra.mxu0 0.0
        %2293 = vmatpush.msra.mxu0 0.0
        %2294 = vmatpush.msra.mxu0 %v2275
        %2295 = vmatpush.msra.mxu0 %v2274
        %2296 = vmatpush.msra.mxu0 %v2273
        %2297 = vmatpush.msra.mxu0 %v2272
        %2298 = vmatmul.f32.gmra.mxu0 %v2277
        %v2299 = vpop.f32.mrf.mxu0
        %v2300 = vadd.f32 0.0, %v2299
        %2301 = vmatmul.f32.gmra.mxu0 %v2280
        %v2302 = vpop.f32.mrf.mxu0
        %v2303 = vadd.f32 0.0, %v2302
        %2304 = vdwg.mxu0
        %v2305 = vadd.f32 %v1352, %v2300
        %v2306 = vadd.f32 %v1353, %v2303
        %v2307 = vmul.f32 %v2305, %v2305
        %v2308 = vmul.f32 %v2306, %v2306
        %2309 = vadd.xlane.f32.xlu0 %v2307
        %v2310 = vpop.xlane.xlu0 %2309
        %2311 = vadd.xlane.f32.xlu0 %v2308
        %v2312 = vpop.xlane.xlu0 %2311
        %v2313 = vmul.f32 %v2310, %v1366
        %v2314 = vmul.f32 %v2312, %v1366
        %v2315 = vadd.f32 %v2313, 1e-05
        %v2316 = vadd.f32 %v2314, 1e-05
        %v2317 = vrsqrt.pop %v2315
        %v2318 = vmul.f32 %v2317, %v2315
        %v2319 = vmul.f32 %v2318, %v2317
        %v2320 = vmul.f32 0.5, %v2319
        %v2321 = vsub.f32 1.5, %v2320
        %v2322 = vmul.f32 %v2317, %v2321
        %vm2323 = vweird.f32 %v2315
        %vm2324 = vweird.f32 %v2317
        %vm2325 = vmor %vm2323, %vm2324
        %v2326 = vsel %vm2325, %v2317, %v2322
        %v2327 = vrsqrt.pop %v2316
        %v2328 = vmul.f32 %v2327, %v2316
        %v2329 = vmul.f32 %v2328, %v2327
        %v2330 = vmul.f32 0.5, %v2329
        %v2331 = vsub.f32 1.5, %v2330
        %v2332 = vmul.f32 %v2327, %v2331
        %vm2333 = vweird.f32 %v2316
        %vm2334 = vweird.f32 %v2327
        %vm2335 = vmor %vm2333, %vm2334
        %v2336 = vsel %vm2335, %v2327, %v2332
        %v2337 = vmul.f32 %v2305, %v2326
        %v2338 = vmul.f32 %v2306, %v2336
        %v2339 = vld [vmem:[%s1338] sm:$0x1]
        %v2341 = vperm.slane %v2339, 0
        %v2343 = vmul.f32 %v2337, %v2341
        %v2344 = vmul.f32 %v2338, %v2341
        %v2345 = vld [vmem:[%s1343] sm:$0xff]
        %v2346 = vld [vmem:[%s1343 + $0x8] sm:$0xff]
        %v2347 = vld [vmem:[%s1343 + $0x10] sm:$0xff]
        %v2348 = vld [vmem:[%s1343 + $0x18] sm:$0xff]
        %v2349 = vld [vmem:[%s1343 + $0x20] sm:$0xff]
        %v2350 = vld [vmem:[%s1343 + $0x28] sm:$0xff]
        %v2351 = vld [vmem:[%s1343 + $0x30] sm:$0xff]
        %v2352 = vld [vmem:[%s1343 + $0x38] sm:$0xff]
        %v2353 = vld [vmem:[%s1343 + $0x40] sm:$0xff]
        %v2354 = vld [vmem:[%s1343 + $0x48] sm:$0xff]
        %v2355 = vld [vmem:[%s1343 + $0x50] sm:$0xff]
        %v2356 = vld [vmem:[%s1343 + $0x58] sm:$0xff]
        %v2357 = vld [vmem:[%s1343 + $0x60] sm:$0xff]
        %v2358 = vld [vmem:[%s1343 + $0x68] sm:$0xff]
        %v2359 = vld [vmem:[%s1343 + $0x70] sm:$0xff]
        %v2360 = vld [vmem:[%s1343 + $0x78] sm:$0xff]
        %2361 = vmatpush.msra.mxu0 %v2360
        %2362 = vmatpush.msra.mxu0 %v2359
        %2363 = vmatpush.msra.mxu0 %v2358
        %2364 = vmatpush.msra.mxu0 %v2357
        %2365 = vmatpush.msra.mxu0 %v2356
        %2366 = vmatpush.msra.mxu0 %v2355
        %2367 = vmatpush.msra.mxu0 %v2354
        %2368 = vmatpush.msra.mxu0 %v2353
        %2369 = vmatpush.msra.mxu0 %v2352
        %2370 = vmatpush.msra.mxu0 %v2351
        %2371 = vmatpush.msra.mxu0 %v2350
        %2372 = vmatpush.msra.mxu0 %v2349
        %2373 = vmatpush.msra.mxu0 %v2348
        %2374 = vmatpush.msra.mxu0 %v2347
        %2375 = vmatpush.msra.mxu0 %v2346
        %2376 = vmatpush.msra.mxu0 %v2345
        %2377 = vmatmul.f32.gmra.mxu0 %v2343
        %v2378 = vpop.f32.mrf.mxu0
        %v2379 = vadd.f32 0.0, %v2378
        %2380 = vmatmul.f32.gmra.mxu0 %v2344
        %v2381 = vpop.f32.mrf.mxu0
        %v2382 = vadd.f32 0.0, %v2381
        %2383 = vdwg.mxu0
        %vm2384 = vcmask 31744
        %v2385 = vsel %vm2384, %v2379, -inf
        %2386 = vmax.xlane.f32.xlu0 %v2385
        %v2387 = vpop.xlane.xlu0 %2386
        %v2388 = vsel %vm2384, %v2382, -inf
        %2389 = vmax.xlane.f32.xlu0 %v2388
        %v2390 = vpop.xlane.xlu0 %2389
        %vm2391 = vcmp.ge.f32.partialorder %v2379, %v2387
        %vm2392 = vcmp.ge.f32.partialorder %v2382, %v2390
        %v2393 = vsel %vm2391, -1e+30, %v2379
        %v2394 = vsel %vm2392, -1e+30, %v2382
        %v2395 = vsel %vm2384, %v2393, -inf
        %2396 = vmax.xlane.f32.xlu0 %v2395
        %v2397 = vpop.xlane.xlu0 %2396
        %v2398 = vsel %vm2384, %v2394, -inf
        %2399 = vmax.xlane.f32.xlu0 %v2398
        %v2400 = vpop.xlane.xlu0 %2399
        %vm2401 = vcmp.ge.f32.partialorder %v2379, %v2397
        %vm2402 = vcmp.ge.f32.partialorder %v2382, %v2400
        %v2403 = vsel %vm2401, 1, 0
        %v2404 = vsel %vm2402, 1, 0
        %v2405 = vcvt.s32.f32 %v2403
        %v2406 = vcvt.s32.f32 %v2404
        %v2407 = vld [vmem:[%s1095] sm:$0xff]
        %v2408 = vld [vmem:[%s1095 + $0x8] sm:$0xff]
        %v2409 = vld [vmem:[%s1095 + $0x40] sm:$0xff]
        %v2410 = vld [vmem:[%s1095 + $0x48] sm:$0xff]
        %v2411 = vld [vmem:[%s1095 + $0x80] sm:$0xff]
        %v2412 = vld [vmem:[%s1095 + $0x88] sm:$0xff]
        %v2413 = vld [vmem:[%s1095 + $0xc0] sm:$0xff]
        %v2414 = vld [vmem:[%s1095 + $0xc8] sm:$0xff]
        %v2415 = vld [vmem:[%s1095 + $0x100] sm:$0xff]
        %v2416 = vld [vmem:[%s1095 + $0x108] sm:$0xff]
        %v2417 = vld [vmem:[%s1095 + $0x140] sm:$0xff]
        %v2418 = vld [vmem:[%s1095 + $0x148] sm:$0xff]
        %v2419 = vld [vmem:[%s1095 + $0x180] sm:$0xff]
        %v2420 = vld [vmem:[%s1095 + $0x188] sm:$0xff]
        %v2421 = vld [vmem:[%s1095 + $0x1c0] sm:$0xff]
        %v2422 = vld [vmem:[%s1095 + $0x1c8] sm:$0xff]
        %v2423 = vld [vmem:[%s1095 + $0x200] sm:$0xff]
        %v2424 = vld [vmem:[%s1095 + $0x208] sm:$0xff]
        %v2425 = vld [vmem:[%s1095 + $0x240] sm:$0xff]
        %v2426 = vld [vmem:[%s1095 + $0x248] sm:$0xff]
        %v2427 = vld [vmem:[%s1095 + $0x280] sm:$0xff]
        %v2428 = vld [vmem:[%s1095 + $0x288] sm:$0xff]
        %v2429 = vld [vmem:[%s1095 + $0x2c0] sm:$0xff]
        %v2430 = vld [vmem:[%s1095 + $0x2c8] sm:$0xff]
        %v2431 = vld [vmem:[%s1095 + $0x300] sm:$0xff]
        %v2432 = vld [vmem:[%s1095 + $0x308] sm:$0xff]
        %v2433 = vld [vmem:[%s1095 + $0x340] sm:$0xff]
        %v2434 = vld [vmem:[%s1095 + $0x348] sm:$0xff]
        %v2435 = vld [vmem:[%s1095 + $0x380] sm:$0xff]
        %v2436 = vld [vmem:[%s1095 + $0x388] sm:$0xff]
        %v2437 = vld [vmem:[%s1095 + $0x3c0] sm:$0xff]
        %v2438 = vld [vmem:[%s1095 + $0x3c8] sm:$0xff]
        %2439 = vmatpush.msra.mxu0 %v2437
        %2440 = vmatpush.msra.mxu0 %v2435
        %2441 = vmatpush.msra.mxu0 %v2433
        %2442 = vmatpush.msra.mxu0 %v2431
        %2443 = vmatpush.msra.mxu0 %v2429
        %2444 = vmatpush.msra.mxu0 %v2427
        %2445 = vmatpush.msra.mxu0 %v2425
        %2446 = vmatpush.msra.mxu0 %v2423
        %2447 = vmatpush.msra.mxu0 %v2421
        %2448 = vmatpush.msra.mxu0 %v2419
        %2449 = vmatpush.msra.mxu0 %v2417
        %2450 = vmatpush.msra.mxu0 %v2415
        %2451 = vmatpush.msra.mxu0 %v2413
        %2452 = vmatpush.msra.mxu0 %v2411
        %2453 = vmatpush.msra.mxu0 %v2409
        %2454 = vmatpush.msra.mxu0 %v2407
        %2455 = vmatmul.f32.gmra.mxu0 %v2343
        %v2456 = vpop.f32.mrf.mxu0
        %v2457 = vadd.f32 0.0, %v2456
        %2458 = vmatmul.f32.gmra.mxu0 %v2344
        %v2459 = vpop.f32.mrf.mxu0
        %v2460 = vadd.f32 0.0, %v2459
        %2461 = vdwg.mxu0
        %2462 = vmatpush.msra.mxu0 %v2438
        %2463 = vmatpush.msra.mxu0 %v2436
        %2464 = vmatpush.msra.mxu0 %v2434
        %2465 = vmatpush.msra.mxu0 %v2432
        %2466 = vmatpush.msra.mxu0 %v2430
        %2467 = vmatpush.msra.mxu0 %v2428
        %2468 = vmatpush.msra.mxu0 %v2426
        %2469 = vmatpush.msra.mxu0 %v2424
        %2470 = vmatpush.msra.mxu0 %v2422
        %2471 = vmatpush.msra.mxu0 %v2420
        %2472 = vmatpush.msra.mxu0 %v2418
        %2473 = vmatpush.msra.mxu0 %v2416
        %2474 = vmatpush.msra.mxu0 %v2414
        %2475 = vmatpush.msra.mxu0 %v2412
        %2476 = vmatpush.msra.mxu0 %v2410
        %2477 = vmatpush.msra.mxu0 %v2408
        %2478 = vmatmul.f32.gmra.mxu0 %v2343
        %v2479 = vpop.f32.mrf.mxu0
        %v2480 = vadd.f32 0.0, %v2479
        %2481 = vmatmul.f32.gmra.mxu0 %v2344
        %v2482 = vpop.f32.mrf.mxu0
        %v2483 = vadd.f32 0.0, %v2482
        %2484 = vdwg.mxu0
        %v2485 = vld [vmem:[%s1105] sm:$0xff]
        %v2486 = vld [vmem:[%s1105 + $0x8] sm:$0xff]
        %v2487 = vld [vmem:[%s1105 + $0x40] sm:$0xff]
        %v2488 = vld [vmem:[%s1105 + $0x48] sm:$0xff]
        %v2489 = vld [vmem:[%s1105 + $0x80] sm:$0xff]
        %v2490 = vld [vmem:[%s1105 + $0x88] sm:$0xff]
        %v2491 = vld [vmem:[%s1105 + $0xc0] sm:$0xff]
        %v2492 = vld [vmem:[%s1105 + $0xc8] sm:$0xff]
        %v2493 = vld [vmem:[%s1105 + $0x100] sm:$0xff]
        %v2494 = vld [vmem:[%s1105 + $0x108] sm:$0xff]
        %v2495 = vld [vmem:[%s1105 + $0x140] sm:$0xff]
        %v2496 = vld [vmem:[%s1105 + $0x148] sm:$0xff]
        %v2497 = vld [vmem:[%s1105 + $0x180] sm:$0xff]
        %v2498 = vld [vmem:[%s1105 + $0x188] sm:$0xff]
        %v2499 = vld [vmem:[%s1105 + $0x1c0] sm:$0xff]
        %v2500 = vld [vmem:[%s1105 + $0x1c8] sm:$0xff]
        %v2501 = vld [vmem:[%s1105 + $0x200] sm:$0xff]
        %v2502 = vld [vmem:[%s1105 + $0x208] sm:$0xff]
        %v2503 = vld [vmem:[%s1105 + $0x240] sm:$0xff]
        %v2504 = vld [vmem:[%s1105 + $0x248] sm:$0xff]
        %v2505 = vld [vmem:[%s1105 + $0x280] sm:$0xff]
        %v2506 = vld [vmem:[%s1105 + $0x288] sm:$0xff]
        %v2507 = vld [vmem:[%s1105 + $0x2c0] sm:$0xff]
        %v2508 = vld [vmem:[%s1105 + $0x2c8] sm:$0xff]
        %v2509 = vld [vmem:[%s1105 + $0x300] sm:$0xff]
        %v2510 = vld [vmem:[%s1105 + $0x308] sm:$0xff]
        %v2511 = vld [vmem:[%s1105 + $0x340] sm:$0xff]
        %v2512 = vld [vmem:[%s1105 + $0x348] sm:$0xff]
        %v2513 = vld [vmem:[%s1105 + $0x380] sm:$0xff]
        %v2514 = vld [vmem:[%s1105 + $0x388] sm:$0xff]
        %v2515 = vld [vmem:[%s1105 + $0x3c0] sm:$0xff]
        %v2516 = vld [vmem:[%s1105 + $0x3c8] sm:$0xff]
        %2517 = vmatpush.msra.mxu0 %v2515
        %2518 = vmatpush.msra.mxu0 %v2513
        %2519 = vmatpush.msra.mxu0 %v2511
        %2520 = vmatpush.msra.mxu0 %v2509
        %2521 = vmatpush.msra.mxu0 %v2507
        %2522 = vmatpush.msra.mxu0 %v2505
        %2523 = vmatpush.msra.mxu0 %v2503
        %2524 = vmatpush.msra.mxu0 %v2501
        %2525 = vmatpush.msra.mxu0 %v2499
        %2526 = vmatpush.msra.mxu0 %v2497
        %2527 = vmatpush.msra.mxu0 %v2495
        %2528 = vmatpush.msra.mxu0 %v2493
        %2529 = vmatpush.msra.mxu0 %v2491
        %2530 = vmatpush.msra.mxu0 %v2489
        %2531 = vmatpush.msra.mxu0 %v2487
        %2532 = vmatpush.msra.mxu0 %v2485
        %2533 = vmatmul.f32.gmra.mxu0 %v2343
        %v2534 = vpop.f32.mrf.mxu0
        %v2535 = vadd.f32 0.0, %v2534
        %2536 = vmatmul.f32.gmra.mxu0 %v2344
        %v2537 = vpop.f32.mrf.mxu0
        %v2538 = vadd.f32 0.0, %v2537
        %2539 = vdwg.mxu0
        %2540 = vmatpush.msra.mxu0 %v2516
        %2541 = vmatpush.msra.mxu0 %v2514
        %2542 = vmatpush.msra.mxu0 %v2512
        %2543 = vmatpush.msra.mxu0 %v2510
        %2544 = vmatpush.msra.mxu0 %v2508
        %2545 = vmatpush.msra.mxu0 %v2506
        %2546 = vmatpush.msra.mxu0 %v2504
        %2547 = vmatpush.msra.mxu0 %v2502
        %2548 = vmatpush.msra.mxu0 %v2500
        %2549 = vmatpush.msra.mxu0 %v2498
        %2550 = vmatpush.msra.mxu0 %v2496
        %2551 = vmatpush.msra.mxu0 %v2494
        %2552 = vmatpush.msra.mxu0 %v2492
        %2553 = vmatpush.msra.mxu0 %v2490
        %2554 = vmatpush.msra.mxu0 %v2488
        %2555 = vmatpush.msra.mxu0 %v2486
        %2556 = vmatmul.f32.gmra.mxu0 %v2343
        %v2557 = vpop.f32.mrf.mxu0
        %v2558 = vadd.f32 0.0, %v2557
        %2559 = vmatmul.f32.gmra.mxu0 %v2344
        %v2560 = vpop.f32.mrf.mxu0
        %v2561 = vadd.f32 0.0, %v2560
        %2562 = vdwg.mxu0
        %v2563 = vld [vmem:[%s19] sm:$0xff]
        %2565 = vst [vmem:[#allocation1] ss:$2 sm:$0xff] %v2563
        %v2566 = vld.sshfl [vmem:[#allocation1] sm:$0xff pattern:$0x75316420]
        %v2567 = vld.sshfl [vmem:[#allocation1 + $0x8] sm:$0xff pattern:$0x75316420]
        %v2569 = vsel %vm2384, %v2405, 0
        %v2572 = vsel %vm2384, %v2406, 0
        %vm2574 = vcmask 1043456
        %v2575 = vsel %vm2574, %v2566, 0
        %v2577 = vsel %vm2574, %v2567, 0
        %2579 = vmatpush.msra.mxu0 0.0
        %2580 = vmatpush.msra.mxu0 0.0
        %2581 = vmatpush.msra.mxu0 0.0
        %2582 = vmatpush.msra.mxu0 0.0
        %2583 = vmatpush.msra.mxu0 0.0
        %2584 = vmatpush.msra.mxu0 0.0
        %2585 = vmatpush.msra.mxu0 0.0
        %2586 = vmatpush.msra.mxu0 0.0
        %2587 = vmatpush.msra.mxu0 0.0
        %2588 = vmatpush.msra.mxu0 0.0
        %2589 = vmatpush.msra.mxu0 0.0
        %2590 = vmatpush.msra.mxu0 0.0
        %2591 = vmatpush.msra.mxu0 0.0
        %2592 = vmatpush.msra.mxu0 0.0
        %2593 = vmatpush.msra.mxu0 0.0
        %2594 = vmatpush.msra.mxu0 %v2575
        %2595 = vmatmul.f32.gmra.mxu0 %v2569
        %v2596 = vpop.f32.mrf.mxu0
        %v2597 = vadd.f32 0.0, %v2596
        %2598 = vmatmul.f32.gmra.mxu0 %v2572
        %v2599 = vpop.f32.mrf.mxu0
        %v2600 = vadd.f32 0.0, %v2599
        %2601 = vdwg.mxu0
        %2602 = vmatpush.msra.mxu0 0.0
        %2603 = vmatpush.msra.mxu0 0.0
        %2604 = vmatpush.msra.mxu0 0.0
        %2605 = vmatpush.msra.mxu0 0.0
        %2606 = vmatpush.msra.mxu0 0.0
        %2607 = vmatpush.msra.mxu0 0.0
        %2608 = vmatpush.msra.mxu0 0.0
        %2609 = vmatpush.msra.mxu0 0.0
        %2610 = vmatpush.msra.mxu0 0.0
        %2611 = vmatpush.msra.mxu0 0.0
        %2612 = vmatpush.msra.mxu0 0.0
        %2613 = vmatpush.msra.mxu0 0.0
        %2614 = vmatpush.msra.mxu0 0.0
        %2615 = vmatpush.msra.mxu0 0.0
        %2616 = vmatpush.msra.mxu0 0.0
        %2617 = vmatpush.msra.mxu0 %v2577
        %2618 = vmatmul.f32.gmra.mxu0 %v2569
        %v2619 = vpop.f32.mrf.mxu0
        %v2620 = vadd.f32 0.0, %v2619
        %2621 = vmatmul.f32.gmra.mxu0 %v2572
        %v2622 = vpop.f32.mrf.mxu0
        %v2623 = vadd.f32 0.0, %v2622
        %2624 = vdwg.mxu0
        %v2625 = vmul.f32 %v2457, %v2597
        %v2626 = vmul.f32 %v2480, %v2620
        %v2627 = vmul.f32 %v2460, %v2600
        %v2628 = vmul.f32 %v2483, %v2623
        %v2629 = vxor.u32 %v2625, 2147483648
        %v2630 = vxor.u32 %v2626, 2147483648
        %v2631 = vxor.u32 %v2627, 2147483648
        %v2632 = vxor.u32 %v2628, 2147483648
        %v2633 = vmul.f32 %v2629, 1.442695
        %v2634 = vpow.pop %v2633
        %v2635 = vmul.f32 %v2630, 1.442695
        %v2636 = vpow.pop %v2635
        %v2637 = vmul.f32 %v2631, 1.442695
        %v2638 = vpow.pop %v2637
        %v2639 = vmul.f32 %v2632, 1.442695
        %v2640 = vpow.pop %v2639
        %v2641 = vadd.f32 %v2634, 1.0
        %v2642 = vadd.f32 %v2636, 1.0
        %v2643 = vadd.f32 %v2638, 1.0
        %v2644 = vadd.f32 %v2640, 1.0
        %v2645 = vrcp.pop %v2641
        %v2646 = vmul.f32 %v2641, %v2645
        %v2647 = vsub.f32 1.0, %v2646
        %v2648 = vmul.f32 %v2645, %v2647
        %v2649 = vadd.f32 %v2645, %v2648
        %vm2650 = vweird.f32 %v2641
        %vm2651 = vweird.f32 %v2645
        %vm2652 = vmor %vm2650, %vm2651
        %v2653 = vsel %vm2652, %v2645, %v2649
        %v2654 = vand.u32 2147483647, %v2641
        %vm2655 = vcmp.eq.f32.partialorder %v2654, 8.507059e+37
        %v2656 = vand.u32 %v2641, 2147483648
        %v2657 = vor.u32 1.1754944e-38, %v2656
        %v2658 = vsel %vm2655, %v2657, %v2653
        %v2659 = vmul.f32 1.0, %v2658
        %v2660 = vrcp.pop %v2642
        %v2661 = vmul.f32 %v2642, %v2660
        %v2662 = vsub.f32 1.0, %v2661
        %v2663 = vmul.f32 %v2660, %v2662
        %v2664 = vadd.f32 %v2660, %v2663
        %vm2665 = vweird.f32 %v2642
        %vm2666 = vweird.f32 %v2660
        %vm2667 = vmor %vm2665, %vm2666
        %v2668 = vsel %vm2667, %v2660, %v2664
        %v2669 = vand.u32 2147483647, %v2642
        %vm2670 = vcmp.eq.f32.partialorder %v2669, 8.507059e+37
        %v2671 = vand.u32 %v2642, 2147483648
        %v2672 = vor.u32 1.1754944e-38, %v2671
        %v2673 = vsel %vm2670, %v2672, %v2668
        %v2674 = vmul.f32 1.0, %v2673
        %v2675 = vrcp.pop %v2643
        %v2676 = vmul.f32 %v2643, %v2675
        %v2677 = vsub.f32 1.0, %v2676
        %v2678 = vmul.f32 %v2675, %v2677
        %v2679 = vadd.f32 %v2675, %v2678
        %vm2680 = vweird.f32 %v2643
        %vm2681 = vweird.f32 %v2675
        %vm2682 = vmor %vm2680, %vm2681
        %v2683 = vsel %vm2682, %v2675, %v2679
        %v2684 = vand.u32 2147483647, %v2643
        %vm2685 = vcmp.eq.f32.partialorder %v2684, 8.507059e+37
        %v2686 = vand.u32 %v2643, 2147483648
        %v2687 = vor.u32 1.1754944e-38, %v2686
        %v2688 = vsel %vm2685, %v2687, %v2683
        %v2689 = vmul.f32 1.0, %v2688
        %v2690 = vrcp.pop %v2644
        %v2691 = vmul.f32 %v2644, %v2690
        %v2692 = vsub.f32 1.0, %v2691
        %v2693 = vmul.f32 %v2690, %v2692
        %v2694 = vadd.f32 %v2690, %v2693
        %vm2695 = vweird.f32 %v2644
        %vm2696 = vweird.f32 %v2690
        %vm2697 = vmor %vm2695, %vm2696
        %v2698 = vsel %vm2697, %v2690, %v2694
        %v2699 = vand.u32 2147483647, %v2644
        %vm2700 = vcmp.eq.f32.partialorder %v2699, 8.507059e+37
        %v2701 = vand.u32 %v2644, 2147483648
        %v2702 = vor.u32 1.1754944e-38, %v2701
        %v2703 = vsel %vm2700, %v2702, %v2698
        %v2704 = vmul.f32 1.0, %v2703
        %v2705 = vmul.f32 %v2625, %v2659
        %v2706 = vmul.f32 %v2626, %v2674
        %v2707 = vmul.f32 %v2627, %v2689
        %v2708 = vmul.f32 %v2628, %v2704
        %v2709 = vmul.f32 %v2705, %v2535
        %v2710 = vmul.f32 %v2706, %v2558
        %v2711 = vmul.f32 %v2707, %v2538
        %v2712 = vmul.f32 %v2708, %v2561
        %v2713 = vld [vmem:[%s1115] sm:$0xff]
        %v2714 = vld [vmem:[%s1115 + $0x8] sm:$0xff]
        %v2715 = vld [vmem:[%s1115 + $0x10] sm:$0xff]
        %v2716 = vld [vmem:[%s1115 + $0x18] sm:$0xff]
        %v2717 = vld [vmem:[%s1115 + $0x20] sm:$0xff]
        %v2718 = vld [vmem:[%s1115 + $0x28] sm:$0xff]
        %v2719 = vld [vmem:[%s1115 + $0x30] sm:$0xff]
        %v2720 = vld [vmem:[%s1115 + $0x38] sm:$0xff]
        %v2721 = vld [vmem:[%s1115 + $0x40] sm:$0xff]
        %v2722 = vld [vmem:[%s1115 + $0x48] sm:$0xff]
        %v2723 = vld [vmem:[%s1115 + $0x50] sm:$0xff]
        %v2724 = vld [vmem:[%s1115 + $0x58] sm:$0xff]
        %v2725 = vld [vmem:[%s1115 + $0x60] sm:$0xff]
        %v2726 = vld [vmem:[%s1115 + $0x68] sm:$0xff]
        %v2727 = vld [vmem:[%s1115 + $0x70] sm:$0xff]
        %v2728 = vld [vmem:[%s1115 + $0x78] sm:$0xff]
        %v2729 = vld [vmem:[%s1115 + $0x80] sm:$0xff]
        %v2730 = vld [vmem:[%s1115 + $0x88] sm:$0xff]
        %v2731 = vld [vmem:[%s1115 + $0x90] sm:$0xff]
        %v2732 = vld [vmem:[%s1115 + $0x98] sm:$0xff]
        %v2733 = vld [vmem:[%s1115 + $0xa0] sm:$0xff]
        %v2734 = vld [vmem:[%s1115 + $0xa8] sm:$0xff]
        %v2735 = vld [vmem:[%s1115 + $0xb0] sm:$0xff]
        %v2736 = vld [vmem:[%s1115 + $0xb8] sm:$0xff]
        %v2737 = vld [vmem:[%s1115 + $0xc0] sm:$0xff]
        %v2738 = vld [vmem:[%s1115 + $0xc8] sm:$0xff]
        %v2739 = vld [vmem:[%s1115 + $0xd0] sm:$0xff]
        %v2740 = vld [vmem:[%s1115 + $0xd8] sm:$0xff]
        %v2741 = vld [vmem:[%s1115 + $0xe0] sm:$0xff]
        %v2742 = vld [vmem:[%s1115 + $0xe8] sm:$0xff]
        %v2743 = vld [vmem:[%s1115 + $0xf0] sm:$0xff]
        %v2744 = vld [vmem:[%s1115 + $0xf8] sm:$0xff]
        %v2745 = vld [vmem:[%s1095 + $0x10] sm:$0xff]
        %v2746 = vld [vmem:[%s1095 + $0x18] sm:$0xff]
        %v2747 = vld [vmem:[%s1095 + $0x50] sm:$0xff]
        %v2748 = vld [vmem:[%s1095 + $0x58] sm:$0xff]
        %v2749 = vld [vmem:[%s1095 + $0x90] sm:$0xff]
        %v2750 = vld [vmem:[%s1095 + $0x98] sm:$0xff]
        %v2751 = vld [vmem:[%s1095 + $0xd0] sm:$0xff]
        %v2752 = vld [vmem:[%s1095 + $0xd8] sm:$0xff]
        %v2753 = vld [vmem:[%s1095 + $0x110] sm:$0xff]
        %v2754 = vld [vmem:[%s1095 + $0x118] sm:$0xff]
        %v2755 = vld [vmem:[%s1095 + $0x150] sm:$0xff]
        %v2756 = vld [vmem:[%s1095 + $0x158] sm:$0xff]
        %v2757 = vld [vmem:[%s1095 + $0x190] sm:$0xff]
        %v2758 = vld [vmem:[%s1095 + $0x198] sm:$0xff]
        %v2759 = vld [vmem:[%s1095 + $0x1d0] sm:$0xff]
        %v2760 = vld [vmem:[%s1095 + $0x1d8] sm:$0xff]
        %v2761 = vld [vmem:[%s1095 + $0x210] sm:$0xff]
        %v2762 = vld [vmem:[%s1095 + $0x218] sm:$0xff]
        %v2763 = vld [vmem:[%s1095 + $0x250] sm:$0xff]
        %v2764 = vld [vmem:[%s1095 + $0x258] sm:$0xff]
        %v2765 = vld [vmem:[%s1095 + $0x290] sm:$0xff]
        %v2766 = vld [vmem:[%s1095 + $0x298] sm:$0xff]
        %v2767 = vld [vmem:[%s1095 + $0x2d0] sm:$0xff]
        %v2768 = vld [vmem:[%s1095 + $0x2d8] sm:$0xff]
        %v2769 = vld [vmem:[%s1095 + $0x310] sm:$0xff]
        %v2770 = vld [vmem:[%s1095 + $0x318] sm:$0xff]
        %v2771 = vld [vmem:[%s1095 + $0x350] sm:$0xff]
        %v2772 = vld [vmem:[%s1095 + $0x358] sm:$0xff]
        %v2773 = vld [vmem:[%s1095 + $0x390] sm:$0xff]
        %v2774 = vld [vmem:[%s1095 + $0x398] sm:$0xff]
        %v2775 = vld [vmem:[%s1095 + $0x3d0] sm:$0xff]
        %v2776 = vld [vmem:[%s1095 + $0x3d8] sm:$0xff]
        %2777 = vmatpush.msra.mxu0 %v2775
        %2778 = vmatpush.msra.mxu0 %v2773
        %2779 = vmatpush.msra.mxu0 %v2771
        %2780 = vmatpush.msra.mxu0 %v2769
        %2781 = vmatpush.msra.mxu0 %v2767
        %2782 = vmatpush.msra.mxu0 %v2765
        %2783 = vmatpush.msra.mxu0 %v2763
        %2784 = vmatpush.msra.mxu0 %v2761
        %2785 = vmatpush.msra.mxu0 %v2759
        %2786 = vmatpush.msra.mxu0 %v2757
        %2787 = vmatpush.msra.mxu0 %v2755
        %2788 = vmatpush.msra.mxu0 %v2753
        %2789 = vmatpush.msra.mxu0 %v2751
        %2790 = vmatpush.msra.mxu0 %v2749
        %2791 = vmatpush.msra.mxu0 %v2747
        %2792 = vmatpush.msra.mxu0 %v2745
        %2793 = vmatmul.f32.gmra.mxu0 %v2343
        %v2794 = vpop.f32.mrf.mxu0
        %v2795 = vadd.f32 0.0, %v2794
        %2796 = vmatmul.f32.gmra.mxu0 %v2344
        %v2797 = vpop.f32.mrf.mxu0
        %v2798 = vadd.f32 0.0, %v2797
        %2799 = vdwg.mxu0
        %2800 = vmatpush.msra.mxu0 %v2776
        %2801 = vmatpush.msra.mxu0 %v2774
        %2802 = vmatpush.msra.mxu0 %v2772
        %2803 = vmatpush.msra.mxu0 %v2770
        %2804 = vmatpush.msra.mxu0 %v2768
        %2805 = vmatpush.msra.mxu0 %v2766
        %2806 = vmatpush.msra.mxu0 %v2764
        %2807 = vmatpush.msra.mxu0 %v2762
        %2808 = vmatpush.msra.mxu0 %v2760
        %2809 = vmatpush.msra.mxu0 %v2758
        %2810 = vmatpush.msra.mxu0 %v2756
        %2811 = vmatpush.msra.mxu0 %v2754
        %2812 = vmatpush.msra.mxu0 %v2752
        %2813 = vmatpush.msra.mxu0 %v2750
        %2814 = vmatpush.msra.mxu0 %v2748
        %2815 = vmatpush.msra.mxu0 %v2746
        %2816 = vmatmul.f32.gmra.mxu0 %v2343
        %v2817 = vpop.f32.mrf.mxu0
        %v2818 = vadd.f32 0.0, %v2817
        %2819 = vmatmul.f32.gmra.mxu0 %v2344
        %v2820 = vpop.f32.mrf.mxu0
        %v2821 = vadd.f32 0.0, %v2820
        %2822 = vdwg.mxu0
        %v2823 = vld [vmem:[%s1105 + $0x10] sm:$0xff]
        %v2824 = vld [vmem:[%s1105 + $0x18] sm:$0xff]
        %v2825 = vld [vmem:[%s1105 + $0x50] sm:$0xff]
        %v2826 = vld [vmem:[%s1105 + $0x58] sm:$0xff]
        %v2827 = vld [vmem:[%s1105 + $0x90] sm:$0xff]
        %v2828 = vld [vmem:[%s1105 + $0x98] sm:$0xff]
        %v2829 = vld [vmem:[%s1105 + $0xd0] sm:$0xff]
        %v2830 = vld [vmem:[%s1105 + $0xd8] sm:$0xff]
        %v2831 = vld [vmem:[%s1105 + $0x110] sm:$0xff]
        %v2832 = vld [vmem:[%s1105 + $0x118] sm:$0xff]
        %v2833 = vld [vmem:[%s1105 + $0x150] sm:$0xff]
        %v2834 = vld [vmem:[%s1105 + $0x158] sm:$0xff]
        %v2835 = vld [vmem:[%s1105 + $0x190] sm:$0xff]
        %v2836 = vld [vmem:[%s1105 + $0x198] sm:$0xff]
        %v2837 = vld [vmem:[%s1105 + $0x1d0] sm:$0xff]
        %v2838 = vld [vmem:[%s1105 + $0x1d8] sm:$0xff]
        %v2839 = vld [vmem:[%s1105 + $0x210] sm:$0xff]
        %v2840 = vld [vmem:[%s1105 + $0x218] sm:$0xff]
        %v2841 = vld [vmem:[%s1105 + $0x250] sm:$0xff]
        %v2842 = vld [vmem:[%s1105 + $0x258] sm:$0xff]
        %v2843 = vld [vmem:[%s1105 + $0x290] sm:$0xff]
        %v2844 = vld [vmem:[%s1105 + $0x298] sm:$0xff]
        %v2845 = vld [vmem:[%s1105 + $0x2d0] sm:$0xff]
        %v2846 = vld [vmem:[%s1105 + $0x2d8] sm:$0xff]
        %v2847 = vld [vmem:[%s1105 + $0x310] sm:$0xff]
        %v2848 = vld [vmem:[%s1105 + $0x318] sm:$0xff]
        %v2849 = vld [vmem:[%s1105 + $0x350] sm:$0xff]
        %v2850 = vld [vmem:[%s1105 + $0x358] sm:$0xff]
        %v2851 = vld [vmem:[%s1105 + $0x390] sm:$0xff]
        %v2852 = vld [vmem:[%s1105 + $0x398] sm:$0xff]
        %v2853 = vld [vmem:[%s1105 + $0x3d0] sm:$0xff]
        %v2854 = vld [vmem:[%s1105 + $0x3d8] sm:$0xff]
        %2855 = vmatpush.msra.mxu0 %v2853
        %2856 = vmatpush.msra.mxu0 %v2851
        %2857 = vmatpush.msra.mxu0 %v2849
        %2858 = vmatpush.msra.mxu0 %v2847
        %2859 = vmatpush.msra.mxu0 %v2845
        %2860 = vmatpush.msra.mxu0 %v2843
        %2861 = vmatpush.msra.mxu0 %v2841
        %2862 = vmatpush.msra.mxu0 %v2839
        %2863 = vmatpush.msra.mxu0 %v2837
        %2864 = vmatpush.msra.mxu0 %v2835
        %2865 = vmatpush.msra.mxu0 %v2833
        %2866 = vmatpush.msra.mxu0 %v2831
        %2867 = vmatpush.msra.mxu0 %v2829
        %2868 = vmatpush.msra.mxu0 %v2827
        %2869 = vmatpush.msra.mxu0 %v2825
        %2870 = vmatpush.msra.mxu0 %v2823
        %2871 = vmatmul.f32.gmra.mxu0 %v2343
        %v2872 = vpop.f32.mrf.mxu0
        %v2873 = vadd.f32 0.0, %v2872
        %2874 = vmatmul.f32.gmra.mxu0 %v2344
        %v2875 = vpop.f32.mrf.mxu0
        %v2876 = vadd.f32 0.0, %v2875
        %2877 = vdwg.mxu0
        %2878 = vmatpush.msra.mxu0 %v2854
        %2879 = vmatpush.msra.mxu0 %v2852
        %2880 = vmatpush.msra.mxu0 %v2850
        %2881 = vmatpush.msra.mxu0 %v2848
        %2882 = vmatpush.msra.mxu0 %v2846
        %2883 = vmatpush.msra.mxu0 %v2844
        %2884 = vmatpush.msra.mxu0 %v2842
        %2885 = vmatpush.msra.mxu0 %v2840
        %2886 = vmatpush.msra.mxu0 %v2838
        %2887 = vmatpush.msra.mxu0 %v2836
        %2888 = vmatpush.msra.mxu0 %v2834
        %2889 = vmatpush.msra.mxu0 %v2832
        %2890 = vmatpush.msra.mxu0 %v2830
        %2891 = vmatpush.msra.mxu0 %v2828
        %2892 = vmatpush.msra.mxu0 %v2826
        %2893 = vmatpush.msra.mxu0 %v2824
        %2894 = vmatmul.f32.gmra.mxu0 %v2343
        %v2895 = vpop.f32.mrf.mxu0
        %v2896 = vadd.f32 0.0, %v2895
        %2897 = vmatmul.f32.gmra.mxu0 %v2344
        %v2898 = vpop.f32.mrf.mxu0
        %v2899 = vadd.f32 0.0, %v2898
        %2900 = vdwg.mxu0
        %v2901 = vld [vmem:[%s19 + $0x8] sm:$0xff]
        %2903 = vst [vmem:[#allocation1] ss:$2 sm:$0xff] %v2901
        %v2904 = vld.sshfl [vmem:[#allocation1] sm:$0xff pattern:$0x75316420]
        %v2905 = vld.sshfl [vmem:[#allocation1 + $0x8] sm:$0xff pattern:$0x75316420]
        %v2906 = vsel %vm2574, %v2904, 0
        %v2908 = vsel %vm2574, %v2905, 0
        %2910 = vmatpush.msra.mxu0 0.0
        %2911 = vmatpush.msra.mxu0 0.0
        %2912 = vmatpush.msra.mxu0 0.0
        %2913 = vmatpush.msra.mxu0 0.0
        %2914 = vmatpush.msra.mxu0 0.0
        %2915 = vmatpush.msra.mxu0 0.0
        %2916 = vmatpush.msra.mxu0 0.0
        %2917 = vmatpush.msra.mxu0 0.0
        %2918 = vmatpush.msra.mxu0 0.0
        %2919 = vmatpush.msra.mxu0 0.0
        %2920 = vmatpush.msra.mxu0 0.0
        %2921 = vmatpush.msra.mxu0 0.0
        %2922 = vmatpush.msra.mxu0 0.0
        %2923 = vmatpush.msra.mxu0 0.0
        %2924 = vmatpush.msra.mxu0 0.0
        %2925 = vmatpush.msra.mxu0 %v2906
        %2926 = vmatmul.f32.gmra.mxu0 %v2569
        %v2927 = vpop.f32.mrf.mxu0
        %v2928 = vadd.f32 0.0, %v2927
        %2929 = vmatmul.f32.gmra.mxu0 %v2572
        %v2930 = vpop.f32.mrf.mxu0
        %v2931 = vadd.f32 0.0, %v2930
        %2932 = vdwg.mxu0
        %2933 = vmatpush.msra.mxu0 0.0
        %2934 = vmatpush.msra.mxu0 0.0
        %2935 = vmatpush.msra.mxu0 0.0
        %2936 = vmatpush.msra.mxu0 0.0
        %2937 = vmatpush.msra.mxu0 0.0
        %2938 = vmatpush.msra.mxu0 0.0
        %2939 = vmatpush.msra.mxu0 0.0
        %2940 = vmatpush.msra.mxu0 0.0
        %2941 = vmatpush.msra.mxu0 0.0
        %2942 = vmatpush.msra.mxu0 0.0
        %2943 = vmatpush.msra.mxu0 0.0
        %2944 = vmatpush.msra.mxu0 0.0
        %2945 = vmatpush.msra.mxu0 0.0
        %2946 = vmatpush.msra.mxu0 0.0
        %2947 = vmatpush.msra.mxu0 0.0
        %2948 = vmatpush.msra.mxu0 %v2908
        %2949 = vmatmul.f32.gmra.mxu0 %v2569
        %v2950 = vpop.f32.mrf.mxu0
        %v2951 = vadd.f32 0.0, %v2950
        %2952 = vmatmul.f32.gmra.mxu0 %v2572
        %v2953 = vpop.f32.mrf.mxu0
        %v2954 = vadd.f32 0.0, %v2953
        %2955 = vdwg.mxu0
        %v2956 = vmul.f32 %v2795, %v2928
        %v2957 = vmul.f32 %v2818, %v2951
        %v2958 = vmul.f32 %v2798, %v2931
        %v2959 = vmul.f32 %v2821, %v2954
        %v2960 = vxor.u32 %v2956, 2147483648
        %v2961 = vxor.u32 %v2957, 2147483648
        %v2962 = vxor.u32 %v2958, 2147483648
        %v2963 = vxor.u32 %v2959, 2147483648
        %v2964 = vmul.f32 %v2960, 1.442695
        %v2965 = vpow.pop %v2964
        %v2966 = vmul.f32 %v2961, 1.442695
        %v2967 = vpow.pop %v2966
        %v2968 = vmul.f32 %v2962, 1.442695
        %v2969 = vpow.pop %v2968
        %v2970 = vmul.f32 %v2963, 1.442695
        %v2971 = vpow.pop %v2970
        %v2972 = vadd.f32 %v2965, 1.0
        %v2973 = vadd.f32 %v2967, 1.0
        %v2974 = vadd.f32 %v2969, 1.0
        %v2975 = vadd.f32 %v2971, 1.0
        %v2976 = vrcp.pop %v2972
        %v2977 = vmul.f32 %v2972, %v2976
        %v2978 = vsub.f32 1.0, %v2977
        %v2979 = vmul.f32 %v2976, %v2978
        %v2980 = vadd.f32 %v2976, %v2979
        %vm2981 = vweird.f32 %v2972
        %vm2982 = vweird.f32 %v2976
        %vm2983 = vmor %vm2981, %vm2982
        %v2984 = vsel %vm2983, %v2976, %v2980
        %v2985 = vand.u32 2147483647, %v2972
        %vm2986 = vcmp.eq.f32.partialorder %v2985, 8.507059e+37
        %v2987 = vand.u32 %v2972, 2147483648
        %v2988 = vor.u32 1.1754944e-38, %v2987
        %v2989 = vsel %vm2986, %v2988, %v2984
        %v2990 = vmul.f32 1.0, %v2989
        %v2991 = vrcp.pop %v2973
        %v2992 = vmul.f32 %v2973, %v2991
        %v2993 = vsub.f32 1.0, %v2992
        %v2994 = vmul.f32 %v2991, %v2993
        %v2995 = vadd.f32 %v2991, %v2994
        %vm2996 = vweird.f32 %v2973
        %vm2997 = vweird.f32 %v2991
        %vm2998 = vmor %vm2996, %vm2997
        %v2999 = vsel %vm2998, %v2991, %v2995
        %v3000 = vand.u32 2147483647, %v2973
        %vm3001 = vcmp.eq.f32.partialorder %v3000, 8.507059e+37
        %v3002 = vand.u32 %v2973, 2147483648
        %v3003 = vor.u32 1.1754944e-38, %v3002
        %v3004 = vsel %vm3001, %v3003, %v2999
        %v3005 = vmul.f32 1.0, %v3004
        %v3006 = vrcp.pop %v2974
        %v3007 = vmul.f32 %v2974, %v3006
        %v3008 = vsub.f32 1.0, %v3007
        %v3009 = vmul.f32 %v3006, %v3008
        %v3010 = vadd.f32 %v3006, %v3009
        %vm3011 = vweird.f32 %v2974
        %vm3012 = vweird.f32 %v3006
        %vm3013 = vmor %vm3011, %vm3012
        %v3014 = vsel %vm3013, %v3006, %v3010
        %v3015 = vand.u32 2147483647, %v2974
        %vm3016 = vcmp.eq.f32.partialorder %v3015, 8.507059e+37
        %v3017 = vand.u32 %v2974, 2147483648
        %v3018 = vor.u32 1.1754944e-38, %v3017
        %v3019 = vsel %vm3016, %v3018, %v3014
        %v3020 = vmul.f32 1.0, %v3019
        %v3021 = vrcp.pop %v2975
        %v3022 = vmul.f32 %v2975, %v3021
        %v3023 = vsub.f32 1.0, %v3022
        %v3024 = vmul.f32 %v3021, %v3023
        %v3025 = vadd.f32 %v3021, %v3024
        %vm3026 = vweird.f32 %v2975
        %vm3027 = vweird.f32 %v3021
        %vm3028 = vmor %vm3026, %vm3027
        %v3029 = vsel %vm3028, %v3021, %v3025
        %v3030 = vand.u32 2147483647, %v2975
        %vm3031 = vcmp.eq.f32.partialorder %v3030, 8.507059e+37
        %v3032 = vand.u32 %v2975, 2147483648
        %v3033 = vor.u32 1.1754944e-38, %v3032
        %v3034 = vsel %vm3031, %v3033, %v3029
        %v3035 = vmul.f32 1.0, %v3034
        %v3036 = vmul.f32 %v2956, %v2990
        %v3037 = vmul.f32 %v2957, %v3005
        %v3038 = vmul.f32 %v2958, %v3020
        %v3039 = vmul.f32 %v2959, %v3035
        %v3040 = vmul.f32 %v3036, %v2873
        %v3041 = vmul.f32 %v3037, %v2896
        %v3042 = vmul.f32 %v3038, %v2876
        %v3043 = vmul.f32 %v3039, %v2899
        %v3044 = vld [vmem:[%s1115 + $0x100] sm:$0xff]
        %v3045 = vld [vmem:[%s1115 + $0x108] sm:$0xff]
        %v3046 = vld [vmem:[%s1115 + $0x110] sm:$0xff]
        %v3047 = vld [vmem:[%s1115 + $0x118] sm:$0xff]
        %v3048 = vld [vmem:[%s1115 + $0x120] sm:$0xff]
        %v3049 = vld [vmem:[%s1115 + $0x128] sm:$0xff]
        %v3050 = vld [vmem:[%s1115 + $0x130] sm:$0xff]
        %v3051 = vld [vmem:[%s1115 + $0x138] sm:$0xff]
        %v3052 = vld [vmem:[%s1115 + $0x140] sm:$0xff]
        %v3053 = vld [vmem:[%s1115 + $0x148] sm:$0xff]
        %v3054 = vld [vmem:[%s1115 + $0x150] sm:$0xff]
        %v3055 = vld [vmem:[%s1115 + $0x158] sm:$0xff]
        %v3056 = vld [vmem:[%s1115 + $0x160] sm:$0xff]
        %v3057 = vld [vmem:[%s1115 + $0x168] sm:$0xff]
        %v3058 = vld [vmem:[%s1115 + $0x170] sm:$0xff]
        %v3059 = vld [vmem:[%s1115 + $0x178] sm:$0xff]
        %v3060 = vld [vmem:[%s1115 + $0x180] sm:$0xff]
        %v3061 = vld [vmem:[%s1115 + $0x188] sm:$0xff]
        %v3062 = vld [vmem:[%s1115 + $0x190] sm:$0xff]
        %v3063 = vld [vmem:[%s1115 + $0x198] sm:$0xff]
        %v3064 = vld [vmem:[%s1115 + $0x1a0] sm:$0xff]
        %v3065 = vld [vmem:[%s1115 + $0x1a8] sm:$0xff]
        %v3066 = vld [vmem:[%s1115 + $0x1b0] sm:$0xff]
        %v3067 = vld [vmem:[%s1115 + $0x1b8] sm:$0xff]
        %v3068 = vld [vmem:[%s1115 + $0x1c0] sm:$0xff]
        %v3069 = vld [vmem:[%s1115 + $0x1c8] sm:$0xff]
        %v3070 = vld [vmem:[%s1115 + $0x1d0] sm:$0xff]
        %v3071 = vld [vmem:[%s1115 + $0x1d8] sm:$0xff]
        %v3072 = vld [vmem:[%s1115 + $0x1e0] sm:$0xff]
        %v3073 = vld [vmem:[%s1115 + $0x1e8] sm:$0xff]
        %v3074 = vld [vmem:[%s1115 + $0x1f0] sm:$0xff]
        %v3075 = vld [vmem:[%s1115 + $0x1f8] sm:$0xff]
        %3076 = vmatpush.msra.mxu0 %v3059
        %3077 = vmatpush.msra.mxu0 %v3058
        %3078 = vmatpush.msra.mxu0 %v3057
        %3079 = vmatpush.msra.mxu0 %v3056
        %3080 = vmatpush.msra.mxu0 %v3055
        %3081 = vmatpush.msra.mxu0 %v3054
        %3082 = vmatpush.msra.mxu0 %v3053
        %3083 = vmatpush.msra.mxu0 %v3052
        %3084 = vmatpush.msra.mxu0 %v3051
        %3085 = vmatpush.msra.mxu0 %v3050
        %3086 = vmatpush.msra.mxu0 %v3049
        %3087 = vmatpush.msra.mxu0 %v3048
        %3088 = vmatpush.msra.mxu0 %v3047
        %3089 = vmatpush.msra.mxu0 %v3046
        %3090 = vmatpush.msra.mxu0 %v3045
        %3091 = vmatpush.msra.mxu0 %v3044
        %3092 = vmatmul.f32.gmra.mxu0 %v3040
        %v3093 = vpop.f32.mrf.mxu0
        %v3094 = vadd.f32 0.0, %v3093
        %3095 = vmatmul.f32.gmra.mxu0 %v3042
        %v3096 = vpop.f32.mrf.mxu0
        %v3097 = vadd.f32 0.0, %v3096
        %3098 = vdwg.mxu0
        %3099 = vmatpush.msra.mxu0 %v3075
        %3100 = vmatpush.msra.mxu0 %v3074
        %3101 = vmatpush.msra.mxu0 %v3073
        %3102 = vmatpush.msra.mxu0 %v3072
        %3103 = vmatpush.msra.mxu0 %v3071
        %3104 = vmatpush.msra.mxu0 %v3070
        %3105 = vmatpush.msra.mxu0 %v3069
        %3106 = vmatpush.msra.mxu0 %v3068
        %3107 = vmatpush.msra.mxu0 %v3067
        %3108 = vmatpush.msra.mxu0 %v3066
        %3109 = vmatpush.msra.mxu0 %v3065
        %3110 = vmatpush.msra.mxu0 %v3064
        %3111 = vmatpush.msra.mxu0 %v3063
        %3112 = vmatpush.msra.mxu0 %v3062
        %3113 = vmatpush.msra.mxu0 %v3061
        %3114 = vmatpush.msra.mxu0 %v3060
        %3115 = vmatmul.f32.gmra.mxu0 %v3041
        %v3116 = vpop.f32.mrf.mxu0
        %v3117 = vadd.f32 %v3094, %v3116
        %3118 = vmatmul.f32.gmra.mxu0 %v3043
        %v3119 = vpop.f32.mrf.mxu0
        %v3120 = vadd.f32 %v3097, %v3119
        %3121 = vdwg.mxu0
        %3122 = vmatpush.msra.mxu0 %v2728
        %3123 = vmatpush.msra.mxu0 %v2727
        %3124 = vmatpush.msra.mxu0 %v2726
        %3125 = vmatpush.msra.mxu0 %v2725
        %3126 = vmatpush.msra.mxu0 %v2724
        %3127 = vmatpush.msra.mxu0 %v2723
        %3128 = vmatpush.msra.mxu0 %v2722
        %3129 = vmatpush.msra.mxu0 %v2721
        %3130 = vmatpush.msra.mxu0 %v2720
        %3131 = vmatpush.msra.mxu0 %v2719
        %3132 = vmatpush.msra.mxu0 %v2718
        %3133 = vmatpush.msra.mxu0 %v2717
        %3134 = vmatpush.msra.mxu0 %v2716
        %3135 = vmatpush.msra.mxu0 %v2715
        %3136 = vmatpush.msra.mxu0 %v2714
        %3137 = vmatpush.msra.mxu0 %v2713
        %3138 = vmatmul.f32.gmra.mxu0 %v2709
        %v3139 = vpop.f32.mrf.mxu0
        %v3140 = vadd.f32 %v3117, %v3139
        %3141 = vmatmul.f32.gmra.mxu0 %v2711
        %v3142 = vpop.f32.mrf.mxu0
        %v3143 = vadd.f32 %v3120, %v3142
        %3144 = vdwg.mxu0
        %3145 = vmatpush.msra.mxu0 %v2744
        %3146 = vmatpush.msra.mxu0 %v2743
        %3147 = vmatpush.msra.mxu0 %v2742
        %3148 = vmatpush.msra.mxu0 %v2741
        %3149 = vmatpush.msra.mxu0 %v2740
        %3150 = vmatpush.msra.mxu0 %v2739
        %3151 = vmatpush.msra.mxu0 %v2738
        %3152 = vmatpush.msra.mxu0 %v2737
        %3153 = vmatpush.msra.mxu0 %v2736
        %3154 = vmatpush.msra.mxu0 %v2735
        %3155 = vmatpush.msra.mxu0 %v2734
        %3156 = vmatpush.msra.mxu0 %v2733
        %3157 = vmatpush.msra.mxu0 %v2732
        %3158 = vmatpush.msra.mxu0 %v2731
        %3159 = vmatpush.msra.mxu0 %v2730
        %3160 = vmatpush.msra.mxu0 %v2729
        %3161 = vmatmul.f32.gmra.mxu0 %v2710
        %v3162 = vpop.f32.mrf.mxu0
        %v3163 = vadd.f32 %v3140, %v3162
        %3164 = vmatmul.f32.gmra.mxu0 %v2712
        %v3165 = vpop.f32.mrf.mxu0
        %v3166 = vadd.f32 %v3143, %v3165
        %3167 = vdwg.mxu0
        %v3168 = vld [vmem:[%s1095 + $0x20] sm:$0xff]
        %v3169 = vld [vmem:[%s1095 + $0x28] sm:$0xff]
        %v3170 = vld [vmem:[%s1095 + $0x60] sm:$0xff]
        %v3171 = vld [vmem:[%s1095 + $0x68] sm:$0xff]
        %v3172 = vld [vmem:[%s1095 + $0xa0] sm:$0xff]
        %v3173 = vld [vmem:[%s1095 + $0xa8] sm:$0xff]
        %v3174 = vld [vmem:[%s1095 + $0xe0] sm:$0xff]
        %v3175 = vld [vmem:[%s1095 + $0xe8] sm:$0xff]
        %v3176 = vld [vmem:[%s1095 + $0x120] sm:$0xff]
        %v3177 = vld [vmem:[%s1095 + $0x128] sm:$0xff]
        %v3178 = vld [vmem:[%s1095 + $0x160] sm:$0xff]
        %v3179 = vld [vmem:[%s1095 + $0x168] sm:$0xff]
        %v3180 = vld [vmem:[%s1095 + $0x1a0] sm:$0xff]
        %v3181 = vld [vmem:[%s1095 + $0x1a8] sm:$0xff]
        %v3182 = vld [vmem:[%s1095 + $0x1e0] sm:$0xff]
        %v3183 = vld [vmem:[%s1095 + $0x1e8] sm:$0xff]
        %v3184 = vld [vmem:[%s1095 + $0x220] sm:$0xff]
        %v3185 = vld [vmem:[%s1095 + $0x228] sm:$0xff]
        %v3186 = vld [vmem:[%s1095 + $0x260] sm:$0xff]
        %v3187 = vld [vmem:[%s1095 + $0x268] sm:$0xff]
        %v3188 = vld [vmem:[%s1095 + $0x2a0] sm:$0xff]
        %v3189 = vld [vmem:[%s1095 + $0x2a8] sm:$0xff]
        %v3190 = vld [vmem:[%s1095 + $0x2e0] sm:$0xff]
        %v3191 = vld [vmem:[%s1095 + $0x2e8] sm:$0xff]
        %v3192 = vld [vmem:[%s1095 + $0x320] sm:$0xff]
        %v3193 = vld [vmem:[%s1095 + $0x328] sm:$0xff]
        %v3194 = vld [vmem:[%s1095 + $0x360] sm:$0xff]
        %v3195 = vld [vmem:[%s1095 + $0x368] sm:$0xff]
        %v3196 = vld [vmem:[%s1095 + $0x3a0] sm:$0xff]
        %v3197 = vld [vmem:[%s1095 + $0x3a8] sm:$0xff]
        %v3198 = vld [vmem:[%s1095 + $0x3e0] sm:$0xff]
        %v3199 = vld [vmem:[%s1095 + $0x3e8] sm:$0xff]
        %3200 = vmatpush.msra.mxu0 %v3198
        %3201 = vmatpush.msra.mxu0 %v3196
        %3202 = vmatpush.msra.mxu0 %v3194
        %3203 = vmatpush.msra.mxu0 %v3192
        %3204 = vmatpush.msra.mxu0 %v3190
        %3205 = vmatpush.msra.mxu0 %v3188
        %3206 = vmatpush.msra.mxu0 %v3186
        %3207 = vmatpush.msra.mxu0 %v3184
        %3208 = vmatpush.msra.mxu0 %v3182
        %3209 = vmatpush.msra.mxu0 %v3180
        %3210 = vmatpush.msra.mxu0 %v3178
        %3211 = vmatpush.msra.mxu0 %v3176
        %3212 = vmatpush.msra.mxu0 %v3174
        %3213 = vmatpush.msra.mxu0 %v3172
        %3214 = vmatpush.msra.mxu0 %v3170
        %3215 = vmatpush.msra.mxu0 %v3168
        %3216 = vmatmul.f32.gmra.mxu0 %v2343
        %v3217 = vpop.f32.mrf.mxu0
        %v3218 = vadd.f32 0.0, %v3217
        %3219 = vmatmul.f32.gmra.mxu0 %v2344
        %v3220 = vpop.f32.mrf.mxu0
        %v3221 = vadd.f32 0.0, %v3220
        %3222 = vdwg.mxu0
        %3223 = vmatpush.msra.mxu0 %v3199
        %3224 = vmatpush.msra.mxu0 %v3197
        %3225 = vmatpush.msra.mxu0 %v3195
        %3226 = vmatpush.msra.mxu0 %v3193
        %3227 = vmatpush.msra.mxu0 %v3191
        %3228 = vmatpush.msra.mxu0 %v3189
        %3229 = vmatpush.msra.mxu0 %v3187
        %3230 = vmatpush.msra.mxu0 %v3185
        %3231 = vmatpush.msra.mxu0 %v3183
        %3232 = vmatpush.msra.mxu0 %v3181
        %3233 = vmatpush.msra.mxu0 %v3179
        %3234 = vmatpush.msra.mxu0 %v3177
        %3235 = vmatpush.msra.mxu0 %v3175
        %3236 = vmatpush.msra.mxu0 %v3173
        %3237 = vmatpush.msra.mxu0 %v3171
        %3238 = vmatpush.msra.mxu0 %v3169
        %3239 = vmatmul.f32.gmra.mxu0 %v2343
        %v3240 = vpop.f32.mrf.mxu0
        %v3241 = vadd.f32 0.0, %v3240
        %3242 = vmatmul.f32.gmra.mxu0 %v2344
        %v3243 = vpop.f32.mrf.mxu0
        %v3244 = vadd.f32 0.0, %v3243
        %3245 = vdwg.mxu0
        %v3246 = vld [vmem:[%s1105 + $0x20] sm:$0xff]
        %v3247 = vld [vmem:[%s1105 + $0x28] sm:$0xff]
        %v3248 = vld [vmem:[%s1105 + $0x60] sm:$0xff]
        %v3249 = vld [vmem:[%s1105 + $0x68] sm:$0xff]
        %v3250 = vld [vmem:[%s1105 + $0xa0] sm:$0xff]
        %v3251 = vld [vmem:[%s1105 + $0xa8] sm:$0xff]
        %v3252 = vld [vmem:[%s1105 + $0xe0] sm:$0xff]
        %v3253 = vld [vmem:[%s1105 + $0xe8] sm:$0xff]
        %v3254 = vld [vmem:[%s1105 + $0x120] sm:$0xff]
        %v3255 = vld [vmem:[%s1105 + $0x128] sm:$0xff]
        %v3256 = vld [vmem:[%s1105 + $0x160] sm:$0xff]
        %v3257 = vld [vmem:[%s1105 + $0x168] sm:$0xff]
        %v3258 = vld [vmem:[%s1105 + $0x1a0] sm:$0xff]
        %v3259 = vld [vmem:[%s1105 + $0x1a8] sm:$0xff]
        %v3260 = vld [vmem:[%s1105 + $0x1e0] sm:$0xff]
        %v3261 = vld [vmem:[%s1105 + $0x1e8] sm:$0xff]
        %v3262 = vld [vmem:[%s1105 + $0x220] sm:$0xff]
        %v3263 = vld [vmem:[%s1105 + $0x228] sm:$0xff]
        %v3264 = vld [vmem:[%s1105 + $0x260] sm:$0xff]
        %v3265 = vld [vmem:[%s1105 + $0x268] sm:$0xff]
        %v3266 = vld [vmem:[%s1105 + $0x2a0] sm:$0xff]
        %v3267 = vld [vmem:[%s1105 + $0x2a8] sm:$0xff]
        %v3268 = vld [vmem:[%s1105 + $0x2e0] sm:$0xff]
        %v3269 = vld [vmem:[%s1105 + $0x2e8] sm:$0xff]
        %v3270 = vld [vmem:[%s1105 + $0x320] sm:$0xff]
        %v3271 = vld [vmem:[%s1105 + $0x328] sm:$0xff]
        %v3272 = vld [vmem:[%s1105 + $0x360] sm:$0xff]
        %v3273 = vld [vmem:[%s1105 + $0x368] sm:$0xff]
        %v3274 = vld [vmem:[%s1105 + $0x3a0] sm:$0xff]
        %v3275 = vld [vmem:[%s1105 + $0x3a8] sm:$0xff]
        %v3276 = vld [vmem:[%s1105 + $0x3e0] sm:$0xff]
        %v3277 = vld [vmem:[%s1105 + $0x3e8] sm:$0xff]
        %3278 = vmatpush.msra.mxu0 %v3276
        %3279 = vmatpush.msra.mxu0 %v3274
        %3280 = vmatpush.msra.mxu0 %v3272
        %3281 = vmatpush.msra.mxu0 %v3270
        %3282 = vmatpush.msra.mxu0 %v3268
        %3283 = vmatpush.msra.mxu0 %v3266
        %3284 = vmatpush.msra.mxu0 %v3264
        %3285 = vmatpush.msra.mxu0 %v3262
        %3286 = vmatpush.msra.mxu0 %v3260
        %3287 = vmatpush.msra.mxu0 %v3258
        %3288 = vmatpush.msra.mxu0 %v3256
        %3289 = vmatpush.msra.mxu0 %v3254
        %3290 = vmatpush.msra.mxu0 %v3252
        %3291 = vmatpush.msra.mxu0 %v3250
        %3292 = vmatpush.msra.mxu0 %v3248
        %3293 = vmatpush.msra.mxu0 %v3246
        %3294 = vmatmul.f32.gmra.mxu0 %v2343
        %v3295 = vpop.f32.mrf.mxu0
        %v3296 = vadd.f32 0.0, %v3295
        %3297 = vmatmul.f32.gmra.mxu0 %v2344
        %v3298 = vpop.f32.mrf.mxu0
        %v3299 = vadd.f32 0.0, %v3298
        %3300 = vdwg.mxu0
        %3301 = vmatpush.msra.mxu0 %v3277
        %3302 = vmatpush.msra.mxu0 %v3275
        %3303 = vmatpush.msra.mxu0 %v3273
        %3304 = vmatpush.msra.mxu0 %v3271
        %3305 = vmatpush.msra.mxu0 %v3269
        %3306 = vmatpush.msra.mxu0 %v3267
        %3307 = vmatpush.msra.mxu0 %v3265
        %3308 = vmatpush.msra.mxu0 %v3263
        %3309 = vmatpush.msra.mxu0 %v3261
        %3310 = vmatpush.msra.mxu0 %v3259
        %3311 = vmatpush.msra.mxu0 %v3257
        %3312 = vmatpush.msra.mxu0 %v3255
        %3313 = vmatpush.msra.mxu0 %v3253
        %3314 = vmatpush.msra.mxu0 %v3251
        %3315 = vmatpush.msra.mxu0 %v3249
        %3316 = vmatpush.msra.mxu0 %v3247
        %3317 = vmatmul.f32.gmra.mxu0 %v2343
        %v3318 = vpop.f32.mrf.mxu0
        %v3319 = vadd.f32 0.0, %v3318
        %3320 = vmatmul.f32.gmra.mxu0 %v2344
        %v3321 = vpop.f32.mrf.mxu0
        %v3322 = vadd.f32 0.0, %v3321
        %3323 = vdwg.mxu0
        %v3324 = vld [vmem:[%s19 + $0x10] sm:$0xff]
        %3326 = vst [vmem:[#allocation1] ss:$2 sm:$0xff] %v3324
        %v3327 = vld.sshfl [vmem:[#allocation1] sm:$0xff pattern:$0x75316420]
        %v3328 = vld.sshfl [vmem:[#allocation1 + $0x8] sm:$0xff pattern:$0x75316420]
        %v3329 = vsel %vm2574, %v3327, 0
        %v3331 = vsel %vm2574, %v3328, 0
        %3333 = vmatpush.msra.mxu0 0.0
        %3334 = vmatpush.msra.mxu0 0.0
        %3335 = vmatpush.msra.mxu0 0.0
        %3336 = vmatpush.msra.mxu0 0.0
        %3337 = vmatpush.msra.mxu0 0.0
        %3338 = vmatpush.msra.mxu0 0.0
        %3339 = vmatpush.msra.mxu0 0.0
        %3340 = vmatpush.msra.mxu0 0.0
        %3341 = vmatpush.msra.mxu0 0.0
        %3342 = vmatpush.msra.mxu0 0.0
        %3343 = vmatpush.msra.mxu0 0.0
        %3344 = vmatpush.msra.mxu0 0.0
        %3345 = vmatpush.msra.mxu0 0.0
        %3346 = vmatpush.msra.mxu0 0.0
        %3347 = vmatpush.msra.mxu0 0.0
        %3348 = vmatpush.msra.mxu0 %v3329
        %3349 = vmatmul.f32.gmra.mxu0 %v2569
        %v3350 = vpop.f32.mrf.mxu0
        %v3351 = vadd.f32 0.0, %v3350
        %3352 = vmatmul.f32.gmra.mxu0 %v2572
        %v3353 = vpop.f32.mrf.mxu0
        %v3354 = vadd.f32 0.0, %v3353
        %3355 = vdwg.mxu0
        %3356 = vmatpush.msra.mxu0 0.0
        %3357 = vmatpush.msra.mxu0 0.0
        %3358 = vmatpush.msra.mxu0 0.0
        %3359 = vmatpush.msra.mxu0 0.0
        %3360 = vmatpush.msra.mxu0 0.0
        %3361 = vmatpush.msra.mxu0 0.0
        %3362 = vmatpush.msra.mxu0 0.0
        %3363 = vmatpush.msra.mxu0 0.0
        %3364 = vmatpush.msra.mxu0 0.0
        %3365 = vmatpush.msra.mxu0 0.0
        %3366 = vmatpush.msra.mxu0 0.0
        %3367 = vmatpush.msra.mxu0 0.0
        %3368 = vmatpush.msra.mxu0 0.0
        %3369 = vmatpush.msra.mxu0 0.0
        %3370 = vmatpush.msra.mxu0 0.0
        %3371 = vmatpush.msra.mxu0 %v3331
        %3372 = vmatmul.f32.gmra.mxu0 %v2569
        %v3373 = vpop.f32.mrf.mxu0
        %v3374 = vadd.f32 0.0, %v3373
        %3375 = vmatmul.f32.gmra.mxu0 %v2572
        %v3376 = vpop.f32.mrf.mxu0
        %v3377 = vadd.f32 0.0, %v3376
        %3378 = vdwg.mxu0
        %v3379 = vmul.f32 %v3218, %v3351
        %v3380 = vmul.f32 %v3241, %v3374
        %v3381 = vmul.f32 %v3221, %v3354
        %v3382 = vmul.f32 %v3244, %v3377
        %v3383 = vxor.u32 %v3379, 2147483648
        %v3384 = vxor.u32 %v3380, 2147483648
        %v3385 = vxor.u32 %v3381, 2147483648
        %v3386 = vxor.u32 %v3382, 2147483648
        %v3387 = vmul.f32 %v3383, 1.442695
        %v3388 = vpow.pop %v3387
        %v3389 = vmul.f32 %v3384, 1.442695
        %v3390 = vpow.pop %v3389
        %v3391 = vmul.f32 %v3385, 1.442695
        %v3392 = vpow.pop %v3391
        %v3393 = vmul.f32 %v3386, 1.442695
        %v3394 = vpow.pop %v3393
        %v3395 = vadd.f32 %v3388, 1.0
        %v3396 = vadd.f32 %v3390, 1.0
        %v3397 = vadd.f32 %v3392, 1.0
        %v3398 = vadd.f32 %v3394, 1.0
        %v3399 = vrcp.pop %v3395
        %v3400 = vmul.f32 %v3395, %v3399
        %v3401 = vsub.f32 1.0, %v3400
        %v3402 = vmul.f32 %v3399, %v3401
        %v3403 = vadd.f32 %v3399, %v3402
        %vm3404 = vweird.f32 %v3395
        %vm3405 = vweird.f32 %v3399
        %vm3406 = vmor %vm3404, %vm3405
        %v3407 = vsel %vm3406, %v3399, %v3403
        %v3408 = vand.u32 2147483647, %v3395
        %vm3409 = vcmp.eq.f32.partialorder %v3408, 8.507059e+37
        %v3410 = vand.u32 %v3395, 2147483648
        %v3411 = vor.u32 1.1754944e-38, %v3410
        %v3412 = vsel %vm3409, %v3411, %v3407
        %v3413 = vmul.f32 1.0, %v3412
        %v3414 = vrcp.pop %v3396
        %v3415 = vmul.f32 %v3396, %v3414
        %v3416 = vsub.f32 1.0, %v3415
        %v3417 = vmul.f32 %v3414, %v3416
        %v3418 = vadd.f32 %v3414, %v3417
        %vm3419 = vweird.f32 %v3396
        %vm3420 = vweird.f32 %v3414
        %vm3421 = vmor %vm3419, %vm3420
        %v3422 = vsel %vm3421, %v3414, %v3418
        %v3423 = vand.u32 2147483647, %v3396
        %vm3424 = vcmp.eq.f32.partialorder %v3423, 8.507059e+37
        %v3425 = vand.u32 %v3396, 2147483648
        %v3426 = vor.u32 1.1754944e-38, %v3425
        %v3427 = vsel %vm3424, %v3426, %v3422
        %v3428 = vmul.f32 1.0, %v3427
        %v3429 = vrcp.pop %v3397
        %v3430 = vmul.f32 %v3397, %v3429
        %v3431 = vsub.f32 1.0, %v3430
        %v3432 = vmul.f32 %v3429, %v3431
        %v3433 = vadd.f32 %v3429, %v3432
        %vm3434 = vweird.f32 %v3397
        %vm3435 = vweird.f32 %v3429
        %vm3436 = vmor %vm3434, %vm3435
        %v3437 = vsel %vm3436, %v3429, %v3433
        %v3438 = vand.u32 2147483647, %v3397
        %vm3439 = vcmp.eq.f32.partialorder %v3438, 8.507059e+37
        %v3440 = vand.u32 %v3397, 2147483648
        %v3441 = vor.u32 1.1754944e-38, %v3440
        %v3442 = vsel %vm3439, %v3441, %v3437
        %v3443 = vmul.f32 1.0, %v3442
        %v3444 = vrcp.pop %v3398
        %v3445 = vmul.f32 %v3398, %v3444
        %v3446 = vsub.f32 1.0, %v3445
        %v3447 = vmul.f32 %v3444, %v3446
        %v3448 = vadd.f32 %v3444, %v3447
        %vm3449 = vweird.f32 %v3398
        %vm3450 = vweird.f32 %v3444
        %vm3451 = vmor %vm3449, %vm3450
        %v3452 = vsel %vm3451, %v3444, %v3448
        %v3453 = vand.u32 2147483647, %v3398
        %vm3454 = vcmp.eq.f32.partialorder %v3453, 8.507059e+37
        %v3455 = vand.u32 %v3398, 2147483648
        %v3456 = vor.u32 1.1754944e-38, %v3455
        %v3457 = vsel %vm3454, %v3456, %v3452
        %v3458 = vmul.f32 1.0, %v3457
        %v3459 = vmul.f32 %v3379, %v3413
        %v3460 = vmul.f32 %v3380, %v3428
        %v3461 = vmul.f32 %v3381, %v3443
        %v3462 = vmul.f32 %v3382, %v3458
        %v3463 = vmul.f32 %v3459, %v3296
        %v3464 = vmul.f32 %v3460, %v3319
        %v3465 = vmul.f32 %v3461, %v3299
        %v3466 = vmul.f32 %v3462, %v3322
        %v3467 = vld [vmem:[%s1115 + $0x200] sm:$0xff]
        %v3468 = vld [vmem:[%s1115 + $0x208] sm:$0xff]
        %v3469 = vld [vmem:[%s1115 + $0x210] sm:$0xff]
        %v3470 = vld [vmem:[%s1115 + $0x218] sm:$0xff]
        %v3471 = vld [vmem:[%s1115 + $0x220] sm:$0xff]
        %v3472 = vld [vmem:[%s1115 + $0x228] sm:$0xff]
        %v3473 = vld [vmem:[%s1115 + $0x230] sm:$0xff]
        %v3474 = vld [vmem:[%s1115 + $0x238] sm:$0xff]
        %v3475 = vld [vmem:[%s1115 + $0x240] sm:$0xff]
        %v3476 = vld [vmem:[%s1115 + $0x248] sm:$0xff]
        %v3477 = vld [vmem:[%s1115 + $0x250] sm:$0xff]
        %v3478 = vld [vmem:[%s1115 + $0x258] sm:$0xff]
        %v3479 = vld [vmem:[%s1115 + $0x260] sm:$0xff]
        %v3480 = vld [vmem:[%s1115 + $0x268] sm:$0xff]
        %v3481 = vld [vmem:[%s1115 + $0x270] sm:$0xff]
        %v3482 = vld [vmem:[%s1115 + $0x278] sm:$0xff]
        %v3483 = vld [vmem:[%s1115 + $0x280] sm:$0xff]
        %v3484 = vld [vmem:[%s1115 + $0x288] sm:$0xff]
        %v3485 = vld [vmem:[%s1115 + $0x290] sm:$0xff]
        %v3486 = vld [vmem:[%s1115 + $0x298] sm:$0xff]
        %v3487 = vld [vmem:[%s1115 + $0x2a0] sm:$0xff]
        %v3488 = vld [vmem:[%s1115 + $0x2a8] sm:$0xff]
        %v3489 = vld [vmem:[%s1115 + $0x2b0] sm:$0xff]
        %v3490 = vld [vmem:[%s1115 + $0x2b8] sm:$0xff]
        %v3491 = vld [vmem:[%s1115 + $0x2c0] sm:$0xff]
        %v3492 = vld [vmem:[%s1115 + $0x2c8] sm:$0xff]
        %v3493 = vld [vmem:[%s1115 + $0x2d0] sm:$0xff]
        %v3494 = vld [vmem:[%s1115 + $0x2d8] sm:$0xff]
        %v3495 = vld [vmem:[%s1115 + $0x2e0] sm:$0xff]
        %v3496 = vld [vmem:[%s1115 + $0x2e8] sm:$0xff]
        %v3497 = vld [vmem:[%s1115 + $0x2f0] sm:$0xff]
        %v3498 = vld [vmem:[%s1115 + $0x2f8] sm:$0xff]
        %3499 = vmatpush.msra.mxu0 %v3482
        %3500 = vmatpush.msra.mxu0 %v3481
        %3501 = vmatpush.msra.mxu0 %v3480
        %3502 = vmatpush.msra.mxu0 %v3479
        %3503 = vmatpush.msra.mxu0 %v3478
        %3504 = vmatpush.msra.mxu0 %v3477
        %3505 = vmatpush.msra.mxu0 %v3476
        %3506 = vmatpush.msra.mxu0 %v3475
        %3507 = vmatpush.msra.mxu0 %v3474
        %3508 = vmatpush.msra.mxu0 %v3473
        %3509 = vmatpush.msra.mxu0 %v3472
        %3510 = vmatpush.msra.mxu0 %v3471
        %3511 = vmatpush.msra.mxu0 %v3470
        %3512 = vmatpush.msra.mxu0 %v3469
        %3513 = vmatpush.msra.mxu0 %v3468
        %3514 = vmatpush.msra.mxu0 %v3467
        %3515 = vmatmul.f32.gmra.mxu0 %v3463
        %v3516 = vpop.f32.mrf.mxu0
        %v3517 = vadd.f32 0.0, %v3516
        %3518 = vmatmul.f32.gmra.mxu0 %v3465
        %v3519 = vpop.f32.mrf.mxu0
        %v3520 = vadd.f32 0.0, %v3519
        %3521 = vdwg.mxu0
        %3522 = vmatpush.msra.mxu0 %v3498
        %3523 = vmatpush.msra.mxu0 %v3497
        %3524 = vmatpush.msra.mxu0 %v3496
        %3525 = vmatpush.msra.mxu0 %v3495
        %3526 = vmatpush.msra.mxu0 %v3494
        %3527 = vmatpush.msra.mxu0 %v3493
        %3528 = vmatpush.msra.mxu0 %v3492
        %3529 = vmatpush.msra.mxu0 %v3491
        %3530 = vmatpush.msra.mxu0 %v3490
        %3531 = vmatpush.msra.mxu0 %v3489
        %3532 = vmatpush.msra.mxu0 %v3488
        %3533 = vmatpush.msra.mxu0 %v3487
        %3534 = vmatpush.msra.mxu0 %v3486
        %3535 = vmatpush.msra.mxu0 %v3485
        %3536 = vmatpush.msra.mxu0 %v3484
        %3537 = vmatpush.msra.mxu0 %v3483
        %3538 = vmatmul.f32.gmra.mxu0 %v3464
        %v3539 = vpop.f32.mrf.mxu0
        %v3540 = vadd.f32 %v3517, %v3539
        %3541 = vmatmul.f32.gmra.mxu0 %v3466
        %v3542 = vpop.f32.mrf.mxu0
        %v3543 = vadd.f32 %v3520, %v3542
        %3544 = vdwg.mxu0
        %v3545 = vadd.f32 %v3163, %v3540
        %v3546 = vadd.f32 %v3166, %v3543
        %v3547 = vld [vmem:[%s1095 + $0x30] sm:$0xff]
        %v3548 = vld [vmem:[%s1095 + $0x38] sm:$0xff]
        %v3549 = vld [vmem:[%s1095 + $0x70] sm:$0xff]
        %v3550 = vld [vmem:[%s1095 + $0x78] sm:$0xff]
        %v3551 = vld [vmem:[%s1095 + $0xb0] sm:$0xff]
        %v3552 = vld [vmem:[%s1095 + $0xb8] sm:$0xff]
        %v3553 = vld [vmem:[%s1095 + $0xf0] sm:$0xff]
        %v3554 = vld [vmem:[%s1095 + $0xf8] sm:$0xff]
        %v3555 = vld [vmem:[%s1095 + $0x130] sm:$0xff]
        %v3556 = vld [vmem:[%s1095 + $0x138] sm:$0xff]
        %v3557 = vld [vmem:[%s1095 + $0x170] sm:$0xff]
        %v3558 = vld [vmem:[%s1095 + $0x178] sm:$0xff]
        %v3559 = vld [vmem:[%s1095 + $0x1b0] sm:$0xff]
        %v3560 = vld [vmem:[%s1095 + $0x1b8] sm:$0xff]
        %v3561 = vld [vmem:[%s1095 + $0x1f0] sm:$0xff]
        %v3562 = vld [vmem:[%s1095 + $0x1f8] sm:$0xff]
        %v3563 = vld [vmem:[%s1095 + $0x230] sm:$0xff]
        %v3564 = vld [vmem:[%s1095 + $0x238] sm:$0xff]
        %v3565 = vld [vmem:[%s1095 + $0x270] sm:$0xff]
        %v3566 = vld [vmem:[%s1095 + $0x278] sm:$0xff]
        %v3567 = vld [vmem:[%s1095 + $0x2b0] sm:$0xff]
        %v3568 = vld [vmem:[%s1095 + $0x2b8] sm:$0xff]
        %v3569 = vld [vmem:[%s1095 + $0x2f0] sm:$0xff]
        %v3570 = vld [vmem:[%s1095 + $0x2f8] sm:$0xff]
        %v3571 = vld [vmem:[%s1095 + $0x330] sm:$0xff]
        %v3572 = vld [vmem:[%s1095 + $0x338] sm:$0xff]
        %v3573 = vld [vmem:[%s1095 + $0x370] sm:$0xff]
        %v3574 = vld [vmem:[%s1095 + $0x378] sm:$0xff]
        %v3575 = vld [vmem:[%s1095 + $0x3b0] sm:$0xff]
        %v3576 = vld [vmem:[%s1095 + $0x3b8] sm:$0xff]
        %v3577 = vld [vmem:[%s1095 + $0x3f0] sm:$0xff]
        %v3578 = vld [vmem:[%s1095 + $0x3f8] sm:$0xff]
        %3579 = vmatpush.msra.mxu0 %v3577
        %3580 = vmatpush.msra.mxu0 %v3575
        %3581 = vmatpush.msra.mxu0 %v3573
        %3582 = vmatpush.msra.mxu0 %v3571
        %3583 = vmatpush.msra.mxu0 %v3569
        %3584 = vmatpush.msra.mxu0 %v3567
        %3585 = vmatpush.msra.mxu0 %v3565
        %3586 = vmatpush.msra.mxu0 %v3563
        %3587 = vmatpush.msra.mxu0 %v3561
        %3588 = vmatpush.msra.mxu0 %v3559
        %3589 = vmatpush.msra.mxu0 %v3557
        %3590 = vmatpush.msra.mxu0 %v3555
        %3591 = vmatpush.msra.mxu0 %v3553
        %3592 = vmatpush.msra.mxu0 %v3551
        %3593 = vmatpush.msra.mxu0 %v3549
        %3594 = vmatpush.msra.mxu0 %v3547
        %3595 = vmatmul.f32.gmra.mxu0 %v2343
        %v3596 = vpop.f32.mrf.mxu0
        %v3597 = vadd.f32 0.0, %v3596
        %3598 = vmatmul.f32.gmra.mxu0 %v2344
        %v3599 = vpop.f32.mrf.mxu0
        %v3600 = vadd.f32 0.0, %v3599
        %3601 = vdwg.mxu0
        %3602 = vmatpush.msra.mxu0 %v3578
        %3603 = vmatpush.msra.mxu0 %v3576
        %3604 = vmatpush.msra.mxu0 %v3574
        %3605 = vmatpush.msra.mxu0 %v3572
        %3606 = vmatpush.msra.mxu0 %v3570
        %3607 = vmatpush.msra.mxu0 %v3568
        %3608 = vmatpush.msra.mxu0 %v3566
        %3609 = vmatpush.msra.mxu0 %v3564
        %3610 = vmatpush.msra.mxu0 %v3562
        %3611 = vmatpush.msra.mxu0 %v3560
        %3612 = vmatpush.msra.mxu0 %v3558
        %3613 = vmatpush.msra.mxu0 %v3556
        %3614 = vmatpush.msra.mxu0 %v3554
        %3615 = vmatpush.msra.mxu0 %v3552
        %3616 = vmatpush.msra.mxu0 %v3550
        %3617 = vmatpush.msra.mxu0 %v3548
        %3618 = vmatmul.f32.gmra.mxu0 %v2343
        %v3619 = vpop.f32.mrf.mxu0
        %v3620 = vadd.f32 0.0, %v3619
        %3621 = vmatmul.f32.gmra.mxu0 %v2344
        %v3622 = vpop.f32.mrf.mxu0
        %v3623 = vadd.f32 0.0, %v3622
        %3624 = vdwg.mxu0
        %v3625 = vld [vmem:[%s1105 + $0x30] sm:$0xff]
        %v3626 = vld [vmem:[%s1105 + $0x38] sm:$0xff]
        %v3627 = vld [vmem:[%s1105 + $0x70] sm:$0xff]
        %v3628 = vld [vmem:[%s1105 + $0x78] sm:$0xff]
        %v3629 = vld [vmem:[%s1105 + $0xb0] sm:$0xff]
        %v3630 = vld [vmem:[%s1105 + $0xb8] sm:$0xff]
        %v3631 = vld [vmem:[%s1105 + $0xf0] sm:$0xff]
        %v3632 = vld [vmem:[%s1105 + $0xf8] sm:$0xff]
        %v3633 = vld [vmem:[%s1105 + $0x130] sm:$0xff]
        %v3634 = vld [vmem:[%s1105 + $0x138] sm:$0xff]
        %v3635 = vld [vmem:[%s1105 + $0x170] sm:$0xff]
        %v3636 = vld [vmem:[%s1105 + $0x178] sm:$0xff]
        %v3637 = vld [vmem:[%s1105 + $0x1b0] sm:$0xff]
        %v3638 = vld [vmem:[%s1105 + $0x1b8] sm:$0xff]
        %v3639 = vld [vmem:[%s1105 + $0x1f0] sm:$0xff]
        %v3640 = vld [vmem:[%s1105 + $0x1f8] sm:$0xff]
        %v3641 = vld [vmem:[%s1105 + $0x230] sm:$0xff]
        %v3642 = vld [vmem:[%s1105 + $0x238] sm:$0xff]
        %v3643 = vld [vmem:[%s1105 + $0x270] sm:$0xff]
        %v3644 = vld [vmem:[%s1105 + $0x278] sm:$0xff]
        %v3645 = vld [vmem:[%s1105 + $0x2b0] sm:$0xff]
        %v3646 = vld [vmem:[%s1105 + $0x2b8] sm:$0xff]
        %v3647 = vld [vmem:[%s1105 + $0x2f0] sm:$0xff]
        %v3648 = vld [vmem:[%s1105 + $0x2f8] sm:$0xff]
        %v3649 = vld [vmem:[%s1105 + $0x330] sm:$0xff]
        %v3650 = vld [vmem:[%s1105 + $0x338] sm:$0xff]
        %v3651 = vld [vmem:[%s1105 + $0x370] sm:$0xff]
        %v3652 = vld [vmem:[%s1105 + $0x378] sm:$0xff]
        %v3653 = vld [vmem:[%s1105 + $0x3b0] sm:$0xff]
        %v3654 = vld [vmem:[%s1105 + $0x3b8] sm:$0xff]
        %v3655 = vld [vmem:[%s1105 + $0x3f0] sm:$0xff]
        %v3656 = vld [vmem:[%s1105 + $0x3f8] sm:$0xff]
        %3657 = vmatpush.msra.mxu0 %v3655
        %3658 = vmatpush.msra.mxu0 %v3653
        %3659 = vmatpush.msra.mxu0 %v3651
        %3660 = vmatpush.msra.mxu0 %v3649
        %3661 = vmatpush.msra.mxu0 %v3647
        %3662 = vmatpush.msra.mxu0 %v3645
        %3663 = vmatpush.msra.mxu0 %v3643
        %3664 = vmatpush.msra.mxu0 %v3641
        %3665 = vmatpush.msra.mxu0 %v3639
        %3666 = vmatpush.msra.mxu0 %v3637
        %3667 = vmatpush.msra.mxu0 %v3635
        %3668 = vmatpush.msra.mxu0 %v3633
        %3669 = vmatpush.msra.mxu0 %v3631
        %3670 = vmatpush.msra.mxu0 %v3629
        %3671 = vmatpush.msra.mxu0 %v3627
        %3672 = vmatpush.msra.mxu0 %v3625
        %3673 = vmatmul.f32.gmra.mxu0 %v2343
        %v3674 = vpop.f32.mrf.mxu0
        %v3675 = vadd.f32 0.0, %v3674
        %3676 = vmatmul.f32.gmra.mxu0 %v2344
        %v3677 = vpop.f32.mrf.mxu0
        %v3678 = vadd.f32 0.0, %v3677
        %3679 = vdwg.mxu0
        %3680 = vmatpush.msra.mxu0 %v3656
        %3681 = vmatpush.msra.mxu0 %v3654
        %3682 = vmatpush.msra.mxu0 %v3652
        %3683 = vmatpush.msra.mxu0 %v3650
        %3684 = vmatpush.msra.mxu0 %v3648
        %3685 = vmatpush.msra.mxu0 %v3646
        %3686 = vmatpush.msra.mxu0 %v3644
        %3687 = vmatpush.msra.mxu0 %v3642
        %3688 = vmatpush.msra.mxu0 %v3640
        %3689 = vmatpush.msra.mxu0 %v3638
        %3690 = vmatpush.msra.mxu0 %v3636
        %3691 = vmatpush.msra.mxu0 %v3634
        %3692 = vmatpush.msra.mxu0 %v3632
        %3693 = vmatpush.msra.mxu0 %v3630
        %3694 = vmatpush.msra.mxu0 %v3628
        %3695 = vmatpush.msra.mxu0 %v3626
        %3696 = vmatmul.f32.gmra.mxu0 %v2343
        %v3697 = vpop.f32.mrf.mxu0
        %v3698 = vadd.f32 0.0, %v3697
        %3699 = vmatmul.f32.gmra.mxu0 %v2344
        %v3700 = vpop.f32.mrf.mxu0
        %v3701 = vadd.f32 0.0, %v3700
        %3702 = vdwg.mxu0
        %v3703 = vld [vmem:[%s19 + $0x18] sm:$0xff]
        %3705 = vst [vmem:[#allocation1] ss:$2 sm:$0xff] %v3703
        %v3706 = vld.sshfl [vmem:[#allocation1] sm:$0xff pattern:$0x75316420]
        %v3707 = vld.sshfl [vmem:[#allocation1 + $0x8] sm:$0xff pattern:$0x75316420]
        %v3708 = vsel %vm2574, %v3706, 0
        %v3710 = vsel %vm2574, %v3707, 0
        %3712 = vmatpush.msra.mxu0 0.0
        %3713 = vmatpush.msra.mxu0 0.0
        %3714 = vmatpush.msra.mxu0 0.0
        %3715 = vmatpush.msra.mxu0 0.0
        %3716 = vmatpush.msra.mxu0 0.0
        %3717 = vmatpush.msra.mxu0 0.0
        %3718 = vmatpush.msra.mxu0 0.0
        %3719 = vmatpush.msra.mxu0 0.0
        %3720 = vmatpush.msra.mxu0 0.0
        %3721 = vmatpush.msra.mxu0 0.0
        %3722 = vmatpush.msra.mxu0 0.0
        %3723 = vmatpush.msra.mxu0 0.0
        %3724 = vmatpush.msra.mxu0 0.0
        %3725 = vmatpush.msra.mxu0 0.0
        %3726 = vmatpush.msra.mxu0 0.0
        %3727 = vmatpush.msra.mxu0 %v3708
        %3728 = vmatmul.f32.gmra.mxu0 %v2569
        %v3729 = vpop.f32.mrf.mxu0
        %v3730 = vadd.f32 0.0, %v3729
        %3731 = vmatmul.f32.gmra.mxu0 %v2572
        %v3732 = vpop.f32.mrf.mxu0
        %v3733 = vadd.f32 0.0, %v3732
        %3734 = vdwg.mxu0
        %3735 = vmatpush.msra.mxu0 0.0
        %3736 = vmatpush.msra.mxu0 0.0
        %3737 = vmatpush.msra.mxu0 0.0
        %3738 = vmatpush.msra.mxu0 0.0
        %3739 = vmatpush.msra.mxu0 0.0
        %3740 = vmatpush.msra.mxu0 0.0
        %3741 = vmatpush.msra.mxu0 0.0
        %3742 = vmatpush.msra.mxu0 0.0
        %3743 = vmatpush.msra.mxu0 0.0
        %3744 = vmatpush.msra.mxu0 0.0
        %3745 = vmatpush.msra.mxu0 0.0
        %3746 = vmatpush.msra.mxu0 0.0
        %3747 = vmatpush.msra.mxu0 0.0
        %3748 = vmatpush.msra.mxu0 0.0
        %3749 = vmatpush.msra.mxu0 0.0
        %3750 = vmatpush.msra.mxu0 %v3710
        %3751 = vmatmul.f32.gmra.mxu0 %v2569
        %v3752 = vpop.f32.mrf.mxu0
        %v3753 = vadd.f32 0.0, %v3752
        %3754 = vmatmul.f32.gmra.mxu0 %v2572
        %v3755 = vpop.f32.mrf.mxu0
        %v3756 = vadd.f32 0.0, %v3755
        %3757 = vdwg.mxu0
        %v3758 = vmul.f32 %v3597, %v3730
        %v3759 = vmul.f32 %v3620, %v3753
        %v3760 = vmul.f32 %v3600, %v3733
        %v3761 = vmul.f32 %v3623, %v3756
        %v3762 = vxor.u32 %v3758, 2147483648
        %v3763 = vxor.u32 %v3759, 2147483648
        %v3764 = vxor.u32 %v3760, 2147483648
        %v3765 = vxor.u32 %v3761, 2147483648
        %v3766 = vmul.f32 %v3762, 1.442695
        %v3767 = vpow.pop %v3766
        %v3768 = vmul.f32 %v3763, 1.442695
        %v3769 = vpow.pop %v3768
        %v3770 = vmul.f32 %v3764, 1.442695
        %v3771 = vpow.pop %v3770
        %v3772 = vmul.f32 %v3765, 1.442695
        %v3773 = vpow.pop %v3772
        %v3774 = vadd.f32 %v3767, 1.0
        %v3775 = vadd.f32 %v3769, 1.0
        %v3776 = vadd.f32 %v3771, 1.0
        %v3777 = vadd.f32 %v3773, 1.0
        %v3778 = vrcp.pop %v3774
        %v3779 = vmul.f32 %v3774, %v3778
        %v3780 = vsub.f32 1.0, %v3779
        %v3781 = vmul.f32 %v3778, %v3780
        %v3782 = vadd.f32 %v3778, %v3781
        %vm3783 = vweird.f32 %v3774
        %vm3784 = vweird.f32 %v3778
        %vm3785 = vmor %vm3783, %vm3784
        %v3786 = vsel %vm3785, %v3778, %v3782
        %v3787 = vand.u32 2147483647, %v3774
        %vm3788 = vcmp.eq.f32.partialorder %v3787, 8.507059e+37
        %v3789 = vand.u32 %v3774, 2147483648
        %v3790 = vor.u32 1.1754944e-38, %v3789
        %v3791 = vsel %vm3788, %v3790, %v3786
        %v3792 = vmul.f32 1.0, %v3791
        %v3793 = vrcp.pop %v3775
        %v3794 = vmul.f32 %v3775, %v3793
        %v3795 = vsub.f32 1.0, %v3794
        %v3796 = vmul.f32 %v3793, %v3795
        %v3797 = vadd.f32 %v3793, %v3796
        %vm3798 = vweird.f32 %v3775
        %vm3799 = vweird.f32 %v3793
        %vm3800 = vmor %vm3798, %vm3799
        %v3801 = vsel %vm3800, %v3793, %v3797
        %v3802 = vand.u32 2147483647, %v3775
        %vm3803 = vcmp.eq.f32.partialorder %v3802, 8.507059e+37
        %v3804 = vand.u32 %v3775, 2147483648
        %v3805 = vor.u32 1.1754944e-38, %v3804
        %v3806 = vsel %vm3803, %v3805, %v3801
        %v3807 = vmul.f32 1.0, %v3806
        %v3808 = vrcp.pop %v3776
        %v3809 = vmul.f32 %v3776, %v3808
        %v3810 = vsub.f32 1.0, %v3809
        %v3811 = vmul.f32 %v3808, %v3810
        %v3812 = vadd.f32 %v3808, %v3811
        %vm3813 = vweird.f32 %v3776
        %vm3814 = vweird.f32 %v3808
        %vm3815 = vmor %vm3813, %vm3814
        %v3816 = vsel %vm3815, %v3808, %v3812
        %v3817 = vand.u32 2147483647, %v3776
        %vm3818 = vcmp.eq.f32.partialorder %v3817, 8.507059e+37
        %v3819 = vand.u32 %v3776, 2147483648
        %v3820 = vor.u32 1.1754944e-38, %v3819
        %v3821 = vsel %vm3818, %v3820, %v3816
        %v3822 = vmul.f32 1.0, %v3821
        %v3823 = vrcp.pop %v3777
        %v3824 = vmul.f32 %v3777, %v3823
        %v3825 = vsub.f32 1.0, %v3824
        %v3826 = vmul.f32 %v3823, %v3825
        %v3827 = vadd.f32 %v3823, %v3826
        %vm3828 = vweird.f32 %v3777
        %vm3829 = vweird.f32 %v3823
        %vm3830 = vmor %vm3828, %vm3829
        %v3831 = vsel %vm3830, %v3823, %v3827
        %v3832 = vand.u32 2147483647, %v3777
        %vm3833 = vcmp.eq.f32.partialorder %v3832, 8.507059e+37
        %v3834 = vand.u32 %v3777, 2147483648
        %v3835 = vor.u32 1.1754944e-38, %v3834
        %v3836 = vsel %vm3833, %v3835, %v3831
        %v3837 = vmul.f32 1.0, %v3836
        %v3838 = vmul.f32 %v3758, %v3792
        %v3839 = vmul.f32 %v3759, %v3807
        %v3840 = vmul.f32 %v3760, %v3822
        %v3841 = vmul.f32 %v3761, %v3837
        %v3842 = vmul.f32 %v3838, %v3675
        %v3843 = vmul.f32 %v3839, %v3698
        %v3844 = vmul.f32 %v3840, %v3678
        %v3845 = vmul.f32 %v3841, %v3701
        %v3846 = vld [vmem:[%s1115 + $0x300] sm:$0xff]
        %v3847 = vld [vmem:[%s1115 + $0x308] sm:$0xff]
        %v3848 = vld [vmem:[%s1115 + $0x310] sm:$0xff]
        %v3849 = vld [vmem:[%s1115 + $0x318] sm:$0xff]
        %v3850 = vld [vmem:[%s1115 + $0x320] sm:$0xff]
        %v3851 = vld [vmem:[%s1115 + $0x328] sm:$0xff]
        %v3852 = vld [vmem:[%s1115 + $0x330] sm:$0xff]
        %v3853 = vld [vmem:[%s1115 + $0x338] sm:$0xff]
        %v3854 = vld [vmem:[%s1115 + $0x340] sm:$0xff]
        %v3855 = vld [vmem:[%s1115 + $0x348] sm:$0xff]
        %v3856 = vld [vmem:[%s1115 + $0x350] sm:$0xff]
        %v3857 = vld [vmem:[%s1115 + $0x358] sm:$0xff]
        %v3858 = vld [vmem:[%s1115 + $0x360] sm:$0xff]
        %v3859 = vld [vmem:[%s1115 + $0x368] sm:$0xff]
        %v3860 = vld [vmem:[%s1115 + $0x370] sm:$0xff]
        %v3861 = vld [vmem:[%s1115 + $0x378] sm:$0xff]
        %v3862 = vld [vmem:[%s1115 + $0x380] sm:$0xff]
        %v3863 = vld [vmem:[%s1115 + $0x388] sm:$0xff]
        %v3864 = vld [vmem:[%s1115 + $0x390] sm:$0xff]
        %v3865 = vld [vmem:[%s1115 + $0x398] sm:$0xff]
        %v3866 = vld [vmem:[%s1115 + $0x3a0] sm:$0xff]
        %v3867 = vld [vmem:[%s1115 + $0x3a8] sm:$0xff]
        %v3868 = vld [vmem:[%s1115 + $0x3b0] sm:$0xff]
        %v3869 = vld [vmem:[%s1115 + $0x3b8] sm:$0xff]
        %v3870 = vld [vmem:[%s1115 + $0x3c0] sm:$0xff]
        %v3871 = vld [vmem:[%s1115 + $0x3c8] sm:$0xff]
        %v3872 = vld [vmem:[%s1115 + $0x3d0] sm:$0xff]
        %v3873 = vld [vmem:[%s1115 + $0x3d8] sm:$0xff]
        %v3874 = vld [vmem:[%s1115 + $0x3e0] sm:$0xff]
        %v3875 = vld [vmem:[%s1115 + $0x3e8] sm:$0xff]
        %v3876 = vld [vmem:[%s1115 + $0x3f0] sm:$0xff]
        %v3877 = vld [vmem:[%s1115 + $0x3f8] sm:$0xff]
        %3878 = vmatpush.msra.mxu0 %v3861
        %3879 = vmatpush.msra.mxu0 %v3860
        %3880 = vmatpush.msra.mxu0 %v3859
        %3881 = vmatpush.msra.mxu0 %v3858
        %3882 = vmatpush.msra.mxu0 %v3857
        %3883 = vmatpush.msra.mxu0 %v3856
        %3884 = vmatpush.msra.mxu0 %v3855
        %3885 = vmatpush.msra.mxu0 %v3854
        %3886 = vmatpush.msra.mxu0 %v3853
        %3887 = vmatpush.msra.mxu0 %v3852
        %3888 = vmatpush.msra.mxu0 %v3851
        %3889 = vmatpush.msra.mxu0 %v3850
        %3890 = vmatpush.msra.mxu0 %v3849
        %3891 = vmatpush.msra.mxu0 %v3848
        %3892 = vmatpush.msra.mxu0 %v3847
        %3893 = vmatpush.msra.mxu0 %v3846
        %3894 = vmatmul.f32.gmra.mxu0 %v3842
        %v3895 = vpop.f32.mrf.mxu0
        %v3896 = vadd.f32 0.0, %v3895
        %3897 = vmatmul.f32.gmra.mxu0 %v3844
        %v3898 = vpop.f32.mrf.mxu0
        %v3899 = vadd.f32 0.0, %v3898
        %3900 = vdwg.mxu0
        %3901 = vmatpush.msra.mxu0 %v3877
        %3902 = vmatpush.msra.mxu0 %v3876
        %3903 = vmatpush.msra.mxu0 %v3875
        %3904 = vmatpush.msra.mxu0 %v3874
        %3905 = vmatpush.msra.mxu0 %v3873
        %3906 = vmatpush.msra.mxu0 %v3872
        %3907 = vmatpush.msra.mxu0 %v3871
        %3908 = vmatpush.msra.mxu0 %v3870
        %3909 = vmatpush.msra.mxu0 %v3869
        %3910 = vmatpush.msra.mxu0 %v3868
        %3911 = vmatpush.msra.mxu0 %v3867
        %3912 = vmatpush.msra.mxu0 %v3866
        %3913 = vmatpush.msra.mxu0 %v3865
        %3914 = vmatpush.msra.mxu0 %v3864
        %3915 = vmatpush.msra.mxu0 %v3863
        %3916 = vmatpush.msra.mxu0 %v3862
        %3917 = vmatmul.f32.gmra.mxu0 %v3843
        %v3918 = vpop.f32.mrf.mxu0
        %v3919 = vadd.f32 %v3896, %v3918
        %3920 = vmatmul.f32.gmra.mxu0 %v3845
        %v3921 = vpop.f32.mrf.mxu0
        %v3922 = vadd.f32 %v3899, %v3921
        %3923 = vdwg.mxu0
        %v3924 = vadd.f32 %v3545, %v3919
        %v3925 = vadd.f32 %v3546, %v3922
        %v3926 = vadd.f32 %v2305, %v3924
        %v3927 = vadd.f32 %v2306, %v3925
        %3928 = vst [vmem:[#allocation2] sm:$0xff] %v3926
        %3929 = vst [vmem:[#allocation2 + $0x8] sm:$0xff] %v3927
        %p3930 = scmp.eq.s32.totalorder %s81, 1
        // Predicated region
        $region161: #{forward.1} parent=143 // pred_check
          %p3931 = pneg %p3930
        $region162: #{forward.1} parent=143 // pred_check_branch
          %3933 = sbr.rel (%p3931) target = $region164
        $region163: #{forward.1} parent=143 // pred_region
          %v3934 = vmul.f32 %v3926, %v3926
          %v3935 = vmul.f32 %v3927, %v3927
          %3936 = vadd.xlane.f32.xlu0 %v3934
          %v3937 = vpop.xlane.xlu0 %3936
          %3938 = vadd.xlane.f32.xlu0 %v3935
          %v3939 = vpop.xlane.xlu0 %3938
          %v3940 = vmul.f32 %v3937, %v1366
          %v3941 = vmul.f32 %v3939, %v1366
          %v3942 = vadd.f32 %v3940, 1e-05
          %v3943 = vadd.f32 %v3941, 1e-05
          %v3944 = vrsqrt.pop %v3942
          %v3945 = vmul.f32 %v3944, %v3942
          %v3946 = vmul.f32 %v3945, %v3944
          %v3947 = vmul.f32 0.5, %v3946
          %v3948 = vsub.f32 1.5, %v3947
          %v3949 = vmul.f32 %v3944, %v3948
          %vm3950 = vweird.f32 %v3942
          %vm3951 = vweird.f32 %v3944
          %vm3952 = vmor %vm3950, %vm3951
          %v3953 = vsel %vm3952, %v3944, %v3949
          %v3954 = vrsqrt.pop %v3943
          %v3955 = vmul.f32 %v3954, %v3943
          %v3956 = vmul.f32 %v3955, %v3954
          %v3957 = vmul.f32 0.5, %v3956
          %v3958 = vsub.f32 1.5, %v3957
          %v3959 = vmul.f32 %v3954, %v3958
          %vm3960 = vweird.f32 %v3943
          %vm3961 = vweird.f32 %v3954
          %vm3962 = vmor %vm3960, %vm3961
          %v3963 = vsel %vm3962, %v3954, %v3959
          %v3964 = vmul.f32 %v3926, %v3953
          %v3965 = vmul.f32 %v3927, %v3963
          %v3966 = vld [vmem:[%s21] sm:$0x1]
          %v3968 = vperm.slane %v3966, 0
          %v3970 = vmul.f32 %v3964, %v3968
          %v3971 = vmul.f32 %v3965, %v3968
          %v3972 = vld [vmem:[%s23] sm:$0xff]
          %v3973 = vld [vmem:[%s23 + $0x8] sm:$0xff]
          %v3974 = vld [vmem:[%s23 + $0x10] sm:$0xff]
          %v3975 = vld [vmem:[%s23 + $0x18] sm:$0xff]
          %v3976 = vld [vmem:[%s23 + $0x20] sm:$0xff]
          %v3977 = vld [vmem:[%s23 + $0x28] sm:$0xff]
          %v3978 = vld [vmem:[%s23 + $0x30] sm:$0xff]
          %v3979 = vld [vmem:[%s23 + $0x38] sm:$0xff]
          %v3980 = vld [vmem:[%s23 + $0x40] sm:$0xff]
          %v3981 = vld [vmem:[%s23 + $0x48] sm:$0xff]
          %v3982 = vld [vmem:[%s23 + $0x50] sm:$0xff]
          %v3983 = vld [vmem:[%s23 + $0x58] sm:$0xff]
          %v3984 = vld [vmem:[%s23 + $0x60] sm:$0xff]
          %v3985 = vld [vmem:[%s23 + $0x68] sm:$0xff]
          %v3986 = vld [vmem:[%s23 + $0x70] sm:$0xff]
          %v3987 = vld [vmem:[%s23 + $0x78] sm:$0xff]
          %v3988 = vld [vmem:[%s23 + $0x80] sm:$0xff]
          %v3989 = vld [vmem:[%s23 + $0x88] sm:$0xff]
          %v3990 = vld [vmem:[%s23 + $0x90] sm:$0xff]
          %v3991 = vld [vmem:[%s23 + $0x98] sm:$0xff]
          %v3992 = vld [vmem:[%s23 + $0xa0] sm:$0xff]
          %v3993 = vld [vmem:[%s23 + $0xa8] sm:$0xff]
          %v3994 = vld [vmem:[%s23 + $0xb0] sm:$0xff]
          %v3995 = vld [vmem:[%s23 + $0xb8] sm:$0xff]
          %v3996 = vld [vmem:[%s23 + $0xc0] sm:$0xff]
          %v3997 = vld [vmem:[%s23 + $0xc8] sm:$0xff]
          %v3998 = vld [vmem:[%s23 + $0xd0] sm:$0xff]
          %v3999 = vld [vmem:[%s23 + $0xd8] sm:$0xff]
          %v4000 = vld [vmem:[%s23 + $0xe0] sm:$0xff]
          %v4001 = vld [vmem:[%s23 + $0xe8] sm:$0xff]
          %v4002 = vld [vmem:[%s23 + $0xf0] sm:$0xff]
          %v4003 = vld [vmem:[%s23 + $0xf8] sm:$0xff]
          %v4004 = vld [vmem:[%s23 + $0x100] sm:$0xff]
          %v4005 = vld [vmem:[%s23 + $0x108] sm:$0xff]
          %v4006 = vld [vmem:[%s23 + $0x110] sm:$0xff]
          %v4007 = vld [vmem:[%s23 + $0x118] sm:$0xff]
          %v4008 = vld [vmem:[%s23 + $0x120] sm:$0xff]
          %v4009 = vld [vmem:[%s23 + $0x128] sm:$0xff]
          %v4010 = vld [vmem:[%s23 + $0x130] sm:$0xff]
          %v4011 = vld [vmem:[%s23 + $0x138] sm:$0xff]
          %v4012 = vld [vmem:[%s23 + $0x140] sm:$0xff]
          %v4013 = vld [vmem:[%s23 + $0x148] sm:$0xff]
          %v4014 = vld [vmem:[%s23 + $0x150] sm:$0xff]
          %v4015 = vld [vmem:[%s23 + $0x158] sm:$0xff]
          %v4016 = vld [vmem:[%s23 + $0x160] sm:$0xff]
          %v4017 = vld [vmem:[%s23 + $0x168] sm:$0xff]
          %v4018 = vld [vmem:[%s23 + $0x170] sm:$0xff]
          %v4019 = vld [vmem:[%s23 + $0x178] sm:$0xff]
          %v4020 = vld [vmem:[%s23 + $0x180] sm:$0xff]
          %v4021 = vld [vmem:[%s23 + $0x188] sm:$0xff]
          %v4022 = vld [vmem:[%s23 + $0x190] sm:$0xff]
          %v4023 = vld [vmem:[%s23 + $0x198] sm:$0xff]
          %v4024 = vld [vmem:[%s23 + $0x1a0] sm:$0xff]
          %v4025 = vld [vmem:[%s23 + $0x1a8] sm:$0xff]
          %v4026 = vld [vmem:[%s23 + $0x1b0] sm:$0xff]
          %v4027 = vld [vmem:[%s23 + $0x1b8] sm:$0xff]
          %v4028 = vld [vmem:[%s23 + $0x1c0] sm:$0xff]
          %v4029 = vld [vmem:[%s23 + $0x1c8] sm:$0xff]
          %v4030 = vld [vmem:[%s23 + $0x1d0] sm:$0xff]
          %v4031 = vld [vmem:[%s23 + $0x1d8] sm:$0xff]
          %v4032 = vld [vmem:[%s23 + $0x1e0] sm:$0xff]
          %v4033 = vld [vmem:[%s23 + $0x1e8] sm:$0xff]
          %v4034 = vld [vmem:[%s23 + $0x1f0] sm:$0xff]
          %v4035 = vld [vmem:[%s23 + $0x1f8] sm:$0xff]
          %4036 = vmatpush.msra.mxu0 %v4032
          %4037 = vmatpush.msra.mxu0 %v4028
          %4038 = vmatpush.msra.mxu0 %v4024
          %4039 = vmatpush.msra.mxu0 %v4020
          %4040 = vmatpush.msra.mxu0 %v4016
          %4041 = vmatpush.msra.mxu0 %v4012
          %4042 = vmatpush.msra.mxu0 %v4008
          %4043 = vmatpush.msra.mxu0 %v4004
          %4044 = vmatpush.msra.mxu0 %v4000
          %4045 = vmatpush.msra.mxu0 %v3996
          %4046 = vmatpush.msra.mxu0 %v3992
          %4047 = vmatpush.msra.mxu0 %v3988
          %4048 = vmatpush.msra.mxu0 %v3984
          %4049 = vmatpush.msra.mxu0 %v3980
          %4050 = vmatpush.msra.mxu0 %v3976
          %4051 = vmatpush.msra.mxu0 %v3972
          %4052 = vmatmul.f32.gmra.mxu0 %v3970
          %v4053 = vpop.f32.mrf.mxu0
          %v4054 = vadd.f32 0.0, %v4053
          %4055 = vmatmul.f32.gmra.mxu0 %v3971
          %v4056 = vpop.f32.mrf.mxu0
          %v4057 = vadd.f32 0.0, %v4056
          %4058 = vdwg.mxu0
          %4059 = vmatpush.msra.mxu0 %v4033
          %4060 = vmatpush.msra.mxu0 %v4029
          %4061 = vmatpush.msra.mxu0 %v4025
          %4062 = vmatpush.msra.mxu0 %v4021
          %4063 = vmatpush.msra.mxu0 %v4017
          %4064 = vmatpush.msra.mxu0 %v4013
          %4065 = vmatpush.msra.mxu0 %v4009
          %4066 = vmatpush.msra.mxu0 %v4005
          %4067 = vmatpush.msra.mxu0 %v4001
          %4068 = vmatpush.msra.mxu0 %v3997
          %4069 = vmatpush.msra.mxu0 %v3993
          %4070 = vmatpush.msra.mxu0 %v3989
          %4071 = vmatpush.msra.mxu0 %v3985
          %4072 = vmatpush.msra.mxu0 %v3981
          %4073 = vmatpush.msra.mxu0 %v3977
          %4074 = vmatpush.msra.mxu0 %v3973
          %4075 = vmatmul.f32.gmra.mxu0 %v3970
          %v4076 = vpop.f32.mrf.mxu0
          %v4077 = vadd.f32 0.0, %v4076
          %4078 = vmatmul.f32.gmra.mxu0 %v3971
          %v4079 = vpop.f32.mrf.mxu0
          %v4080 = vadd.f32 0.0, %v4079
          %4081 = vdwg.mxu0
          %4082 = vmatpush.msra.mxu0 %v4034
          %4083 = vmatpush.msra.mxu0 %v4030
          %4084 = vmatpush.msra.mxu0 %v4026
          %4085 = vmatpush.msra.mxu0 %v4022
          %4086 = vmatpush.msra.mxu0 %v4018
          %4087 = vmatpush.msra.mxu0 %v4014
          %4088 = vmatpush.msra.mxu0 %v4010
          %4089 = vmatpush.msra.mxu0 %v4006
          %4090 = vmatpush.msra.mxu0 %v4002
          %4091 = vmatpush.msra.mxu0 %v3998
          %4092 = vmatpush.msra.mxu0 %v3994
          %4093 = vmatpush.msra.mxu0 %v3990
          %4094 = vmatpush.msra.mxu0 %v3986
          %4095 = vmatpush.msra.mxu0 %v3982
          %4096 = vmatpush.msra.mxu0 %v3978
          %4097 = vmatpush.msra.mxu0 %v3974
          %4098 = vmatmul.f32.gmra.mxu0 %v3970
          %v4099 = vpop.f32.mrf.mxu0
          %v4100 = vadd.f32 0.0, %v4099
          %4101 = vmatmul.f32.gmra.mxu0 %v3971
          %v4102 = vpop.f32.mrf.mxu0
          %v4103 = vadd.f32 0.0, %v4102
          %4104 = vdwg.mxu0
          %4105 = vmatpush.msra.mxu0 %v4035
          %4106 = vmatpush.msra.mxu0 %v4031
          %4107 = vmatpush.msra.mxu0 %v4027
          %4108 = vmatpush.msra.mxu0 %v4023
          %4109 = vmatpush.msra.mxu0 %v4019
          %4110 = vmatpush.msra.mxu0 %v4015
          %4111 = vmatpush.msra.mxu0 %v4011
          %4112 = vmatpush.msra.mxu0 %v4007
          %4113 = vmatpush.msra.mxu0 %v4003
          %4114 = vmatpush.msra.mxu0 %v3999
          %4115 = vmatpush.msra.mxu0 %v3995
          %4116 = vmatpush.msra.mxu0 %v3991
          %4117 = vmatpush.msra.mxu0 %v3987
          %4118 = vmatpush.msra.mxu0 %v3983
          %4119 = vmatpush.msra.mxu0 %v3979
          %4120 = vmatpush.msra.mxu0 %v3975
          %4121 = vmatmul.f32.gmra.mxu0 %v3970
          %v4122 = vpop.f32.mrf.mxu0
          %v4123 = vadd.f32 0.0, %v4122
          %4124 = vmatmul.f32.gmra.mxu0 %v3971
          %v4125 = vpop.f32.mrf.mxu0
          %v4126 = vadd.f32 0.0, %v4125
          %4127 = vdwg.mxu0
          %4128 = vst [vmem:[#allocation9] sm:$0xff] %v4054
          %4129 = vst [vmem:[#allocation9 + $0x8] sm:$0xff] %v4077
          %4130 = vst [vmem:[#allocation9 + $0x10] sm:$0xff] %v4100
          %4131 = vst [vmem:[#allocation9 + $0x18] sm:$0xff] %v4123
          %4132 = vst [vmem:[#allocation9 + $0x20] sm:$0xff] %v4057
          %4133 = vst [vmem:[#allocation9 + $0x28] sm:$0xff] %v4080
          %4134 = vst [vmem:[#allocation9 + $0x30] sm:$0xff] %v4103
          %4135 = vst [vmem:[#allocation9 + $0x38] sm:$0xff] %v4126
        $region164: #{forward.1} parent=143 // pred_fallthru
          _
        // Predicated region
        $region165: #{forward.1} parent=143 // pred_check
          %p4136 = pneg %p840
        $region166: #{forward.1} parent=143 // pred_check_branch
          %4138 = sbr.rel (%p4136) target = $region168
        $region167: #{forward.1} parent=143 // pred_region
          %4140 = vsyncadd [#allocation5], 0
          %s4141 = sshll.u32 [#allocation9], 4
          %s4142 = int_to_ptr.vmem [resolvable:$true] %s4141
          %s4143 = sshll.u32 %s63, 4
          %s4144 = int_to_ptr.hbm [resolvable:$true] %s4143
          %4149 = dma.vmem_to_hbm [thread:$0]  %s4142, 1024, %s4144, [#allocation5], 512, 512, 32
        $region168: #{forward.1} parent=143 // pred_fallthru
          _
        // Predicated region
        $region169: #{forward.1} parent=143 // pred_check
          %p4150 = pneg %p840
        $region170: #{forward.1} parent=143 // pred_check_branch
          %4152 = sbr.rel (%p4150) target = $region172
        $region171: #{forward.1} parent=143 // pred_region
          %4154 = dma.done [#allocation5], 1024
        $region172: #{forward.1} parent=143 // pred_fallthru
          _
      $region144: #{forward.1} parent=5 // pred_fallthru
        _
      %p4155 = scmp.le.s32.totalorder 2, %s76
      // Predicated region
      $region173: #{forward.1} parent=5 // pred_check
        %p4156 = pneg %p4155
      $region174: #{forward.1} parent=5 // pred_check_branch
        %4158 = sbr.rel (%p4156) target = $region176
      $region175: #{forward.1} parent=5 // pred_region
        %s4159 = ssub.s32 %s76, 2
      $region176: #{forward.1} parent=5 // pred_fallthru
        _
    $region6: #{forward.1} parent=1 // loop_footer
      %s80 = sadd.s32 1, %s76
    $region7: #{forward.1} parent=1 // loop_footer_branch
      %75 = sbr.rel target = $region3
    $region8: #{forward.1} parent=1 // loop_exit
      _
    %4160 = vsyncpa [#allocation4], 1
    %s4161 = scalar_lea.sflag [#allocation4], 1
    %4162 = vsyncpa %s4161, 1
    %4163 = vsyncpa [#allocation7], 1
    %s4164 = scalar_lea.sflag [#allocation7], 1
    %4165 = vsyncpa %s4164, 1
    %4166 = vsyncpa [#allocation5], 1
    %s4167 = scalar_lea.sflag [#allocation5], 1
    %4168 = vsyncpa %s4167, 1

</llo_original>
